<compile_context>
chip_gen: v7x
topology: tpu7x:2x2x1
jax: 0.10.0
libtpu: 0.0.40
codegen_flags: <defaults>
</compile_context>

<pallas_src>
import jax
import jax.numpy as jnp
from jax.experimental import pallas as pl
from jax.experimental.pallas import tpu as pltpu


def _patient2vec0_kernel(
    # inputs
    x_ref,          # (TB, S, P*D)   bf16 visit codes, lane-dense
    demo_ref,       # (TB, 1, 3)     f32 demographics / ip features
    cwblk_ref,      # (P*D, P)       bf16, [p*D+d, p] = conv_w[d] (block "diag")
    conv_b_ref,     # (1, 1)         f32 Conv1d bias
    rep_ref,        # (P, P*D)       bf16 0/1 score-repeat matrix, [p, p*D+d] = 1
    embwt_ref,      # (P*D, E)       bf16 embed weight tiled P times along rows
    w_ih_f_ref,     # (E, 3H)        bf16 fwd GRU input weights (transposed)
    b_ih_f_ref,     # (1, 3H)        f32
    w_ih_b_ref,     # (E, 3H)        bf16 bwd GRU input weights (transposed)
    b_ih_b_ref,     # (1, 3H)        f32
    w_hh_f_ref,     # (H, 3H)        bf16 fwd recurrent weights (transposed)
    b_hh_f_ref,     # (1, 3H)        f32
    w_hh_b_ref,     # (H, 3H)        bf16 bwd recurrent weights (transposed)
    b_hh_b_ref,     # (1, 3H)        f32
    lin_w_ctx_ref,  # (2H, O)        bf16 final linear, context part
    lin_w_demo_ref, # (3, O)         bf16 final linear, demo/ip part
    lin_b_ref,      # (1, O)         f32
    # outputs
    out_ref,        # (TB, 1, O)     softmax output
    states_f_ref,   # (TB, S, H)     forward GRU states (batch-first)
    states_b_ref,   # (TB, S, H)     backward GRU states (batch-first)
    context_ref,    # (TB, 1, 2H)
    # scratch
    gi_f_sc,        # (TB, S, 3H)    f32 hoisted input-to-hidden activations (fwd)
    gi_b_sc,        # (TB, S, 3H)    f32 hoisted input-to-hidden activations (bwd)
    h_f_sc,         # (TB, H)        f32 forward hidden state
    h_b_sc,         # (TB, H)        f32 backward hidden state
    ctx_f_sc,       # (TB, H)        f32 running context (fwd half)
    ctx_b_sc,       # (TB, H)        f32 running context (bwd half)
):
    f32 = jnp.float32
    bf16 = jnp.bfloat16
    TB, S, PD = x_ref.shape
    H = w_hh_f_ref.shape[0]
    O = out_ref.shape[2]

    # ---- convolutional layer + embedding (all MXU, lane-dense) ----
    # Conv1d(kernel_size=D, stride=2) on a length-D code is a single scalar
    # score per code; the reference bmm then forms a score-weighted sum of the
    # visit's codes, which is immediately fed into the embedding matmul:
    #   emb = (x .* repeat(scores)) @ tile(embed_w, P)
    xf = x_ref[...].reshape(TB * S, PD)                                  # bf16
    scores = (jnp.dot(xf, cwblk_ref[...], preferred_element_type=f32)
              + conv_b_ref[...])                                         # (TB*S, P)
    srep = jnp.dot(scores.astype(bf16), rep_ref[...],
                   preferred_element_type=f32)                           # (TB*S, PD)
    weighted = (xf.astype(f32) * srep).astype(bf16)                      # score-weighted codes
    emb = jnp.dot(weighted, embwt_ref[...], preferred_element_type=f32)  # (TB*S, E)
    emb = jnp.clip(emb, -1.0, 1.0).astype(bf16)                          # Hardtanh
    # TODO(synk): nn.Dropout(p=0.5) on the embedding uses eval semantics (identity).

    # ---- hoisted GRU input-to-hidden matmuls, parked in VMEM scratch ----
    gi_f_sc[...] = (jnp.dot(emb, w_ih_f_ref[...], preferred_element_type=f32)
                    + b_ih_f_ref[...]).reshape(TB, S, 3 * H)
    gi_b_sc[...] = (jnp.dot(emb, w_ih_b_ref[...], preferred_element_type=f32)
                    + b_ih_b_ref[...]).reshape(TB, S, 3 * H)

    h_f_sc[...] = jnp.zeros_like(h_f_sc)
    h_b_sc[...] = jnp.zeros_like(h_b_sc)
    ctx_f_sc[...] = jnp.zeros_like(ctx_f_sc)
    ctx_b_sc[...] = jnp.zeros_like(ctx_b_sc)

    w_hh_f = w_hh_f_ref[...]
    b_hh_f = b_hh_f_ref[...]
    w_hh_b = w_hh_b_ref[...]
    b_hh_b = b_hh_b_ref[...]

    def gru_gates(gi, gh, h):
        r = jax.nn.sigmoid(gi[:, 0:H] + gh[:, 0:H])
        z = jax.nn.sigmoid(gi[:, H:2 * H] + gh[:, H:2 * H])
        n = jnp.tanh(gi[:, 2 * H:3 * H] + r * gh[:, 2 * H:3 * H])
        return (1.0 - z) * n + z * h

    # ---- bidirectional single-layer GRU (zero initial state) ----
    # Fused time loop: forward step t and backward step S-1-t per iteration;
    # hidden / context state lives in scratch so vreg live ranges stay bounded.
    # TODO(synk): n_layers > 1 (stacked GRU + inter-layer dropout) not implemented.
    # TODO(synk): for very long S, add unroll=2..4 and an S-chunk grid axis so
    #             the gi / states blocks stay under v7x's 64 MiB VMEM.
    @pl.loop(0, S)
    def _(t):
        tb = S - 1 - t
        gif = gi_f_sc[:, pl.ds(t, 1), :].reshape(TB, 3 * H)
        gib = gi_b_sc[:, pl.ds(tb, 1), :].reshape(TB, 3 * H)
        h_f = h_f_sc[...]
        h_b = h_b_sc[...]
        gh_f = jnp.dot(h_f.astype(bf16), w_hh_f, preferred_element_type=f32) + b_hh_f
        gh_b = jnp.dot(h_b.astype(bf16), w_hh_b, preferred_element_type=f32) + b_hh_b
        h_f = gru_gates(gif, gh_f, h_f)
        h_b = gru_gates(gib, gh_b, h_b)
        h_f_sc[...] = h_f
        h_b_sc[...] = h_b
        ctx_f_sc[...] += h_f
        ctx_b_sc[...] += h_b
        states_f_ref[:, pl.ds(t, 1), :] = h_f[:, None, :]
        states_b_ref[:, pl.ds(tb, 1), :] = h_b[:, None, :]

    # ---- attention (att_dim == 1 -> softmax over size-1 dim is 1) ----
    # context = bmm(alpha, states) with alpha == 1 reduces to the plain sum
    # over time, accumulated above inside the loop.
    ctx = jnp.concatenate([ctx_f_sc[...], ctx_b_sc[...]], axis=-1)       # (TB, 2H)
    context_ref[...] = ctx.reshape(TB, 1, 2 * H)

    # ---- final linear on [context | demo] + softmax ----
    demo = demo_ref[...].reshape(TB, 3)
    y = (jnp.dot(ctx.astype(bf16), lin_w_ctx_ref[...], preferred_element_type=f32)
         + jnp.dot(demo.astype(bf16), lin_w_demo_ref[...], preferred_element_type=f32)
         + lin_b_ref[...])
    y = y - jnp.max(y, axis=-1, keepdims=True)
    e = jnp.exp(y)
    p = e * pl.reciprocal(jnp.sum(e, axis=-1, keepdims=True), approx=True)
    out_ref[...] = p.reshape(TB, 1, O)


def _vmem_resident_bytes(TB, S, P, D, E, H, O):
    """Rough per-grid-step VMEM resident-set estimate (bytes)."""
    PD = P * D
    x_blk = 2 * TB * S * PD * 2                                # bf16 input, double-buffered
    out_blk = 2 * (TB * O + 2 * TB * S * H + TB * 2 * H) * 4   # f32 outputs, double-buffered
    scratch = (2 * TB * S * 3 * H + 4 * TB * H) * 4
    weights = (PD * P + P * PD + PD * E + 2 * E * 3 * H + 2 * H * 3 * H
               + 2 * H * O + 3 * O) * 2 * 2
    biases = (1 + 4 * 3 * H + O + TB * 3) * 4 * 2
    live = TB * S * (2 * PD + P + E + 6 * H) * 4               # prologue temporaries
    return x_blk + out_blk + scratch + weights + biases + live


def patient2vec0_forward(params, inputs, inputs_demoip, *, batch_tile=None):
    """inputs: (B, S, P, D) float32 (PyTorch layout); inputs_demoip: (B, 3)."""
    f32, bf16 = jnp.float32, jnp.bfloat16
    B, S, P, D = inputs.shape
    E = params["embed_w"].shape[1]
    H = params["w_hh_f"].shape[0]
    O = params["lin_b"].shape[1]
    PD = P * D

    if batch_tile is None:
        # Largest divisor of B <= 256 (MXU-friendly M dim), preferring >= 2
        # grid steps so the "parallel" batch axis shards across v7x's two TCs.
        divs = [d for d in range(1, min(B, 256) + 1) if B % d == 0]
        two_step = [d for d in divs if B // d >= 2]
        batch_tile = max(two_step) if two_step else max(divs)
        # Shrink until the resident set (2x headroom) fits under 48 MiB (v7x-safe).
        while (batch_tile > 1 and
               2 * _vmem_resident_bytes(batch_tile, S, P, D, E, H, O) > 48 * 2**20):
            batch_tile = max(d for d in divs if d < batch_tile)
    TB = batch_tile
    assert B % TB == 0, "batch must be divisible by batch_tile"
    grid = (B // TB,)
    vmem_limit = int(min(max(2 * _vmem_resident_bytes(TB, S, P, D, E, H, O),
                             16 * 2**20), 48 * 2**20))

    # One-time constant-matrix prep (tiny): express conv score + weighted code
    # sum + embedding as lane-dense MXU matmuls; cast matmul weights to bf16.
    eye_p = jnp.eye(P, dtype=f32)
    cw_blk = jnp.kron(eye_p, params["conv_w"].reshape(D, 1)).astype(bf16)   # (PD, P)
    rep_mat = jnp.kron(eye_p, jnp.ones((1, D), f32)).astype(bf16)           # (P, PD)
    emb_w_tiled = jnp.tile(params["embed_w"], (P, 1)).astype(bf16)          # (PD, E)

    x_flat = inputs.reshape(B, S, PD).astype(bf16)    # contiguous reshape, lane-dense
    demo3 = inputs_demoip.astype(f32).reshape(B, 1, 3)

    args = (
        x_flat, demo3,
        cw_blk, params["conv_b"].astype(f32), rep_mat, emb_w_tiled,
        params["w_ih_f"].astype(bf16), params["b_ih_f"].astype(f32),
        params["w_ih_b"].astype(bf16), params["b_ih_b"].astype(f32),
        params["w_hh_f"].astype(bf16), params["b_hh_f"].astype(f32),
        params["w_hh_b"].astype(bf16), params["b_hh_b"].astype(f32),
        params["lin_w_ctx"].astype(bf16), params["lin_w_demo"].astype(bf16),
        params["lin_b"].astype(f32),
    )
    # params["att_w1"] is mathematically inert (softmax over att_dim == 1).

    def _full(a):
        nd = a.ndim
        return pl.BlockSpec(a.shape, lambda i, nd=nd: (0,) * nd)

    def _batched(shape):   # batch stays the LEADING dim of every block
        nd = len(shape)
        return pl.BlockSpec((TB,) + tuple(shape[1:]),
                            lambda i, nd=nd: (i,) + (0,) * (nd - 1))

    in_specs = ([_batched(x_flat.shape), _batched(demo3.shape)]
                + [_full(a) for a in args[2:]])

    out_shapes = (
        jax.ShapeDtypeStruct((B, 1, O), f32),        # softmax output
        jax.ShapeDtypeStruct((B, S, H), f32),        # forward states
        jax.ShapeDtypeStruct((B, S, H), f32),        # backward states
        jax.ShapeDtypeStruct((B, 1, 2 * H), f32),    # context
    )
    out_specs = (
        _batched((B, 1, O)),
        _batched((B, S, H)),
        _batched((B, S, H)),
        _batched((B, 1, 2 * H)),
    )

    scratch_shapes = [
        pltpu.VMEM((TB, S, 3 * H), f32),   # gi fwd
        pltpu.VMEM((TB, S, 3 * H), f32),   # gi bwd
        pltpu.VMEM((TB, H), f32),          # h fwd
        pltpu.VMEM((TB, H), f32),          # h bwd
        pltpu.VMEM((TB, H), f32),          # ctx fwd
        pltpu.VMEM((TB, H), f32),          # ctx bwd
    ]

    out3, states_f, states_b, context3 = pl.pallas_call(
        _patient2vec0_kernel,
        out_shape=out_shapes,
        grid=grid,
        in_specs=in_specs,
        out_specs=out_specs,
        scratch_shapes=scratch_shapes,
        compiler_params=pltpu.CompilerParams(
            dimension_semantics=("parallel",),
            vmem_limit_bytes=vmem_limit,
        ),
    )(*args)

    out = out3.reshape(B, O)
    states_rnn = jnp.concatenate([states_f, states_b], axis=-1)   # (B, S, 2H)
    context = context3.reshape(B, 2 * H)
    # att_dim == 1 -> softmax over the size-1 attention dim is identically 1.
    alpha = jnp.ones((B, 1, S), f32)
    return out, (states_rnn, context, alpha)


def init_params(key, input_size, embed_size, hidden_size, att_dim, output_size,
                initrange):
    """Deterministic uniform(-initrange, initrange) init, matching init_weights()."""
    D, E, H, O = input_size, embed_size, hidden_size, output_size
    ks = jax.random.split(key, 15)
    u = lambda k, shp: jax.random.uniform(k, shp, jnp.float32, -initrange, initrange)
    return dict(
        conv_w=u(ks[0], (1, D)),            # Conv1d weight (1,1,D) flattened
        conv_b=u(ks[1], (1, 1)),            # Conv1d bias
        embed_w=u(ks[2], (D, E)),           # nn.Linear(D, E, bias=False), transposed
        w_ih_f=u(ks[3], (E, 3 * H)),        # GRU weight_ih_l0 (fwd), transposed
        w_hh_f=u(ks[4], (H, 3 * H)),
        b_ih_f=u(ks[5], (1, 3 * H)),
        b_hh_f=u(ks[6], (1, 3 * H)),
        w_ih_b=u(ks[7], (E, 3 * H)),        # GRU reverse direction
        w_hh_b=u(ks[8], (H, 3 * H)),
        b_ih_b=u(ks[9], (1, 3 * H)),
        b_hh_b=u(ks[10], (1, 3 * H)),
        att_w1=u(ks[11], (att_dim, 2 * H)),  # att_dim must be 1; output-inert
        lin_w_ctx=u(ks[12], (2 * H, O)),     # final linear split: context part
        lin_w_demo=u(ks[13], (3, O)),        # final linear split: demo/ip part
        lin_b=u(ks[14], (1, O)),
    )


if __name__ == "__main__":
    # small, shape-consistent configuration (P*D = 128 and 2H = 128 lane-dense)
    B, S, P, D = 16, 8, 8, 16         # batch, seq_len, pad_size, input_size
    E, H, O = 64, 64, 4               # embed_size, hidden_size, output_size
    ATT_DIM = 1                       # required so att_dim*2H + 3 == 2H + 3
    INITRANGE = 0.5

    key = jax.random.PRNGKey(0)
    k_in, k_demo, k_par = jax.random.split(key, 3)
    inputs = jax.random.uniform(k_in, (B, S, P, D), jnp.float32)       # visit codes
    inputs_demoip = jax.random.uniform(k_demo, (B, 3), jnp.float32)    # demographics

    params = init_params(k_par, D, E, H, ATT_DIM, O, INITRANGE)

    # default batch_tile -> TB=8, grid=(2,), marked "parallel" (uses both
    # TensorCores on v7x; harmless on single-TC v5e/v6e).
    out, (states_rnn, context, alpha) = patient2vec0_forward(
        params, inputs, inputs_demoip)
    jax.block_until_ready((out, states_rnn, context, alpha))

    assert out.shape == (B, O)
    assert states_rnn.shape == (B, S, 2 * H)
    assert context.shape == (B, 2 * H)
    assert alpha.shape == (B, 1, S)
    assert bool(jnp.all(jnp.isfinite(out)))
    # softmax rows sum to 1 (approx-reciprocal normalization -> loose tolerance)
    assert bool(jnp.all(jnp.abs(jnp.sum(out, axis=-1) - 1.0) < 5e-3))
    # attention over att_dim=1 is identically 1, context is the sum over time
    assert bool(jnp.all(jnp.abs(alpha - 1.0) < 1e-6))
    assert bool(jnp.all(jnp.abs(context - jnp.sum(states_rnn, axis=1)) < 1e-3))

    print("KERNEL_OK")
</pallas_src>

<mosaic_0001>
module attributes {stable_mosaic.version = 11 : i64} {
  func.func @_patient2vec0_kernel(%arg0: i32, %arg1: memref<8x8x128xbf16, #tpu.memory_space<vmem>>, %arg2: memref<8x1x3xf32, #tpu.memory_space<vmem>>, %arg3: memref<128x8xbf16, #tpu.memory_space<vmem>>, %arg4: memref<1x1xf32, #tpu.memory_space<vmem>>, %arg5: memref<8x128xbf16, #tpu.memory_space<vmem>>, %arg6: memref<128x64xbf16, #tpu.memory_space<vmem>>, %arg7: memref<64x192xbf16, #tpu.memory_space<vmem>>, %arg8: memref<1x192xf32, #tpu.memory_space<vmem>>, %arg9: memref<64x192xbf16, #tpu.memory_space<vmem>>, %arg10: memref<1x192xf32, #tpu.memory_space<vmem>>, %arg11: memref<64x192xbf16, #tpu.memory_space<vmem>>, %arg12: memref<1x192xf32, #tpu.memory_space<vmem>>, %arg13: memref<64x192xbf16, #tpu.memory_space<vmem>>, %arg14: memref<1x192xf32, #tpu.memory_space<vmem>>, %arg15: memref<128x4xbf16, #tpu.memory_space<vmem>>, %arg16: memref<3x4xbf16, #tpu.memory_space<vmem>>, %arg17: memref<1x4xf32, #tpu.memory_space<vmem>>, %arg18: memref<8x1x4xf32, #tpu.memory_space<vmem>>, %arg19: memref<8x8x64xf32, #tpu.memory_space<vmem>>, %arg20: memref<8x8x64xf32, #tpu.memory_space<vmem>>, %arg21: memref<8x1x128xf32, #tpu.memory_space<vmem>>, %arg22: memref<8x8x192xf32, #tpu.memory_space<vmem>>, %arg23: memref<8x8x192xf32, #tpu.memory_space<vmem>>, %arg24: memref<8x64xf32, #tpu.memory_space<vmem>>, %arg25: memref<8x64xf32, #tpu.memory_space<vmem>>, %arg26: memref<8x64xf32, #tpu.memory_space<vmem>>, %arg27: memref<8x64xf32, #tpu.memory_space<vmem>>) attributes {dimension_semantics = [#tpu.dimension_semantics<parallel>], iteration_bounds = array<i64: 2>, scalar_prefetch = 0 : i64, scratch_operands = 6 : i64, tpu.core_type = #tpu.core_type<tc>, window_params = [{transform_indices = @transform_0, window_bounds = array<i64: 8, 8, 128>}, {transform_indices = @transform_1, window_bounds = array<i64: 8, 1, 3>}, {pipeline_mode = #tpu.pipeline_mode<synchronous>, transform_indices = @transform_2, window_bounds = array<i64: 128, 8>}, {pipeline_mode = #tpu.pipeline_mode<synchronous>, transform_indices = @transform_3, window_bounds = array<i64: 1, 1>}, {pipeline_mode = #tpu.pipeline_mode<synchronous>, transform_indices = @transform_4, window_bounds = array<i64: 8, 128>}, {pipeline_mode = #tpu.pipeline_mode<synchronous>, transform_indices = @transform_5, window_bounds = array<i64: 128, 64>}, {pipeline_mode = #tpu.pipeline_mode<synchronous>, transform_indices = @transform_6, window_bounds = array<i64: 64, 192>}, {pipeline_mode = #tpu.pipeline_mode<synchronous>, transform_indices = @transform_7, window_bounds = array<i64: 1, 192>}, {pipeline_mode = #tpu.pipeline_mode<synchronous>, transform_indices = @transform_8, window_bounds = array<i64: 64, 192>}, {pipeline_mode = #tpu.pipeline_mode<synchronous>, transform_indices = @transform_9, window_bounds = array<i64: 1, 192>}, {pipeline_mode = #tpu.pipeline_mode<synchronous>, transform_indices = @transform_10, window_bounds = array<i64: 64, 192>}, {pipeline_mode = #tpu.pipeline_mode<synchronous>, transform_indices = @transform_11, window_bounds = array<i64: 1, 192>}, {pipeline_mode = #tpu.pipeline_mode<synchronous>, transform_indices = @transform_12, window_bounds = array<i64: 64, 192>}, {pipeline_mode = #tpu.pipeline_mode<synchronous>, transform_indices = @transform_13, window_bounds = array<i64: 1, 192>}, {pipeline_mode = #tpu.pipeline_mode<synchronous>, transform_indices = @transform_14, window_bounds = array<i64: 128, 4>}, {pipeline_mode = #tpu.pipeline_mode<synchronous>, transform_indices = @transform_15, window_bounds = array<i64: 3, 4>}, {pipeline_mode = #tpu.pipeline_mode<synchronous>, transform_indices = @transform_16, window_bounds = array<i64: 1, 4>}, {transform_indices = @transform_17, window_bounds = array<i64: 8, 1, 4>}, {transform_indices = @transform_18, window_bounds = array<i64: 8, 8, 64>}, {transform_indices = @transform_19, window_bounds = array<i64: 8, 8, 64>}, {transform_indices = @transform_20, window_bounds = array<i64: 8, 1, 128>}]} {
    %c0 = arith.constant 0 : index
    %c0_0 = arith.constant 0 : index
    %c0_1 = arith.constant 0 : index
    %0 = vector.load %arg1[%c0, %c0_0, %c0_1] : memref<8x8x128xbf16, #tpu.memory_space<vmem>>, vector<8x8x128xbf16>
    %1 = vector.shape_cast %0 : vector<8x8x128xbf16> to vector<64x128xbf16>
    %c0_2 = arith.constant 0 : index
    %c0_3 = arith.constant 0 : index
    %2 = vector.load %arg3[%c0_2, %c0_3] : memref<128x8xbf16, #tpu.memory_space<vmem>>, vector<128x8xbf16>
    %cst = arith.constant dense<0.000000e+00> : vector<64x8xf32>
    %3 = tpu.matmul %1, %2, %cst {dimension_numbers = #tpu.dot_dimension_numbers<[1], [0], [0], [1], [0, 0, 1, 1], [], []>} : vector<64x128xbf16>, vector<128x8xbf16>, vector<64x8xf32> -> vector<64x8xf32>
    %c0_4 = arith.constant 0 : index
    %c0_5 = arith.constant 0 : index
    %4 = vector.load %arg4[%c0_4, %c0_5] : memref<1x1xf32, #tpu.memory_space<vmem>>, vector<1x1xf32>
    %5 = vector.broadcast %4 : vector<1x1xf32> to vector<64x8xf32>
    %6 = arith.addf %3, %5 : vector<64x8xf32>
    %7 = arith.truncf %6 : vector<64x8xf32> to vector<64x8xbf16>
    %c0_6 = arith.constant 0 : index
    %c0_7 = arith.constant 0 : index
    %8 = vector.load %arg5[%c0_6, %c0_7] : memref<8x128xbf16, #tpu.memory_space<vmem>>, vector<8x128xbf16>
    %cst_8 = arith.constant dense<0.000000e+00> : vector<64x128xf32>
    %9 = tpu.matmul %7, %8, %cst_8 {dimension_numbers = #tpu.dot_dimension_numbers<[1], [0], [0], [1], [0, 0, 1, 1], [], []>} : vector<64x8xbf16>, vector<8x128xbf16>, vector<64x128xf32> -> vector<64x128xf32>
    %10 = arith.extf %1 : vector<64x128xbf16> to vector<64x128xf32>
    %11 = arith.mulf %10, %9 : vector<64x128xf32>
    %12 = arith.truncf %11 : vector<64x128xf32> to vector<64x128xbf16>
    %c0_9 = arith.constant 0 : index
    %c0_10 = arith.constant 0 : index
    %13 = vector.load %arg6[%c0_9, %c0_10] : memref<128x64xbf16, #tpu.memory_space<vmem>>, vector<128x64xbf16>
    %cst_11 = arith.constant dense<0.000000e+00> : vector<64x64xf32>
    %14 = tpu.matmul %12, %13, %cst_11 {dimension_numbers = #tpu.dot_dimension_numbers<[1], [0], [0], [1], [0, 0, 1, 1], [], []>} : vector<64x128xbf16>, vector<128x64xbf16>, vector<64x64xf32> -> vector<64x64xf32>
    %cst_12 = arith.constant -1.000000e+00 : f32
    %cst_13 = arith.constant 1.000000e+00 : f32
    %15 = vector.broadcast %cst_12 : f32 to vector<64x64xf32>
    %16 = arith.maximumf %15, %14 : vector<64x64xf32>
    %17 = vector.broadcast %cst_13 : f32 to vector<64x64xf32>
    %18 = arith.minimumf %17, %16 : vector<64x64xf32>
    %19 = arith.truncf %18 : vector<64x64xf32> to vector<64x64xbf16>
    %c0_14 = arith.constant 0 : index
    %c0_15 = arith.constant 0 : index
    %20 = vector.load %arg7[%c0_14, %c0_15] : memref<64x192xbf16, #tpu.memory_space<vmem>>, vector<64x192xbf16>
    %cst_16 = arith.constant dense<0.000000e+00> : vector<64x192xf32>
    %21 = tpu.matmul %19, %20, %cst_16 {dimension_numbers = #tpu.dot_dimension_numbers<[1], [0], [0], [1], [0, 0, 1, 1], [], []>} : vector<64x64xbf16>, vector<64x192xbf16>, vector<64x192xf32> -> vector<64x192xf32>
    %c0_17 = arith.constant 0 : index
    %c0_18 = arith.constant 0 : index
    %22 = vector.load %arg8[%c0_17, %c0_18] : memref<1x192xf32, #tpu.memory_space<vmem>>, vector<1x192xf32>
    %23 = vector.broadcast %22 : vector<1x192xf32> to vector<64x192xf32>
    %24 = arith.addf %21, %23 : vector<64x192xf32>
    %25 = vector.shape_cast %24 : vector<64x192xf32> to vector<8x8x192xf32>
    %c0_19 = arith.constant 0 : index
    %c0_20 = arith.constant 0 : index
    %c0_21 = arith.constant 0 : index
    %26 = vector.load %arg22[%c0_19, %c0_20, %c0_21] : memref<8x8x192xf32, #tpu.memory_space<vmem>>, vector<8x8x192xf32>
    tpu.vector_store %arg22[%c0_19, %c0_20, %c0_21], %25 {strides = array<i32>} : memref<8x8x192xf32, #tpu.memory_space<vmem>>, vector<8x8x192xf32>,
    %c0_22 = arith.constant 0 : index
    %c0_23 = arith.constant 0 : index
    %27 = vector.load %arg9[%c0_22, %c0_23] : memref<64x192xbf16, #tpu.memory_space<vmem>>, vector<64x192xbf16>
    %cst_24 = arith.constant dense<0.000000e+00> : vector<64x192xf32>
    %28 = tpu.matmul %19, %27, %cst_24 {dimension_numbers = #tpu.dot_dimension_numbers<[1], [0], [0], [1], [0, 0, 1, 1], [], []>} : vector<64x64xbf16>, vector<64x192xbf16>, vector<64x192xf32> -> vector<64x192xf32>
    %c0_25 = arith.constant 0 : index
    %c0_26 = arith.constant 0 : index
    %29 = vector.load %arg10[%c0_25, %c0_26] : memref<1x192xf32, #tpu.memory_space<vmem>>, vector<1x192xf32>
    %30 = vector.broadcast %29 : vector<1x192xf32> to vector<64x192xf32>
    %31 = arith.addf %28, %30 : vector<64x192xf32>
    %32 = vector.shape_cast %31 : vector<64x192xf32> to vector<8x8x192xf32>
    %c0_27 = arith.constant 0 : index
    %c0_28 = arith.constant 0 : index
    %c0_29 = arith.constant 0 : index
    %33 = vector.load %arg23[%c0_27, %c0_28, %c0_29] : memref<8x8x192xf32, #tpu.memory_space<vmem>>, vector<8x8x192xf32>
    tpu.vector_store %arg23[%c0_27, %c0_28, %c0_29], %32 {strides = array<i32>} : memref<8x8x192xf32, #tpu.memory_space<vmem>>, vector<8x8x192xf32>,
    %cst_30 = arith.constant 0.000000e+00 : f32
    %34 = vector.broadcast %cst_30 : f32 to vector<8x64xf32>
    %c0_31 = arith.constant 0 : index
    %c0_32 = arith.constant 0 : index
    %35 = vector.load %arg24[%c0_31, %c0_32] : memref<8x64xf32, #tpu.memory_space<vmem>>, vector<8x64xf32>
    tpu.vector_store %arg24[%c0_31, %c0_32], %34 {strides = array<i32>} : memref<8x64xf32, #tpu.memory_space<vmem>>, vector<8x64xf32>,
    %cst_33 = arith.constant 0.000000e+00 : f32
    %36 = vector.broadcast %cst_33 : f32 to vector<8x64xf32>
    %c0_34 = arith.constant 0 : index
    %c0_35 = arith.constant 0 : index
    %37 = vector.load %arg25[%c0_34, %c0_35] : memref<8x64xf32, #tpu.memory_space<vmem>>, vector<8x64xf32>
    tpu.vector_store %arg25[%c0_34, %c0_35], %36 {strides = array<i32>} : memref<8x64xf32, #tpu.memory_space<vmem>>, vector<8x64xf32>,
    %cst_36 = arith.constant 0.000000e+00 : f32
    %38 = vector.broadcast %cst_36 : f32 to vector<8x64xf32>
    %c0_37 = arith.constant 0 : index
    %c0_38 = arith.constant 0 : index
    %39 = vector.load %arg26[%c0_37, %c0_38] : memref<8x64xf32, #tpu.memory_space<vmem>>, vector<8x64xf32>
    tpu.vector_store %arg26[%c0_37, %c0_38], %38 {strides = array<i32>} : memref<8x64xf32, #tpu.memory_space<vmem>>, vector<8x64xf32>,
    %cst_39 = arith.constant 0.000000e+00 : f32
    %40 = vector.broadcast %cst_39 : f32 to vector<8x64xf32>
    %c0_40 = arith.constant 0 : index
    %c0_41 = arith.constant 0 : index
    %41 = vector.load %arg27[%c0_40, %c0_41] : memref<8x64xf32, #tpu.memory_space<vmem>>, vector<8x64xf32>
    tpu.vector_store %arg27[%c0_40, %c0_41], %40 {strides = array<i32>} : memref<8x64xf32, #tpu.memory_space<vmem>>, vector<8x64xf32>,
    %c0_42 = arith.constant 0 : index
    %c0_43 = arith.constant 0 : index
    %42 = vector.load %arg11[%c0_42, %c0_43] : memref<64x192xbf16, #tpu.memory_space<vmem>>, vector<64x192xbf16>
    %c0_44 = arith.constant 0 : index
    %c0_45 = arith.constant 0 : index
    %43 = vector.load %arg12[%c0_44, %c0_45] : memref<1x192xf32, #tpu.memory_space<vmem>>, vector<1x192xf32>
    %c0_46 = arith.constant 0 : index
    %c0_47 = arith.constant 0 : index
    %44 = vector.load %arg13[%c0_46, %c0_47] : memref<64x192xbf16, #tpu.memory_space<vmem>>, vector<64x192xbf16>
    %c0_48 = arith.constant 0 : index
    %c0_49 = arith.constant 0 : index
    %45 = vector.load %arg14[%c0_48, %c0_49] : memref<1x192xf32, #tpu.memory_space<vmem>>, vector<1x192xf32>
    %c0_i32 = arith.constant 0 : i32
    %c8_i32 = arith.constant 8 : i32
    %46 = arith.addi %c0_i32, %c8_i32 : i32
    %c1_i32 = arith.constant 1 : i32
    scf.for %arg28 = %c0_i32 to %46 step %c1_i32  : i32 {
      %c1_i32_74 = arith.constant 1 : i32
      %76 = arith.muli %arg28, %c1_i32_74 : i32
      %c0_i32_75 = arith.constant 0 : i32
      %77 = arith.addi %c0_i32_75, %76 : i32
      %c7_i32 = arith.constant 7 : i32
      %78 = arith.subi %c7_i32, %77 : i32
      %c0_76 = arith.constant 0 : index
      %79 = arith.index_cast %77 : i32 to index
      %c0_77 = arith.constant 0 : index
      %80 = vector.load %arg22[%c0_76, %79, %c0_77] : memref<8x8x192xf32, #tpu.memory_space<vmem>>, vector<8x1x192xf32>
      %81 = vector.shape_cast %80 : vector<8x1x192xf32> to vector<8x192xf32>
      %c0_78 = arith.constant 0 : index
      %82 = arith.index_cast %78 : i32 to index
      %c0_79 = arith.constant 0 : index
      %83 = vector.load %arg23[%c0_78, %82, %c0_79] : memref<8x8x192xf32, #tpu.memory_space<vmem>>, vector<8x1x192xf32>
      %84 = vector.shape_cast %83 : vector<8x1x192xf32> to vector<8x192xf32>
      %c0_80 = arith.constant 0 : index
      %c0_81 = arith.constant 0 : index
      %85 = vector.load %arg24[%c0_80, %c0_81] : memref<8x64xf32, #tpu.memory_space<vmem>>, vector<8x64xf32>
      %c0_82 = arith.constant 0 : index
      %c0_83 = arith.constant 0 : index
      %86 = vector.load %arg25[%c0_82, %c0_83] : memref<8x64xf32, #tpu.memory_space<vmem>>, vector<8x64xf32>
      %87 = arith.truncf %85 : vector<8x64xf32> to vector<8x64xbf16>
      %cst_84 = arith.constant dense<0.000000e+00> : vector<8x192xf32>
      %88 = tpu.matmul %87, %42, %cst_84 {dimension_numbers = #tpu.dot_dimension_numbers<[1], [0], [0], [1], [0, 0, 1, 1], [], []>} : vector<8x64xbf16>, vector<64x192xbf16>, vector<8x192xf32> -> vector<8x192xf32>
      %89 = vector.broadcast %43 : vector<1x192xf32> to vector<8x192xf32>
      %90 = arith.addf %88, %89 : vector<8x192xf32>
      %91 = arith.truncf %86 : vector<8x64xf32> to vector<8x64xbf16>
      %cst_85 = arith.constant dense<0.000000e+00> : vector<8x192xf32>
      %92 = tpu.matmul %91, %44, %cst_85 {dimension_numbers = #tpu.dot_dimension_numbers<[1], [0], [0], [1], [0, 0, 1, 1], [], []>} : vector<8x64xbf16>, vector<64x192xbf16>, vector<8x192xf32> -> vector<8x192xf32>
      %93 = vector.broadcast %45 : vector<1x192xf32> to vector<8x192xf32>
      %94 = arith.addf %92, %93 : vector<8x192xf32>
      %95 = vector.extract_strided_slice %81 {offsets = [0, 0], sizes = [8, 64], strides = [1, 1]} : vector<8x192xf32> to vector<8x64xf32>
      %96 = vector.extract_strided_slice %90 {offsets = [0, 0], sizes = [8, 64], strides = [1, 1]} : vector<8x192xf32> to vector<8x64xf32>
      %97 = arith.addf %95, %96 : vector<8x64xf32>
      %98 = arith.negf %97 : vector<8x64xf32>
      %99 = math.exp %98 : vector<8x64xf32>
      %cst_86 = arith.constant 1.000000e+00 : f32
      %100 = vector.broadcast %cst_86 : f32 to vector<8x64xf32>
      %101 = arith.addf %100, %99 : vector<8x64xf32>
      %102 = arith.divf %100, %101 : vector<8x64xf32>
      %103 = vector.extract_strided_slice %81 {offsets = [0, 64], sizes = [8, 64], strides = [1, 1]} : vector<8x192xf32> to vector<8x64xf32>
      %104 = vector.extract_strided_slice %90 {offsets = [0, 64], sizes = [8, 64], strides = [1, 1]} : vector<8x192xf32> to vector<8x64xf32>
      %105 = arith.addf %103, %104 : vector<8x64xf32>
      %106 = arith.negf %105 : vector<8x64xf32>
      %107 = math.exp %106 : vector<8x64xf32>
      %cst_87 = arith.constant 1.000000e+00 : f32
      %108 = vector.broadcast %cst_87 : f32 to vector<8x64xf32>
      %109 = arith.addf %108, %107 : vector<8x64xf32>
      %110 = arith.divf %108, %109 : vector<8x64xf32>
      %111 = vector.extract_strided_slice %81 {offsets = [0, 128], sizes = [8, 64], strides = [1, 1]} : vector<8x192xf32> to vector<8x64xf32>
      %112 = vector.extract_strided_slice %90 {offsets = [0, 128], sizes = [8, 64], strides = [1, 1]} : vector<8x192xf32> to vector<8x64xf32>
      %113 = arith.mulf %102, %112 : vector<8x64xf32>
      %114 = arith.addf %111, %113 : vector<8x64xf32>
      %115 = math.tanh %114 : vector<8x64xf32>
      %cst_88 = arith.constant 1.000000e+00 : f32
      %116 = vector.broadcast %cst_88 : f32 to vector<8x64xf32>
      %117 = arith.subf %116, %110 : vector<8x64xf32>
      %118 = arith.mulf %117, %115 : vector<8x64xf32>
      %119 = arith.mulf %110, %85 : vector<8x64xf32>
      %120 = arith.addf %118, %119 : vector<8x64xf32>
      %121 = vector.extract_strided_slice %84 {offsets = [0, 0], sizes = [8, 64], strides = [1, 1]} : vector<8x192xf32> to vector<8x64xf32>
      %122 = vector.extract_strided_slice %94 {offsets = [0, 0], sizes = [8, 64], strides = [1, 1]} : vector<8x192xf32> to vector<8x64xf32>
      %123 = arith.addf %121, %122 : vector<8x64xf32>
      %124 = arith.negf %123 : vector<8x64xf32>
      %125 = math.exp %124 : vector<8x64xf32>
      %cst_89 = arith.constant 1.000000e+00 : f32
      %126 = vector.broadcast %cst_89 : f32 to vector<8x64xf32>
      %127 = arith.addf %126, %125 : vector<8x64xf32>
      %128 = arith.divf %126, %127 : vector<8x64xf32>
      %129 = vector.extract_strided_slice %84 {offsets = [0, 64], sizes = [8, 64], strides = [1, 1]} : vector<8x192xf32> to vector<8x64xf32>
      %130 = vector.extract_strided_slice %94 {offsets = [0, 64], sizes = [8, 64], strides = [1, 1]} : vector<8x192xf32> to vector<8x64xf32>
      %131 = arith.addf %129, %130 : vector<8x64xf32>
      %132 = arith.negf %131 : vector<8x64xf32>
      %133 = math.exp %132 : vector<8x64xf32>
      %cst_90 = arith.constant 1.000000e+00 : f32
      %134 = vector.broadcast %cst_90 : f32 to vector<8x64xf32>
      %135 = arith.addf %134, %133 : vector<8x64xf32>
      %136 = arith.divf %134, %135 : vector<8x64xf32>
      %137 = vector.extract_strided_slice %84 {offsets = [0, 128], sizes = [8, 64], strides = [1, 1]} : vector<8x192xf32> to vector<8x64xf32>
      %138 = vector.extract_strided_slice %94 {offsets = [0, 128], sizes = [8, 64], strides = [1, 1]} : vector<8x192xf32> to vector<8x64xf32>
      %139 = arith.mulf %128, %138 : vector<8x64xf32>
      %140 = arith.addf %137, %139 : vector<8x64xf32>
      %141 = math.tanh %140 : vector<8x64xf32>
      %cst_91 = arith.constant 1.000000e+00 : f32
      %142 = vector.broadcast %cst_91 : f32 to vector<8x64xf32>
      %143 = arith.subf %142, %136 : vector<8x64xf32>
      %144 = arith.mulf %143, %141 : vector<8x64xf32>
      %145 = arith.mulf %136, %86 : vector<8x64xf32>
      %146 = arith.addf %144, %145 : vector<8x64xf32>
      %c0_92 = arith.constant 0 : index
      %c0_93 = arith.constant 0 : index
      %147 = vector.load %arg24[%c0_92, %c0_93] : memref<8x64xf32, #tpu.memory_space<vmem>>, vector<8x64xf32>
      tpu.vector_store %arg24[%c0_92, %c0_93], %120 {strides = array<i32>} : memref<8x64xf32, #tpu.memory_space<vmem>>, vector<8x64xf32>,
      %c0_94 = arith.constant 0 : index
      %c0_95 = arith.constant 0 : index
      %148 = vector.load %arg25[%c0_94, %c0_95] : memref<8x64xf32, #tpu.memory_space<vmem>>, vector<8x64xf32>
      tpu.vector_store %arg25[%c0_94, %c0_95], %146 {strides = array<i32>} : memref<8x64xf32, #tpu.memory_space<vmem>>, vector<8x64xf32>,
      %c0_96 = arith.constant 0 : index
      %c0_97 = arith.constant 0 : index
      %149 = vector.load %arg26[%c0_96, %c0_97] : memref<8x64xf32, #tpu.memory_space<vmem>>, vector<8x64xf32>
      %150 = arith.addf %149, %120 : vector<8x64xf32>
      %c0_98 = arith.constant 0 : index
      %c0_99 = arith.constant 0 : index
      %151 = vector.load %arg26[%c0_98, %c0_99] : memref<8x64xf32, #tpu.memory_space<vmem>>, vector<8x64xf32>
      tpu.vector_store %arg26[%c0_98, %c0_99], %150 {strides = array<i32>} : memref<8x64xf32, #tpu.memory_space<vmem>>, vector<8x64xf32>,
      %c0_100 = arith.constant 0 : index
      %c0_101 = arith.constant 0 : index
      %152 = vector.load %arg27[%c0_100, %c0_101] : memref<8x64xf32, #tpu.memory_space<vmem>>, vector<8x64xf32>
      %153 = arith.addf %152, %146 : vector<8x64xf32>
      %c0_102 = arith.constant 0 : index
      %c0_103 = arith.constant 0 : index
      %154 = vector.load %arg27[%c0_102, %c0_103] : memref<8x64xf32, #tpu.memory_space<vmem>>, vector<8x64xf32>
      tpu.vector_store %arg27[%c0_102, %c0_103], %153 {strides = array<i32>} : memref<8x64xf32, #tpu.memory_space<vmem>>, vector<8x64xf32>,
      %155 = vector.shape_cast %120 : vector<8x64xf32> to vector<8x1x64xf32>
      %c0_104 = arith.constant 0 : index
      %156 = arith.index_cast %77 : i32 to index
      %c0_105 = arith.constant 0 : index
      %157 = vector.load %arg19[%c0_104, %156, %c0_105] : memref<8x8x64xf32, #tpu.memory_space<vmem>>, vector<8x1x64xf32>
      tpu.vector_store %arg19[%c0_104, %156, %c0_105], %155 {strides = array<i32>} : memref<8x8x64xf32, #tpu.memory_space<vmem>>, vector<8x1x64xf32>,
      %158 = vector.shape_cast %146 : vector<8x64xf32> to vector<8x1x64xf32>
      %c0_106 = arith.constant 0 : index
      %159 = arith.index_cast %78 : i32 to index
      %c0_107 = arith.constant 0 : index
      %160 = vector.load %arg20[%c0_106, %159, %c0_107] : memref<8x8x64xf32, #tpu.memory_space<vmem>>, vector<8x1x64xf32>
      tpu.vector_store %arg20[%c0_106, %159, %c0_107], %158 {strides = array<i32>} : memref<8x8x64xf32, #tpu.memory_space<vmem>>, vector<8x1x64xf32>,
    }
    %c8_i32_50 = arith.constant 8 : i32
    %c0_51 = arith.constant 0 : index
    %c0_52 = arith.constant 0 : index
    %47 = vector.load %arg26[%c0_51, %c0_52] : memref<8x64xf32, #tpu.memory_space<vmem>>, vector<8x64xf32>
    %c0_53 = arith.constant 0 : index
    %c0_54 = arith.constant 0 : index
    %48 = vector.load %arg27[%c0_53, %c0_54] : memref<8x64xf32, #tpu.memory_space<vmem>>, vector<8x64xf32>
    %49 = tpu.concatenate %47, %48 in 1 : vector<8x64xf32>, vector<8x64xf32> -> vector<8x128xf32>
    %50 = vector.shape_cast %49 : vector<8x128xf32> to vector<8x1x128xf32>
    %c0_55 = arith.constant 0 : index
    %c0_56 = arith.constant 0 : index
    %c0_57 = arith.constant 0 : index
    %51 = vector.load %arg21[%c0_55, %c0_56, %c0_57] : memref<8x1x128xf32, #tpu.memory_space<vmem>>, vector<8x1x128xf32>
    tpu.vector_store %arg21[%c0_55, %c0_56, %c0_57], %50 {strides = array<i32>} : memref<8x1x128xf32, #tpu.memory_space<vmem>>, vector<8x1x128xf32>,
    %c0_58 = arith.constant 0 : index
    %c0_59 = arith.constant 0 : index
    %c0_60 = arith.constant 0 : index
    %52 = vector.load %arg2[%c0_58, %c0_59, %c0_60] : memref<8x1x3xf32, #tpu.memory_space<vmem>>, vector<8x1x3xf32>
    %53 = vector.shape_cast %52 : vector<8x1x3xf32> to vector<8x3xf32>
    %54 = arith.truncf %49 : vector<8x128xf32> to vector<8x128xbf16>
    %c0_61 = arith.constant 0 : index
    %c0_62 = arith.constant 0 : index
    %55 = vector.load %arg15[%c0_61, %c0_62] : memref<128x4xbf16, #tpu.memory_space<vmem>>, vector<128x4xbf16>
    %cst_63 = arith.constant dense<0.000000e+00> : vector<8x4xf32>
    %56 = tpu.matmul %54, %55, %cst_63 {dimension_numbers = #tpu.dot_dimension_numbers<[1], [0], [0], [1], [0, 0, 1, 1], [], []>} : vector<8x128xbf16>, vector<128x4xbf16>, vector<8x4xf32> -> vector<8x4xf32>
    %57 = arith.truncf %53 : vector<8x3xf32> to vector<8x3xbf16>
    %c0_64 = arith.constant 0 : index
    %c0_65 = arith.constant 0 : index
    %58 = vector.load %arg16[%c0_64, %c0_65] : memref<3x4xbf16, #tpu.memory_space<vmem>>, vector<3x4xbf16>
    %cst_66 = arith.constant dense<0.000000e+00> : vector<8x4xf32>
    %59 = tpu.matmul %57, %58, %cst_66 {dimension_numbers = #tpu.dot_dimension_numbers<[1], [0], [0], [1], [0, 0, 1, 1], [], []>} : vector<8x3xbf16>, vector<3x4xbf16>, vector<8x4xf32> -> vector<8x4xf32>
    %60 = arith.addf %56, %59 : vector<8x4xf32>
    %c0_67 = arith.constant 0 : index
    %c0_68 = arith.constant 0 : index
    %61 = vector.load %arg17[%c0_67, %c0_68] : memref<1x4xf32, #tpu.memory_space<vmem>>, vector<1x4xf32>
    %62 = vector.broadcast %61 : vector<1x4xf32> to vector<8x4xf32>
    %63 = arith.addf %60, %62 : vector<8x4xf32>
    %cst_69 = arith.constant dense<0xFF800000> : vector<8xf32>
    %64 = vector.multi_reduction <maximumf>, %63, %cst_69 [1] : vector<8x4xf32> to vector<8xf32>
    %65 = vector.shape_cast %64 : vector<8xf32> to vector<8x1xf32>
    %66 = vector.broadcast %65 : vector<8x1xf32> to vector<8x4xf32>
    %67 = arith.subf %63, %66 : vector<8x4xf32>
    %68 = math.exp %67 : vector<8x4xf32>
    %cst_70 = arith.constant dense<0.000000e+00> : vector<8xf32>
    %69 = vector.multi_reduction <add>, %68, %cst_70 [1] : vector<8x4xf32> to vector<8xf32>
    %70 = vector.shape_cast %69 : vector<8xf32> to vector<8x1xf32>
    %71 = tpu.reciprocal %70 {approx = true} : vector<8x1xf32> -> vector<8x1xf32>
    %72 = vector.broadcast %71 : vector<8x1xf32> to vector<8x4xf32>
    %73 = arith.mulf %68, %72 : vector<8x4xf32>
    %74 = vector.shape_cast %73 : vector<8x4xf32> to vector<8x1x4xf32>
    %c0_71 = arith.constant 0 : index
    %c0_72 = arith.constant 0 : index
    %c0_73 = arith.constant 0 : index
    %75 = vector.load %arg18[%c0_71, %c0_72, %c0_73] : memref<8x1x4xf32, #tpu.memory_space<vmem>>, vector<8x1x4xf32>
    tpu.vector_store %arg18[%c0_71, %c0_72, %c0_73], %74 {strides = array<i32>} : memref<8x1x4xf32, #tpu.memory_space<vmem>>, vector<8x1x4xf32>,
    return
  }
  func.func @transform_0(%arg0: i32) -> (i32, i32, i32) {
    %c0_i32 = arith.constant 0 : i32
    %c0_i32_0 = arith.constant 0 : i32
    %c0_i32_1 = arith.constant 0 : i32
    return %arg0, %c0_i32, %c0_i32_0 : i32, i32, i32
  }
  func.func @transform_1(%arg0: i32) -> (i32, i32, i32) {
    %c0_i32 = arith.constant 0 : i32
    %c0_i32_0 = arith.constant 0 : i32
    %c0_i32_1 = arith.constant 0 : i32
    return %arg0, %c0_i32, %c0_i32_0 : i32, i32, i32
  }
  func.func @transform_2(%arg0: i32) -> (i32, i32) {
    %c0_i32 = arith.constant 0 : i32
    %c0_i32_0 = arith.constant 0 : i32
    %c0_i32_1 = arith.constant 0 : i32
    return %c0_i32, %c0_i32_0 : i32, i32
  }
  func.func @transform_3(%arg0: i32) -> (i32, i32) {
    %c0_i32 = arith.constant 0 : i32
    %c0_i32_0 = arith.constant 0 : i32
    %c0_i32_1 = arith.constant 0 : i32
    return %c0_i32, %c0_i32_0 : i32, i32
  }
  func.func @transform_4(%arg0: i32) -> (i32, i32) {
    %c0_i32 = arith.constant 0 : i32
    %c0_i32_0 = arith.constant 0 : i32
    %c0_i32_1 = arith.constant 0 : i32
    return %c0_i32, %c0_i32_0 : i32, i32
  }
  func.func @transform_5(%arg0: i32) -> (i32, i32) {
    %c0_i32 = arith.constant 0 : i32
    %c0_i32_0 = arith.constant 0 : i32
    %c0_i32_1 = arith.constant 0 : i32
    return %c0_i32, %c0_i32_0 : i32, i32
  }
  func.func @transform_6(%arg0: i32) -> (i32, i32) {
    %c0_i32 = arith.constant 0 : i32
    %c0_i32_0 = arith.constant 0 : i32
    %c0_i32_1 = arith.constant 0 : i32
    return %c0_i32, %c0_i32_0 : i32, i32
  }
  func.func @transform_7(%arg0: i32) -> (i32, i32) {
    %c0_i32 = arith.constant 0 : i32
    %c0_i32_0 = arith.constant 0 : i32
    %c0_i32_1 = arith.constant 0 : i32
    return %c0_i32, %c0_i32_0 : i32, i32
  }
  func.func @transform_8(%arg0: i32) -> (i32, i32) {
    %c0_i32 = arith.constant 0 : i32
    %c0_i32_0 = arith.constant 0 : i32
    %c0_i32_1 = arith.constant 0 : i32
    return %c0_i32, %c0_i32_0 : i32, i32
  }
  func.func @transform_9(%arg0: i32) -> (i32, i32) {
    %c0_i32 = arith.constant 0 : i32
    %c0_i32_0 = arith.constant 0 : i32
    %c0_i32_1 = arith.constant 0 : i32
    return %c0_i32, %c0_i32_0 : i32, i32
  }
  func.func @transform_10(%arg0: i32) -> (i32, i32) {
    %c0_i32 = arith.constant 0 : i32
    %c0_i32_0 = arith.constant 0 : i32
    %c0_i32_1 = arith.constant 0 : i32
    return %c0_i32, %c0_i32_0 : i32, i32
  }
  func.func @transform_11(%arg0: i32) -> (i32, i32) {
    %c0_i32 = arith.constant 0 : i32
    %c0_i32_0 = arith.constant 0 : i32
    %c0_i32_1 = arith.constant 0 : i32
    return %c0_i32, %c0_i32_0 : i32, i32
  }
  func.func @transform_12(%arg0: i32) -> (i32, i32) {
    %c0_i32 = arith.constant 0 : i32
    %c0_i32_0 = arith.constant 0 : i32
    %c0_i32_1 = arith.constant 0 : i32
    return %c0_i32, %c0_i32_0 : i32, i32
  }
  func.func @transform_13(%arg0: i32) -> (i32, i32) {
    %c0_i32 = arith.constant 0 : i32
    %c0_i32_0 = arith.constant 0 : i32
    %c0_i32_1 = arith.constant 0 : i32
    return %c0_i32, %c0_i32_0 : i32, i32
  }
  func.func @transform_14(%arg0: i32) -> (i32, i32) {
    %c0_i32 = arith.constant 0 : i32
    %c0_i32_0 = arith.constant 0 : i32
    %c0_i32_1 = arith.constant 0 : i32
    return %c0_i32, %c0_i32_0 : i32, i32
  }
  func.func @transform_15(%arg0: i32) -> (i32, i32) {
    %c0_i32 = arith.constant 0 : i32
    %c0_i32_0 = arith.constant 0 : i32
    %c0_i32_1 = arith.constant 0 : i32
    return %c0_i32, %c0_i32_0 : i32, i32
  }
  func.func @transform_16(%arg0: i32) -> (i32, i32) {
    %c0_i32 = arith.constant 0 : i32
    %c0_i32_0 = arith.constant 0 : i32
    %c0_i32_1 = arith.constant 0 : i32
    return %c0_i32, %c0_i32_0 : i32, i32
  }
  func.func @transform_17(%arg0: i32) -> (i32, i32, i32) {
    %c0_i32 = arith.constant 0 : i32
    %c0_i32_0 = arith.constant 0 : i32
    %c0_i32_1 = arith.constant 0 : i32
    return %arg0, %c0_i32, %c0_i32_0 : i32, i32, i32
  }
  func.func @transform_18(%arg0: i32) -> (i32, i32, i32) {
    %c0_i32 = arith.constant 0 : i32
    %c0_i32_0 = arith.constant 0 : i32
    %c0_i32_1 = arith.constant 0 : i32
    return %arg0, %c0_i32, %c0_i32_0 : i32, i32, i32
  }
  func.func @transform_19(%arg0: i32) -> (i32, i32, i32) {
    %c0_i32 = arith.constant 0 : i32
    %c0_i32_0 = arith.constant 0 : i32
    %c0_i32_1 = arith.constant 0 : i32
    return %arg0, %c0_i32, %c0_i32_0 : i32, i32, i32
  }
  func.func @transform_20(%arg0: i32) -> (i32, i32, i32) {
    %c0_i32 = arith.constant 0 : i32
    %c0_i32_0 = arith.constant 0 : i32
    %c0_i32_1 = arith.constant 0 : i32
    return %arg0, %c0_i32, %c0_i32_0 : i32, i32, i32
  }
}

</mosaic_0001>

<llo_original>
// kernel: tpu_custom_call.1
$region0: #{tpu_custom_call.1}
  #allocation0 [shape = 'u32[]', space=smem, size = 0x4, offset = 0x4, fixed_abs, tag = 'smem constant byte address 0x4 - core index']
  #allocation1 [shape = 'u32[144,128]{1,0:T(1,128)}', space=vmem, size = 0x12000, scoped, tag = 'internal scratch']
  #allocation2 [shape = 'f32[8,8,192]{2,1,0:T(8,128)}', space=vmem, size = 0x10000, scoped, tag = 'scratch operand']
  #allocation3 [shape = 'f32[8,8,192]{2,1,0:T(8,128)}', space=vmem, size = 0x10000, scoped, tag = 'scratch operand']
  #allocation4 [shape = 'f32[8,64]{1,0:T(8,128)}', space=vmem, size = 0x1000, scoped, tag = 'scratch operand']
  #allocation5 [shape = 'f32[8,64]{1,0:T(8,128)}', space=vmem, size = 0x1000, scoped, tag = 'scratch operand']
  #allocation6 [shape = 'f32[8,64]{1,0:T(8,128)}', space=vmem, size = 0x1000, scoped, tag = 'scratch operand']
  #allocation7 [shape = 'f32[8,64]{1,0:T(8,128)}', space=vmem, size = 0x1000, scoped, tag = 'scratch operand']
  #allocation8 [shape = 'f32[1,1]{1,0:T(1,128)S(1)}', space=vmem, size = 0x200, scoped, tag = 'scoped memory for tpu_custom_call.1']
  %s0 = inlined_call_operand.vmem [shape: bf16[16,8,128], index: 0, kind: input, shape index: {}]
  %s1 = inlined_call_operand.vmem [shape: f32[16,1,3], index: 1, kind: input, shape index: {}]
  %s2 = inlined_call_operand.vmem [shape: bf16[128,8], index: 2, kind: input, shape index: {}]
  %s3 = inlined_call_operand.<no memory space> [shape: f32[1,1], index: 3, kind: input, shape index: {}]
  %s4 = inlined_call_operand.vmem [shape: bf16[8,128], index: 4, kind: input, shape index: {}]
  %s5 = inlined_call_operand.vmem [shape: bf16[128,64], index: 5, kind: input, shape index: {}]
  %s6 = inlined_call_operand.vmem [shape: bf16[64,192], index: 6, kind: input, shape index: {}]
  %s7 = inlined_call_operand.vmem [shape: f32[1,192], index: 7, kind: input, shape index: {}]
  %s8 = inlined_call_operand.vmem [shape: bf16[64,192], index: 8, kind: input, shape index: {}]
  %s9 = inlined_call_operand.vmem [shape: f32[1,192], index: 9, kind: input, shape index: {}]
  %s10 = inlined_call_operand.vmem [shape: bf16[64,192], index: 10, kind: input, shape index: {}]
  %s11 = inlined_call_operand.vmem [shape: f32[1,192], index: 11, kind: input, shape index: {}]
  %s12 = inlined_call_operand.hbm [shape: bf16[64,192], index: 12, kind: input, shape index: {}]
  %s13 = inlined_call_operand.vmem [shape: f32[1,192], index: 13, kind: input, shape index: {}]
  %s14 = inlined_call_operand.vmem [shape: bf16[128,4], index: 14, kind: input, shape index: {}]
  %s15 = inlined_call_operand.vmem [shape: bf16[3,4], index: 15, kind: input, shape index: {}]
  %s16 = inlined_call_operand.vmem [shape: f32[1,4], index: 16, kind: input, shape index: {}]
  %s17 = inlined_call_operand.vmem [shape: f32[16,1,4], index: 17, kind: output, shape index: {0}]
  %s18 = inlined_call_operand.hbm [shape: f32[16,8,64], index: 18, kind: output, shape index: {1}]
  %s19 = inlined_call_operand.hbm [shape: f32[16,8,64], index: 19, kind: output, shape index: {2}]
  %s20 = inlined_call_operand.hbm [shape: f32[16,1,128], index: 20, kind: output, shape index: {3}]
  %21 = xla_tuple %s17, %s18, %s19, %s20
  %s22 = sld [smem:[#allocation0]]
  $region136: #{tpu_custom_call.1} parent=0
    _
  %s24 = ssub.s32 1, %s22
  %s25 = scalar_select 0, %s24, %s22
  %v26 = vstv %s3
  %27 = vst [vmem:[#allocation8] sm:$0x1] %v26
  $region1: #{tpu_custom_call.1} parent=0
    #allocation9 [shape = 'u8[32768]{0}', space=vmem, size = 0x8000, scoped, tag = 'input window, operand 12, single buffered']
    #allocation10 [shape = 's32[2]{0}', space=sflag, size = 0x8, scoped, tag = 'scoped memory for tpu_custom_call.1']
    #allocation11 [shape = 's32[2]{0}', space=sflag, size = 0x8, scoped, tag = 'scoped memory for tpu_custom_call.1']
    #allocation12 [shape = 'u8[65536]{0}', space=vmem, size = 0x10000, scoped, tag = 'output window, operand 1']
    #allocation13 [shape = 'u8[65536]{0}', space=vmem, size = 0x10000, scoped, tag = 'output window, operand 2']
    #allocation14 [shape = 's32[2]{0}', space=sflag, size = 0x8, scoped, tag = 'scoped memory for tpu_custom_call.1']
    #allocation15 [shape = 'u8[8192]{0}', space=vmem, size = 0x2000, scoped, tag = 'output window, operand 3']
    %28 = vsyncpa [#allocation10], 0
    %29 = vsyncpa [#allocation11], 0
    %s30 = scalar_lea.sflag [#allocation11], 1
    %31 = vsyncpa %s30, 0
    %32 = vsyncpa [#allocation14], 0
    %s33 = scalar_lea.sflag [#allocation14], 1
    %34 = vsyncpa %s33, 0
    loop: start=0, step=1, limit=4
    $region2: #{tpu_custom_call.1} parent=1 // loop_pre_header
      _
    $region3: #{tpu_custom_call.1} parent=1 // loop_header
      %s36 = sphi 0, %s40
      %p37 = scmp.ge.s32.totalorder %s36, 4
      %s46 = sphi 0, %s48
      %s49 = sphi 0, %s46
      %s50 = sphi 0, %s49
      %s66 = sphi 0, %s50
      %s72 = sphi 0, %s74
      %s75 = sphi 0, %s72
      %s76 = sphi 0, %s75
      %s92 = sphi 0, %s76
      %s96 = sphi 0, %s96
      %s98 = sphi 0, %s96
      %s99 = sphi 0, %s98
      %s113 = sphi 0, %s99
      %s117 = sphi 0, %s117
      %s119 = sphi 0, %s117
      %s120 = sphi 0, %s119
      %s134 = sphi 0, %s120
      %s138 = sphi 0, %s138
      %s140 = sphi 0, %s138
      %s141 = sphi 0, %s140
      %s155 = sphi 0, %s141
      %s159 = sphi 0, %s159
      %s161 = sphi 0, %s159
      %s162 = sphi 0, %s161
      %s176 = sphi 0, %s162
      %s180 = sphi 0, %s180
      %s182 = sphi 0, %s180
      %s183 = sphi 0, %s182
      %s197 = sphi 0, %s183
      %s201 = sphi 0, %s201
      %s203 = sphi 0, %s201
      %s204 = sphi 0, %s203
      %s218 = sphi 0, %s204
      %s222 = sphi 0, %s222
      %s224 = sphi 0, %s222
      %s225 = sphi 0, %s224
      %s239 = sphi 0, %s225
      %s243 = sphi 0, %s243
      %s245 = sphi 0, %s243
      %s246 = sphi 0, %s245
      %s260 = sphi 0, %s246
      %s264 = sphi 0, %s264
      %s266 = sphi 0, %s264
      %s267 = sphi 0, %s266
      %s281 = sphi 0, %s267
      %s285 = sphi 0, %s285
      %s287 = sphi 0, %s285
      %s288 = sphi 0, %s287
      %s302 = sphi 0, %s288
      %s306 = sphi 0, %s306
      %s308 = sphi 0, %s306
      %s309 = sphi 0, %s308
      %s323 = sphi 0, %s309
      %s327 = sphi 0, %s327
      %s329 = sphi 0, %s327
      %s330 = sphi 0, %s329
      %s344 = sphi 0, %s330
      %s348 = sphi 0, %s348
      %s350 = sphi 0, %s348
      %s351 = sphi 0, %s350
      %s365 = sphi 0, %s351
      %s369 = sphi 0, %s369
      %s371 = sphi 0, %s369
      %s372 = sphi 0, %s371
      %s386 = sphi 0, %s372
      %s390 = sphi 0, %s390
      %s392 = sphi 0, %s390
      %s393 = sphi 0, %s392
      %s407 = sphi 0, %s393
      %s413 = sphi 0, %s415
      %s416 = sphi 0, %s413
      %s417 = sphi 0, %s416
      %s433 = sphi 0, %s417
      %s439 = sphi 0, %s441
      %s442 = sphi 0, %s439
      %s443 = sphi 0, %s442
      %s459 = sphi 0, %s443
      %s465 = sphi 0, %s467
      %s468 = sphi 0, %s465
      %s469 = sphi 0, %s468
      %s485 = sphi 0, %s469
      %s491 = sphi 0, %s493
      %s494 = sphi 0, %s491
      %s495 = sphi 0, %s494
      %s511 = sphi 0, %s495
    $region4: #{tpu_custom_call.1} parent=1 // loop_header_branch
      %39 = sbr.rel (%p37) target = $region8
    $region5: #{tpu_custom_call.1} parent=1 // loop_body
      %s41 = ssub.s32 %s36, 1
      %s42 = ssub.s32 %s36, 2
      %s43 = sadd.s32 %s36, 1
      %s44 = ssub.s32 %s36, %s43
      %p45 = scmp.eq.s32.totalorder %s44, 0
      %s47 = sadd.s32 %s46, 1
      %s48 = scalar_select %p45, %s46, %s47
      %p51 = pneg %p45
      %p52 = scmp.eq.s32.totalorder %s36, 1
      %p53 = por %p51, %p52
      %p54 = scmp.ne.s32.totalorder %s46, %s49
      %p55 = scmp.eq.s32.totalorder %s36, 0
      %p56 = por %p54, %p55
      %p57 = scmp.ne.s32.totalorder %s46, %s49
      %p58 = scmp.eq.s32.totalorder %s41, 1
      %p59 = por %p57, %p58
      %p60 = scmp.ne.s32.totalorder %s49, %s50
      %p61 = scmp.eq.s32.totalorder %s41, 0
      %p62 = por %p60, %p61
      %p63 = scmp.ne.s32.totalorder %s49, %s50
      %p64 = scmp.eq.s32.totalorder %s42, 1
      %p65 = por %p63, %p64
      %p67 = scmp.ne.s32.totalorder %s50, %s66
      %p68 = scmp.eq.s32.totalorder %s42, 0
      %p69 = por %p67, %p68
      %s70 = ssub.s32 %s36, %s43
      %p71 = scmp.eq.s32.totalorder %s70, 0
      %s73 = sadd.s32 %s72, 1
      %s74 = scalar_select %p71, %s72, %s73
      %p77 = pneg %p71
      %p78 = scmp.eq.s32.totalorder %s36, 1
      %p79 = por %p77, %p78
      %p80 = scmp.ne.s32.totalorder %s72, %s75
      %p81 = scmp.eq.s32.totalorder %s36, 0
      %p82 = por %p80, %p81
      %p83 = scmp.ne.s32.totalorder %s72, %s75
      %p84 = scmp.eq.s32.totalorder %s41, 1
      %p85 = por %p83, %p84
      %p86 = scmp.ne.s32.totalorder %s75, %s76
      %p87 = scmp.eq.s32.totalorder %s41, 0
      %p88 = por %p86, %p87
      %p89 = scmp.ne.s32.totalorder %s75, %s76
      %p90 = scmp.eq.s32.totalorder %s42, 1
      %p91 = por %p89, %p90
      %p93 = scmp.ne.s32.totalorder %s76, %s92
      %p94 = scmp.eq.s32.totalorder %s42, 0
      %p95 = por %p93, %p94
      %s97 = sadd.s32 %s96, 1
      %p100 = scmp.eq.s32.totalorder %s36, 1
      %p101 = scmp.ne.s32.totalorder %s96, %s98
      %p102 = scmp.eq.s32.totalorder %s36, 0
      %p103 = por %p101, %p102
      %p104 = scmp.ne.s32.totalorder %s96, %s98
      %p105 = scmp.eq.s32.totalorder %s41, 1
      %p106 = por %p104, %p105
      %p107 = scmp.ne.s32.totalorder %s98, %s99
      %p108 = scmp.eq.s32.totalorder %s41, 0
      %p109 = por %p107, %p108
      %p110 = scmp.ne.s32.totalorder %s98, %s99
      %p111 = scmp.eq.s32.totalorder %s42, 1
      %p112 = por %p110, %p111
      %p114 = scmp.ne.s32.totalorder %s99, %s113
      %p115 = scmp.eq.s32.totalorder %s42, 0
      %p116 = por %p114, %p115
      %s118 = sadd.s32 %s117, 1
      %p121 = scmp.eq.s32.totalorder %s36, 1
      %p122 = scmp.ne.s32.totalorder %s117, %s119
      %p123 = scmp.eq.s32.totalorder %s36, 0
      %p124 = por %p122, %p123
      %p125 = scmp.ne.s32.totalorder %s117, %s119
      %p126 = scmp.eq.s32.totalorder %s41, 1
      %p127 = por %p125, %p126
      %p128 = scmp.ne.s32.totalorder %s119, %s120
      %p129 = scmp.eq.s32.totalorder %s41, 0
      %p130 = por %p128, %p129
      %p131 = scmp.ne.s32.totalorder %s119, %s120
      %p132 = scmp.eq.s32.totalorder %s42, 1
      %p133 = por %p131, %p132
      %p135 = scmp.ne.s32.totalorder %s120, %s134
      %p136 = scmp.eq.s32.totalorder %s42, 0
      %p137 = por %p135, %p136
      %s139 = sadd.s32 %s138, 1
      %p142 = scmp.eq.s32.totalorder %s36, 1
      %p143 = scmp.ne.s32.totalorder %s138, %s140
      %p144 = scmp.eq.s32.totalorder %s36, 0
      %p145 = por %p143, %p144
      %p146 = scmp.ne.s32.totalorder %s138, %s140
      %p147 = scmp.eq.s32.totalorder %s41, 1
      %p148 = por %p146, %p147
      %p149 = scmp.ne.s32.totalorder %s140, %s141
      %p150 = scmp.eq.s32.totalorder %s41, 0
      %p151 = por %p149, %p150
      %p152 = scmp.ne.s32.totalorder %s140, %s141
      %p153 = scmp.eq.s32.totalorder %s42, 1
      %p154 = por %p152, %p153
      %p156 = scmp.ne.s32.totalorder %s141, %s155
      %p157 = scmp.eq.s32.totalorder %s42, 0
      %p158 = por %p156, %p157
      %s160 = sadd.s32 %s159, 1
      %p163 = scmp.eq.s32.totalorder %s36, 1
      %p164 = scmp.ne.s32.totalorder %s159, %s161
      %p165 = scmp.eq.s32.totalorder %s36, 0
      %p166 = por %p164, %p165
      %p167 = scmp.ne.s32.totalorder %s159, %s161
      %p168 = scmp.eq.s32.totalorder %s41, 1
      %p169 = por %p167, %p168
      %p170 = scmp.ne.s32.totalorder %s161, %s162
      %p171 = scmp.eq.s32.totalorder %s41, 0
      %p172 = por %p170, %p171
      %p173 = scmp.ne.s32.totalorder %s161, %s162
      %p174 = scmp.eq.s32.totalorder %s42, 1
      %p175 = por %p173, %p174
      %p177 = scmp.ne.s32.totalorder %s162, %s176
      %p178 = scmp.eq.s32.totalorder %s42, 0
      %p179 = por %p177, %p178
      %s181 = sadd.s32 %s180, 1
      %p184 = scmp.eq.s32.totalorder %s36, 1
      %p185 = scmp.ne.s32.totalorder %s180, %s182
      %p186 = scmp.eq.s32.totalorder %s36, 0
      %p187 = por %p185, %p186
      %p188 = scmp.ne.s32.totalorder %s180, %s182
      %p189 = scmp.eq.s32.totalorder %s41, 1
      %p190 = por %p188, %p189
      %p191 = scmp.ne.s32.totalorder %s182, %s183
      %p192 = scmp.eq.s32.totalorder %s41, 0
      %p193 = por %p191, %p192
      %p194 = scmp.ne.s32.totalorder %s182, %s183
      %p195 = scmp.eq.s32.totalorder %s42, 1
      %p196 = por %p194, %p195
      %p198 = scmp.ne.s32.totalorder %s183, %s197
      %p199 = scmp.eq.s32.totalorder %s42, 0
      %p200 = por %p198, %p199
      %s202 = sadd.s32 %s201, 1
      %p205 = scmp.eq.s32.totalorder %s36, 1
      %p206 = scmp.ne.s32.totalorder %s201, %s203
      %p207 = scmp.eq.s32.totalorder %s36, 0
      %p208 = por %p206, %p207
      %p209 = scmp.ne.s32.totalorder %s201, %s203
      %p210 = scmp.eq.s32.totalorder %s41, 1
      %p211 = por %p209, %p210
      %p212 = scmp.ne.s32.totalorder %s203, %s204
      %p213 = scmp.eq.s32.totalorder %s41, 0
      %p214 = por %p212, %p213
      %p215 = scmp.ne.s32.totalorder %s203, %s204
      %p216 = scmp.eq.s32.totalorder %s42, 1
      %p217 = por %p215, %p216
      %p219 = scmp.ne.s32.totalorder %s204, %s218
      %p220 = scmp.eq.s32.totalorder %s42, 0
      %p221 = por %p219, %p220
      %s223 = sadd.s32 %s222, 1
      %p226 = scmp.eq.s32.totalorder %s36, 1
      %p227 = scmp.ne.s32.totalorder %s222, %s224
      %p228 = scmp.eq.s32.totalorder %s36, 0
      %p229 = por %p227, %p228
      %p230 = scmp.ne.s32.totalorder %s222, %s224
      %p231 = scmp.eq.s32.totalorder %s41, 1
      %p232 = por %p230, %p231
      %p233 = scmp.ne.s32.totalorder %s224, %s225
      %p234 = scmp.eq.s32.totalorder %s41, 0
      %p235 = por %p233, %p234
      %p236 = scmp.ne.s32.totalorder %s224, %s225
      %p237 = scmp.eq.s32.totalorder %s42, 1
      %p238 = por %p236, %p237
      %p240 = scmp.ne.s32.totalorder %s225, %s239
      %p241 = scmp.eq.s32.totalorder %s42, 0
      %p242 = por %p240, %p241
      %s244 = sadd.s32 %s243, 1
      %p247 = scmp.eq.s32.totalorder %s36, 1
      %p248 = scmp.ne.s32.totalorder %s243, %s245
      %p249 = scmp.eq.s32.totalorder %s36, 0
      %p250 = por %p248, %p249
      %p251 = scmp.ne.s32.totalorder %s243, %s245
      %p252 = scmp.eq.s32.totalorder %s41, 1
      %p253 = por %p251, %p252
      %p254 = scmp.ne.s32.totalorder %s245, %s246
      %p255 = scmp.eq.s32.totalorder %s41, 0
      %p256 = por %p254, %p255
      %p257 = scmp.ne.s32.totalorder %s245, %s246
      %p258 = scmp.eq.s32.totalorder %s42, 1
      %p259 = por %p257, %p258
      %p261 = scmp.ne.s32.totalorder %s246, %s260
      %p262 = scmp.eq.s32.totalorder %s42, 0
      %p263 = por %p261, %p262
      %s265 = sadd.s32 %s264, 1
      %p268 = scmp.eq.s32.totalorder %s36, 1
      %p269 = scmp.ne.s32.totalorder %s264, %s266
      %p270 = scmp.eq.s32.totalorder %s36, 0
      %p271 = por %p269, %p270
      %p272 = scmp.ne.s32.totalorder %s264, %s266
      %p273 = scmp.eq.s32.totalorder %s41, 1
      %p274 = por %p272, %p273
      %p275 = scmp.ne.s32.totalorder %s266, %s267
      %p276 = scmp.eq.s32.totalorder %s41, 0
      %p277 = por %p275, %p276
      %p278 = scmp.ne.s32.totalorder %s266, %s267
      %p279 = scmp.eq.s32.totalorder %s42, 1
      %p280 = por %p278, %p279
      %p282 = scmp.ne.s32.totalorder %s267, %s281
      %p283 = scmp.eq.s32.totalorder %s42, 0
      %p284 = por %p282, %p283
      %s286 = sadd.s32 %s285, 1
      %p289 = scmp.eq.s32.totalorder %s36, 1
      %p290 = scmp.ne.s32.totalorder %s285, %s287
      %p291 = scmp.eq.s32.totalorder %s36, 0
      %p292 = por %p290, %p291
      %p293 = scmp.ne.s32.totalorder %s285, %s287
      %p294 = scmp.eq.s32.totalorder %s41, 1
      %p295 = por %p293, %p294
      %p296 = scmp.ne.s32.totalorder %s287, %s288
      %p297 = scmp.eq.s32.totalorder %s41, 0
      %p298 = por %p296, %p297
      %p299 = scmp.ne.s32.totalorder %s287, %s288
      %p300 = scmp.eq.s32.totalorder %s42, 1
      %p301 = por %p299, %p300
      %p303 = scmp.ne.s32.totalorder %s288, %s302
      %p304 = scmp.eq.s32.totalorder %s42, 0
      %p305 = por %p303, %p304
      %s307 = sadd.s32 %s306, 1
      %p310 = scmp.eq.s32.totalorder %s36, 1
      %p311 = scmp.ne.s32.totalorder %s306, %s308
      %p312 = scmp.eq.s32.totalorder %s36, 0
      %p313 = por %p311, %p312
      %p314 = scmp.ne.s32.totalorder %s306, %s308
      %p315 = scmp.eq.s32.totalorder %s41, 1
      %p316 = por %p314, %p315
      %p317 = scmp.ne.s32.totalorder %s308, %s309
      %p318 = scmp.eq.s32.totalorder %s41, 0
      %p319 = por %p317, %p318
      %p320 = scmp.ne.s32.totalorder %s308, %s309
      %p321 = scmp.eq.s32.totalorder %s42, 1
      %p322 = por %p320, %p321
      %p324 = scmp.ne.s32.totalorder %s309, %s323
      %p325 = scmp.eq.s32.totalorder %s42, 0
      %p326 = por %p324, %p325
      %s328 = sadd.s32 %s327, 1
      %p331 = scmp.eq.s32.totalorder %s36, 1
      %p332 = scmp.ne.s32.totalorder %s327, %s329
      %p333 = scmp.eq.s32.totalorder %s36, 0
      %p334 = por %p332, %p333
      %p335 = scmp.ne.s32.totalorder %s327, %s329
      %p336 = scmp.eq.s32.totalorder %s41, 1
      %p337 = por %p335, %p336
      %p338 = scmp.ne.s32.totalorder %s329, %s330
      %p339 = scmp.eq.s32.totalorder %s41, 0
      %p340 = por %p338, %p339
      %p341 = scmp.ne.s32.totalorder %s329, %s330
      %p342 = scmp.eq.s32.totalorder %s42, 1
      %p343 = por %p341, %p342
      %p345 = scmp.ne.s32.totalorder %s330, %s344
      %p346 = scmp.eq.s32.totalorder %s42, 0
      %p347 = por %p345, %p346
      %s349 = sadd.s32 %s348, 1
      %p352 = scmp.eq.s32.totalorder %s36, 1
      %p353 = scmp.ne.s32.totalorder %s348, %s350
      %p354 = scmp.eq.s32.totalorder %s36, 0
      %p355 = por %p353, %p354
      %p356 = scmp.ne.s32.totalorder %s348, %s350
      %p357 = scmp.eq.s32.totalorder %s41, 1
      %p358 = por %p356, %p357
      %p359 = scmp.ne.s32.totalorder %s350, %s351
      %p360 = scmp.eq.s32.totalorder %s41, 0
      %p361 = por %p359, %p360
      %p362 = scmp.ne.s32.totalorder %s350, %s351
      %p363 = scmp.eq.s32.totalorder %s42, 1
      %p364 = por %p362, %p363
      %p366 = scmp.ne.s32.totalorder %s351, %s365
      %p367 = scmp.eq.s32.totalorder %s42, 0
      %p368 = por %p366, %p367
      %s370 = sadd.s32 %s369, 1
      %p373 = scmp.eq.s32.totalorder %s36, 1
      %p374 = scmp.ne.s32.totalorder %s369, %s371
      %p375 = scmp.eq.s32.totalorder %s36, 0
      %p376 = por %p374, %p375
      %p377 = scmp.ne.s32.totalorder %s369, %s371
      %p378 = scmp.eq.s32.totalorder %s41, 1
      %p379 = por %p377, %p378
      %p380 = scmp.ne.s32.totalorder %s371, %s372
      %p381 = scmp.eq.s32.totalorder %s41, 0
      %p382 = por %p380, %p381
      %p383 = scmp.ne.s32.totalorder %s371, %s372
      %p384 = scmp.eq.s32.totalorder %s42, 1
      %p385 = por %p383, %p384
      %p387 = scmp.ne.s32.totalorder %s372, %s386
      %p388 = scmp.eq.s32.totalorder %s42, 0
      %p389 = por %p387, %p388
      %s391 = sadd.s32 %s390, 1
      %p394 = scmp.eq.s32.totalorder %s36, 1
      %p395 = scmp.ne.s32.totalorder %s390, %s392
      %p396 = scmp.eq.s32.totalorder %s36, 0
      %p397 = por %p395, %p396
      %p398 = scmp.ne.s32.totalorder %s390, %s392
      %p399 = scmp.eq.s32.totalorder %s41, 1
      %p400 = por %p398, %p399
      %p401 = scmp.ne.s32.totalorder %s392, %s393
      %p402 = scmp.eq.s32.totalorder %s41, 0
      %p403 = por %p401, %p402
      %p404 = scmp.ne.s32.totalorder %s392, %s393
      %p405 = scmp.eq.s32.totalorder %s42, 1
      %p406 = por %p404, %p405
      %p408 = scmp.ne.s32.totalorder %s393, %s407
      %p409 = scmp.eq.s32.totalorder %s42, 0
      %p410 = por %p408, %p409
      %s411 = ssub.s32 %s36, %s43
      %p412 = scmp.eq.s32.totalorder %s411, 0
      %s414 = sadd.s32 %s413, 1
      %s415 = scalar_select %p412, %s413, %s414
      %p418 = pneg %p412
      %p419 = scmp.eq.s32.totalorder %s36, 1
      %p420 = por %p418, %p419
      %p421 = scmp.ne.s32.totalorder %s413, %s416
      %p422 = scmp.eq.s32.totalorder %s36, 0
      %p423 = por %p421, %p422
      %p424 = scmp.ne.s32.totalorder %s413, %s416
      %p425 = scmp.eq.s32.totalorder %s41, 1
      %p426 = por %p424, %p425
      %p427 = scmp.ne.s32.totalorder %s416, %s417
      %p428 = scmp.eq.s32.totalorder %s41, 0
      %p429 = por %p427, %p428
      %p430 = scmp.ne.s32.totalorder %s416, %s417
      %p431 = scmp.eq.s32.totalorder %s42, 1
      %p432 = por %p430, %p431
      %p434 = scmp.ne.s32.totalorder %s417, %s433
      %p435 = scmp.eq.s32.totalorder %s42, 0
      %p436 = por %p434, %p435
      %s437 = ssub.s32 %s36, %s43
      %p438 = scmp.eq.s32.totalorder %s437, 0
      %s440 = sadd.s32 %s439, 1
      %s441 = scalar_select %p438, %s439, %s440
      %p444 = pneg %p438
      %p445 = scmp.eq.s32.totalorder %s36, 1
      %p446 = por %p444, %p445
      %p447 = scmp.ne.s32.totalorder %s439, %s442
      %p448 = scmp.eq.s32.totalorder %s36, 0
      %p449 = por %p447, %p448
      %p450 = scmp.ne.s32.totalorder %s439, %s442
      %p451 = scmp.eq.s32.totalorder %s41, 1
      %p452 = por %p450, %p451
      %p453 = scmp.ne.s32.totalorder %s442, %s443
      %p454 = scmp.eq.s32.totalorder %s41, 0
      %p455 = por %p453, %p454
      %p456 = scmp.ne.s32.totalorder %s442, %s443
      %p457 = scmp.eq.s32.totalorder %s42, 1
      %p458 = por %p456, %p457
      %p460 = scmp.ne.s32.totalorder %s443, %s459
      %p461 = scmp.eq.s32.totalorder %s42, 0
      %p462 = por %p460, %p461
      %s463 = ssub.s32 %s36, %s43
      %p464 = scmp.eq.s32.totalorder %s463, 0
      %s466 = sadd.s32 %s465, 1
      %s467 = scalar_select %p464, %s465, %s466
      %p470 = pneg %p464
      %p471 = scmp.eq.s32.totalorder %s36, 1
      %p472 = por %p470, %p471
      %p473 = scmp.ne.s32.totalorder %s465, %s468
      %p474 = scmp.eq.s32.totalorder %s36, 0
      %p475 = por %p473, %p474
      %p476 = scmp.ne.s32.totalorder %s465, %s468
      %p477 = scmp.eq.s32.totalorder %s41, 1
      %p478 = por %p476, %p477
      %p479 = scmp.ne.s32.totalorder %s468, %s469
      %p480 = scmp.eq.s32.totalorder %s41, 0
      %p481 = por %p479, %p480
      %p482 = scmp.ne.s32.totalorder %s468, %s469
      %p483 = scmp.eq.s32.totalorder %s42, 1
      %p484 = por %p482, %p483
      %p486 = scmp.ne.s32.totalorder %s469, %s485
      %p487 = scmp.eq.s32.totalorder %s42, 0
      %p488 = por %p486, %p487
      %s489 = ssub.s32 %s36, %s43
      %p490 = scmp.eq.s32.totalorder %s489, 0
      %s492 = sadd.s32 %s491, 1
      %s493 = scalar_select %p490, %s491, %s492
      %p496 = pneg %p490
      %p497 = scmp.eq.s32.totalorder %s36, 1
      %p498 = por %p496, %p497
      %p499 = scmp.ne.s32.totalorder %s491, %s494
      %p500 = scmp.eq.s32.totalorder %s36, 0
      %p501 = por %p499, %p500
      %p502 = scmp.ne.s32.totalorder %s491, %s494
      %p503 = scmp.eq.s32.totalorder %s41, 1
      %p504 = por %p502, %p503
      %p505 = scmp.ne.s32.totalorder %s494, %s495
      %p506 = scmp.eq.s32.totalorder %s41, 0
      %p507 = por %p505, %p506
      %p508 = scmp.ne.s32.totalorder %s494, %s495
      %p509 = scmp.eq.s32.totalorder %s42, 1
      %p510 = por %p508, %p509
      %p512 = scmp.ne.s32.totalorder %s495, %s511
      %p513 = scmp.eq.s32.totalorder %s42, 0
      %p514 = por %p512, %p513
      %p515 = scmp.le.s32.totalorder 1, %s36
      %p516 = scmp.lt.s32.totalorder %s36, 3
      %p517 = pnand %p515, %p516
      %p518 = pneg %p517
      // Predicated region
      $region9: #{tpu_custom_call.1} parent=5 // pred_check
        _
      $region10: #{tpu_custom_call.1} parent=5 // pred_check_branch
        %520 = sbr.rel (%p517) target = $region12
      $region11: #{tpu_custom_call.1} parent=5 // pred_region
        %s521 = ssub.s32 %s36, 1
        // Predicated region
        $region13: #{tpu_custom_call.1} parent=11 // pred_check
          %p522 = pneg %p109
        $region14: #{tpu_custom_call.1} parent=11 // pred_check_branch
          %524 = sbr.rel (%p522) target = $region16
        $region15: #{tpu_custom_call.1} parent=11 // pred_region
          _
        $region16: #{tpu_custom_call.1} parent=11 // pred_fallthru
          _
        // Predicated region
        $region17: #{tpu_custom_call.1} parent=11 // pred_check
          %p525 = pneg %p130
        $region18: #{tpu_custom_call.1} parent=11 // pred_check_branch
          %527 = sbr.rel (%p525) target = $region20
        $region19: #{tpu_custom_call.1} parent=11 // pred_region
          _
        $region20: #{tpu_custom_call.1} parent=11 // pred_fallthru
          _
        // Predicated region
        $region21: #{tpu_custom_call.1} parent=11 // pred_check
          %p528 = pneg %p151
        $region22: #{tpu_custom_call.1} parent=11 // pred_check_branch
          %530 = sbr.rel (%p528) target = $region24
        $region23: #{tpu_custom_call.1} parent=11 // pred_region
          _
        $region24: #{tpu_custom_call.1} parent=11 // pred_fallthru
          _
        // Predicated region
        $region25: #{tpu_custom_call.1} parent=11 // pred_check
          %p531 = pneg %p172
        $region26: #{tpu_custom_call.1} parent=11 // pred_check_branch
          %533 = sbr.rel (%p531) target = $region28
        $region27: #{tpu_custom_call.1} parent=11 // pred_region
          _
        $region28: #{tpu_custom_call.1} parent=11 // pred_fallthru
          _
        // Predicated region
        $region29: #{tpu_custom_call.1} parent=11 // pred_check
          %p534 = pneg %p193
        $region30: #{tpu_custom_call.1} parent=11 // pred_check_branch
          %536 = sbr.rel (%p534) target = $region32
        $region31: #{tpu_custom_call.1} parent=11 // pred_region
          _
        $region32: #{tpu_custom_call.1} parent=11 // pred_fallthru
          _
        // Predicated region
        $region33: #{tpu_custom_call.1} parent=11 // pred_check
          %p537 = pneg %p214
        $region34: #{tpu_custom_call.1} parent=11 // pred_check_branch
          %539 = sbr.rel (%p537) target = $region36
        $region35: #{tpu_custom_call.1} parent=11 // pred_region
          _
        $region36: #{tpu_custom_call.1} parent=11 // pred_fallthru
          _
        // Predicated region
        $region37: #{tpu_custom_call.1} parent=11 // pred_check
          %p540 = pneg %p235
        $region38: #{tpu_custom_call.1} parent=11 // pred_check_branch
          %542 = sbr.rel (%p540) target = $region40
        $region39: #{tpu_custom_call.1} parent=11 // pred_region
          _
        $region40: #{tpu_custom_call.1} parent=11 // pred_fallthru
          _
        // Predicated region
        $region41: #{tpu_custom_call.1} parent=11 // pred_check
          %p543 = pneg %p256
        $region42: #{tpu_custom_call.1} parent=11 // pred_check_branch
          %545 = sbr.rel (%p543) target = $region44
        $region43: #{tpu_custom_call.1} parent=11 // pred_region
          _
        $region44: #{tpu_custom_call.1} parent=11 // pred_fallthru
          _
        // Predicated region
        $region45: #{tpu_custom_call.1} parent=11 // pred_check
          %p546 = pneg %p277
        $region46: #{tpu_custom_call.1} parent=11 // pred_check_branch
          %548 = sbr.rel (%p546) target = $region48
        $region47: #{tpu_custom_call.1} parent=11 // pred_region
          _
        $region48: #{tpu_custom_call.1} parent=11 // pred_fallthru
          _
        // Predicated region
        $region49: #{tpu_custom_call.1} parent=11 // pred_check
          %p549 = pneg %p298
        $region50: #{tpu_custom_call.1} parent=11 // pred_check_branch
          %551 = sbr.rel (%p549) target = $region52
        $region51: #{tpu_custom_call.1} parent=11 // pred_region
          _
        $region52: #{tpu_custom_call.1} parent=11 // pred_fallthru
          _
        // Predicated region
        $region53: #{tpu_custom_call.1} parent=11 // pred_check
          %p552 = pneg %p319
        $region54: #{tpu_custom_call.1} parent=11 // pred_check_branch
          %554 = sbr.rel (%p552) target = $region56
        $region55: #{tpu_custom_call.1} parent=11 // pred_region
          %s556 = ssub.s32 1024, 1024
          %557 = vsyncadd [#allocation10], %s556
          %s558 = sshll.u32 [#allocation9], 4
          %s559 = int_to_ptr.vmem [resolvable:$true] %s558
          %564 = dma.hbm_to_vmem [thread:$0]  %s12, 1024, %s559, [#allocation10], 128, 128, 8
        $region56: #{tpu_custom_call.1} parent=11 // pred_fallthru
          _
        // Predicated region
        $region57: #{tpu_custom_call.1} parent=11 // pred_check
          %p565 = pneg %p340
        $region58: #{tpu_custom_call.1} parent=11 // pred_check_branch
          %567 = sbr.rel (%p565) target = $region60
        $region59: #{tpu_custom_call.1} parent=11 // pred_region
          _
        $region60: #{tpu_custom_call.1} parent=11 // pred_fallthru
          _
        // Predicated region
        $region61: #{tpu_custom_call.1} parent=11 // pred_check
          %p568 = pneg %p361
        $region62: #{tpu_custom_call.1} parent=11 // pred_check_branch
          %570 = sbr.rel (%p568) target = $region64
        $region63: #{tpu_custom_call.1} parent=11 // pred_region
          _
        $region64: #{tpu_custom_call.1} parent=11 // pred_fallthru
          _
        // Predicated region
        $region65: #{tpu_custom_call.1} parent=11 // pred_check
          %p571 = pneg %p382
        $region66: #{tpu_custom_call.1} parent=11 // pred_check_branch
          %573 = sbr.rel (%p571) target = $region68
        $region67: #{tpu_custom_call.1} parent=11 // pred_region
          _
        $region68: #{tpu_custom_call.1} parent=11 // pred_fallthru
          _
        // Predicated region
        $region69: #{tpu_custom_call.1} parent=11 // pred_check
          %p574 = pneg %p403
        $region70: #{tpu_custom_call.1} parent=11 // pred_check_branch
          %576 = sbr.rel (%p574) target = $region72
        $region71: #{tpu_custom_call.1} parent=11 // pred_region
          _
        $region72: #{tpu_custom_call.1} parent=11 // pred_fallthru
          _
      $region12: #{tpu_custom_call.1} parent=5 // pred_fallthru
        _
      %p577 = scmp.lt.s32.totalorder %s36, 2
      // Predicated region
      $region73: #{tpu_custom_call.1} parent=5 // pred_check
        %p578 = pneg %p577
      $region74: #{tpu_custom_call.1} parent=5 // pred_check_branch
        %580 = sbr.rel (%p578) target = $region76
      $region75: #{tpu_custom_call.1} parent=5 // pred_region
        // Predicated region
        $region77: #{tpu_custom_call.1} parent=75 // pred_check
          %p581 = pneg %p56
        $region78: #{tpu_custom_call.1} parent=75 // pred_check_branch
          %583 = sbr.rel (%p581) target = $region80
        $region79: #{tpu_custom_call.1} parent=75 // pred_region
          %s584 = smul.u32 8, %s36
          %p585 = scmp.lt.s32.totalorder %s584, 15
          %s586 = scalar_select %p585, %s584, 15
          %s587 = smul.addr %s586, 4
          %s588 = scalar_lea.vmem %s0, %s587
          %s589 = smul.u32 8, %s36
        $region80: #{tpu_custom_call.1} parent=75 // pred_fallthru
          _
        // Predicated region
        $region81: #{tpu_custom_call.1} parent=75 // pred_check
          %p590 = pneg %p82
        $region82: #{tpu_custom_call.1} parent=75 // pred_check_branch
          %592 = sbr.rel (%p590) target = $region84
        $region83: #{tpu_custom_call.1} parent=75 // pred_region
          %s593 = smul.u32 8, %s36
          %p594 = scmp.lt.s32.totalorder %s593, 15
          %s595 = scalar_select %p594, %s593, 15
          %s596 = scalar_lea.vmem %s1, %s595
          %s597 = smul.u32 8, %s36
        $region84: #{tpu_custom_call.1} parent=75 // pred_fallthru
          _
      $region76: #{tpu_custom_call.1} parent=5 // pred_fallthru
        _
      %p598 = scmp.le.s32.totalorder 1, %s36
      %p599 = scmp.lt.s32.totalorder %s36, 3
      %p600 = pnand %p598, %p599
      %p601 = pneg %p600
      // Predicated region
      $region85: #{tpu_custom_call.1} parent=5 // pred_check
        _
      $region86: #{tpu_custom_call.1} parent=5 // pred_check_branch
        %603 = sbr.rel (%p600) target = $region88
      $region87: #{tpu_custom_call.1} parent=5 // pred_region
        %s604 = ssub.s32 %s36, 1
        // Predicated region
        $region89: #{tpu_custom_call.1} parent=87 // pred_check
          %p605 = pneg %p319
        $region90: #{tpu_custom_call.1} parent=87 // pred_check_branch
          %607 = sbr.rel (%p605) target = $region92
        $region91: #{tpu_custom_call.1} parent=87 // pred_region
          %608 = dma.done [#allocation10], 1024
        $region92: #{tpu_custom_call.1} parent=87 // pred_fallthru
          _
        %s609 = smul.u32 8, %s41
        %p610 = scmp.lt.s32.totalorder %s609, 15
        %s611 = scalar_select %p610, %s609, 15
        %s612 = smul.addr %s611, 4
        %s613 = scalar_lea.vmem %s0, %s612
        %p614 = pneg %p62
        %p615 = pneg %p59
        %s616 = smul.u32 8, %s41
        %p617 = scmp.lt.s32.totalorder %s616, 15
        %s618 = scalar_select %p617, %s616, 15
        %s619 = scalar_lea.vmem %s1, %s618
        %p620 = pneg %p88
        %p621 = pneg %p85
        %p622 = pneg %p109
        %p623 = pneg %p106
        %p624 = pneg %p130
        %p625 = pneg %p127
        %p626 = pneg %p151
        %p627 = pneg %p148
        %p628 = pneg %p172
        %p629 = pneg %p169
        %p630 = pneg %p193
        %p631 = pneg %p190
        %p632 = pneg %p214
        %p633 = pneg %p211
        %p634 = pneg %p235
        %p635 = pneg %p232
        %p636 = pneg %p256
        %p637 = pneg %p253
        %p638 = pneg %p277
        %p639 = pneg %p274
        %p640 = pneg %p298
        %p641 = pneg %p295
        %p642 = pneg %p319
        %p643 = pneg %p316
        %p644 = pneg %p340
        %p645 = pneg %p337
        %p646 = pneg %p361
        %p647 = pneg %p358
        %p648 = pneg %p382
        %p649 = pneg %p379
        %p650 = pneg %p403
        %p651 = pneg %p400
        %p652 = pneg %p429
        %p653 = pneg %p426
        %s654 = smul.u32 8, %s41
        %p655 = scmp.lt.s32.totalorder %s654, 15
        %s656 = scalar_select %p655, %s654, 15
        %s657 = scalar_lea.vmem %s17, %s656
        %p658 = pneg %p455
        %p659 = pneg %p452
        %s660 = sand.u32 %s442, 1
        %s661 = scalar_lea.sflag [#allocation11], %s660
        %s662 = sand.u32 %s442, 1
        %s663 = smul.addr %s662, 64
        %s664 = scalar_lea.vmem [#allocation12], %s663
        %p665 = pneg %p481
        %p666 = pneg %p478
        %s667 = sand.u32 %s41, 1
        %s668 = scalar_lea.sflag [#allocation14], %s667
        %s669 = sand.u32 %s468, 1
        %s670 = smul.addr %s669, 64
        %s671 = scalar_lea.vmem [#allocation13], %s670
        %p672 = pneg %p507
        %p673 = pneg %p504
        %s674 = sand.u32 %s41, 1
        %s675 = scalar_lea.sflag [#allocation14], %s674
        %s676 = sand.u32 %s494, 1
        %s677 = smul.addr %s676, 8
        %s678 = scalar_lea.vmem [#allocation15], %s677
        %s679 = smul.u32 8, %s41
        %p680 = scmp.lt.s32.totalorder %s679, 15
        %s681 = scalar_select %p680, %s679, 15
        %s682 = smul.addr %s681, 4
        %s683 = scalar_lea.vmem %s0, %s682
        %s684 = smul.u32 8, %s41
        %s685 = smul.u32 8, %s41
        %p686 = scmp.lt.s32.totalorder %s685, 15
        %s687 = scalar_select %p686, %s685, 15
        %s688 = scalar_lea.vmem %s1, %s687
        %s689 = smul.u32 8, %s41
        %s690 = smul.u32 8, %s41
        %p691 = scmp.lt.s32.totalorder %s690, 15
        %s692 = scalar_select %p691, %s690, 15
        %s693 = scalar_lea.vmem %s17, %s692
        %s694 = smul.u32 8, %s41
        %s695 = smul.u32 8, %s41
        %s696 = smul.u32 8, %s41
        %s697 = smul.u32 8, %s41
        %v699 = vld [vmem:[%s683] sm:$0xf]
        %v700 = vld [vmem:[%s683 + $0x4] sm:$0xf]
        %v701 = vld [vmem:[%s683 + $0x8] sm:$0xf]
        %v702 = vld [vmem:[%s683 + $0xc] sm:$0xf]
        %v703 = vld [vmem:[%s683 + $0x10] sm:$0xf]
        %v704 = vld [vmem:[%s683 + $0x14] sm:$0xf]
        %v705 = vld [vmem:[%s683 + $0x18] sm:$0xf]
        %v706 = vld [vmem:[%s683 + $0x1c] sm:$0xf]
        %v707 = vld [vmem:[%s2] sm:$0xf]
        %v708 = vld [vmem:[%s2 + $0x4] sm:$0xf]
        %v709 = vld [vmem:[%s2 + $0x8] sm:$0xf]
        %v710 = vld [vmem:[%s2 + $0xc] sm:$0xf]
        %v711 = vld [vmem:[%s2 + $0x10] sm:$0xf]
        %v712 = vld [vmem:[%s2 + $0x14] sm:$0xf]
        %v713 = vld [vmem:[%s2 + $0x18] sm:$0xf]
        %v714 = vld [vmem:[%s2 + $0x1c] sm:$0xf]
        %v715 = vld [vmem:[%s2 + $0x20] sm:$0xf]
        %v716 = vld [vmem:[%s2 + $0x24] sm:$0xf]
        %v717 = vld [vmem:[%s2 + $0x28] sm:$0xf]
        %v718 = vld [vmem:[%s2 + $0x2c] sm:$0xf]
        %v719 = vld [vmem:[%s2 + $0x30] sm:$0xf]
        %v720 = vld [vmem:[%s2 + $0x34] sm:$0xf]
        %v721 = vld [vmem:[%s2 + $0x38] sm:$0xf]
        %v722 = vld [vmem:[%s2 + $0x3c] sm:$0xf]
        %v723 = vld [vmem:[#allocation8] sm:$0x1]
        %v725 = vlaneseq
        %v726 = vshrl.u32 %v725, 7
        %v727 = vsub.s32 0, %v726
        %v728 = vrot.slane %v723, %v727
        %729 = vset.pattern.permute.xlu0 0
        %730 = vperm.xlu0 %729, %v728
        %v731 = vpop.permute.xlu0 %730
        %v741 = vunpack.c.l.b16 %v699
        %v742 = vunpack.c.l.b16 %v700
        %v743 = vunpack.c.l.b16 %v701
        %v744 = vunpack.c.l.b16 %v702
        %v745 = vunpack.c.l.b16 %v703
        %v746 = vunpack.c.l.b16 %v704
        %v747 = vunpack.c.l.b16 %v705
        %v748 = vunpack.c.l.b16 %v706
        %v749 = vpack.c.b16 %v742, %v741
        %v750 = vpack.c.b16 %v744, %v743
        %v751 = vpack.c.b16 %v746, %v745
        %v752 = vpack.c.b16 %v748, %v747
        %v773 = vunpack.c.l.b16 %v707
        %v774 = vunpack.c.l.b16 %v708
        %v775 = vunpack.c.l.b16 %v709
        %v776 = vunpack.c.l.b16 %v710
        %v777 = vunpack.c.l.b16 %v711
        %v778 = vunpack.c.l.b16 %v712
        %v779 = vunpack.c.l.b16 %v713
        %v780 = vunpack.c.l.b16 %v714
        %v781 = vunpack.c.l.b16 %v715
        %v782 = vunpack.c.l.b16 %v716
        %v783 = vunpack.c.l.b16 %v717
        %v784 = vunpack.c.l.b16 %v718
        %v785 = vunpack.c.l.b16 %v719
        %v786 = vunpack.c.l.b16 %v720
        %v787 = vunpack.c.l.b16 %v721
        %v788 = vunpack.c.l.b16 %v722
        %v789 = vpack.c.b16 %v774, %v773
        %v790 = vpack.c.b16 %v776, %v775
        %v791 = vpack.c.b16 %v778, %v777
        %v792 = vpack.c.b16 %v780, %v779
        %v793 = vpack.c.b16 %v782, %v781
        %v794 = vpack.c.b16 %v784, %v783
        %v795 = vpack.c.b16 %v786, %v785
        %v796 = vpack.c.b16 %v788, %v787
        %805 = vmatprep.subr.bf16.mxu0 0
        %806 = vmatpush1.bf16.msra.mxu0 %v789
        %807 = vmatprep.subr.bf16.mxu0 0
        %808 = vmatpush1.bf16.msra.mxu0 %v790
        %809 = vmatprep.subr.bf16.mxu0 0
        %810 = vmatpush1.bf16.msra.mxu0 %v791
        %811 = vmatprep.subr.bf16.mxu0 0
        %812 = vmatpush1.bf16.msra.mxu0 %v792
        %813 = vmatprep.subr.bf16.mxu0 0
        %814 = vmatpush1.bf16.msra.mxu0 %v793
        %815 = vmatprep.subr.bf16.mxu0 0
        %816 = vmatpush1.bf16.msra.mxu0 %v794
        %817 = vmatprep.subr.bf16.mxu0 0
        %818 = vmatpush1.bf16.msra.mxu0 %v795
        %819 = vmatprep.subr.bf16.mxu0 0
        %820 = vmatpush1.bf16.msra.mxu0 %v796
        %821 = vmatprep.subr.bf16.mxu0 0
        %822 = vmatpush1.bf16.msra.mxu0 0
        %823 = vmatprep.subr.bf16.mxu0 0
        %824 = vmatpush1.bf16.msra.mxu0 0
        %825 = vmatprep.subr.bf16.mxu0 0
        %826 = vmatpush1.bf16.msra.mxu0 0
        %827 = vmatprep.subr.bf16.mxu0 0
        %828 = vmatpush1.bf16.msra.mxu0 0
        %829 = vmatprep.subr.bf16.mxu0 0
        %830 = vmatpush1.bf16.msra.mxu0 0
        %831 = vmatprep.subr.bf16.mxu0 0
        %832 = vmatpush1.bf16.msra.mxu0 0
        %833 = vmatprep.subr.bf16.mxu0 0
        %834 = vmatpush1.bf16.msra.mxu0 0
        %835 = vmatprep.subr.bf16.mxu0 0
        %836 = vmatpush1.bf16.msra.mxu0 0
        %837 = vmatprep.mubr.bf16.mxu0 0
        %838 = vmatmul.mubr.bf16.gmra.mrb[0].mxu0 %v749
        %v839 = vpop.f32.mrb[0].mxu0
        %v840 = vadd.f32 %v731, %v839
        %v841 = vpop.f32.mrb[0].mxu0
        %v842 = vpop.f32.mrb[0].mxu0
        %v843 = vadd.f32 %v731, %v842
        %v844 = vpop.f32.mrb[0].mxu0
        %845 = vmatprep.mubr.bf16.mxu0 0
        %846 = vmatmul.mubr.bf16.gmra.mrb[0].mxu0 %v750
        %v847 = vpop.f32.mrb[0].mxu0
        %v848 = vadd.f32 %v731, %v847
        %v849 = vpop.f32.mrb[0].mxu0
        %v850 = vpop.f32.mrb[0].mxu0
        %v851 = vadd.f32 %v731, %v850
        %v852 = vpop.f32.mrb[0].mxu0
        %853 = vmatprep.mubr.bf16.mxu0 0
        %854 = vmatmul.mubr.bf16.gmra.mrb[0].mxu0 %v751
        %v855 = vpop.f32.mrb[0].mxu0
        %v856 = vadd.f32 %v731, %v855
        %v857 = vpop.f32.mrb[0].mxu0
        %v858 = vpop.f32.mrb[0].mxu0
        %v859 = vadd.f32 %v731, %v858
        %v860 = vpop.f32.mrb[0].mxu0
        %861 = vmatprep.mubr.bf16.mxu0 0
        %862 = vmatmul.mubr.bf16.gmra.mrb[0].mxu0 %v752
        %v863 = vpop.f32.mrb[0].mxu0
        %v864 = vadd.f32 %v731, %v863
        %v865 = vpop.f32.mrb[0].mxu0
        %v866 = vpop.f32.mrb[0].mxu0
        %v867 = vadd.f32 %v731, %v866
        %v868 = vpop.f32.mrb[0].mxu0
        %869 = vdwg.mxu0
        %v870 = vpack.c.bf16 %v843, %v840
        %v871 = vpack.c.bf16 %v851, %v848
        %v872 = vpack.c.bf16 %v859, %v856
        %v873 = vpack.c.bf16 %v867, %v864
        %v874 = vld [vmem:[%s4] sm:$0xf]
        %vm875 = vcmask 64512
        %v877 = vsel %vm875, %v870, 0
        %v880 = vsel %vm875, %v871, 0
        %v883 = vsel %vm875, %v872, 0
        %v886 = vsel %vm875, %v873, 0
        %vm888 = vcmask 1043456
        %v890 = vsel %vm888, %v874, 0
        %892 = vmatprep.subr.bf16.mxu0 0
        %893 = vmatpush1.bf16.msra.mxu0 %v890
        %894 = vmatprep.subr.bf16.mxu0 0
        %895 = vmatpush1.bf16.msra.mxu0 0
        %896 = vmatprep.subr.bf16.mxu0 0
        %897 = vmatpush1.bf16.msra.mxu0 0
        %898 = vmatprep.subr.bf16.mxu0 0
        %899 = vmatpush1.bf16.msra.mxu0 0
        %900 = vmatprep.subr.bf16.mxu0 0
        %901 = vmatpush1.bf16.msra.mxu0 0
        %902 = vmatprep.subr.bf16.mxu0 0
        %903 = vmatpush1.bf16.msra.mxu0 0
        %904 = vmatprep.subr.bf16.mxu0 0
        %905 = vmatpush1.bf16.msra.mxu0 0
        %906 = vmatprep.subr.bf16.mxu0 0
        %907 = vmatpush1.bf16.msra.mxu0 0
        %908 = vmatprep.subr.bf16.mxu0 0
        %909 = vmatpush1.bf16.msra.mxu0 0
        %910 = vmatprep.subr.bf16.mxu0 0
        %911 = vmatpush1.bf16.msra.mxu0 0
        %912 = vmatprep.subr.bf16.mxu0 0
        %913 = vmatpush1.bf16.msra.mxu0 0
        %914 = vmatprep.subr.bf16.mxu0 0
        %915 = vmatpush1.bf16.msra.mxu0 0
        %916 = vmatprep.subr.bf16.mxu0 0
        %917 = vmatpush1.bf16.msra.mxu0 0
        %918 = vmatprep.subr.bf16.mxu0 0
        %919 = vmatpush1.bf16.msra.mxu0 0
        %920 = vmatprep.subr.bf16.mxu0 0
        %921 = vmatpush1.bf16.msra.mxu0 0
        %922 = vmatprep.subr.bf16.mxu0 0
        %923 = vmatpush1.bf16.msra.mxu0 0
        %924 = vmatprep.mubr.bf16.mxu0 0
        %925 = vmatmul.mubr.bf16.gmra.mrb[0].mxu0 %v877
        %v926 = vpop.f32.mrb[0].mxu0
        %v927 = vadd.f32 0.0, %v926
        %v928 = vpop.f32.mrb[0].mxu0
        %v929 = vpop.f32.mrb[0].mxu0
        %v930 = vadd.f32 0.0, %v929
        %v931 = vpop.f32.mrb[0].mxu0
        %932 = vmatprep.mubr.bf16.mxu0 0
        %933 = vmatmul.mubr.bf16.gmra.mrb[0].mxu0 %v880
        %v934 = vpop.f32.mrb[0].mxu0
        %v935 = vadd.f32 0.0, %v934
        %v936 = vpop.f32.mrb[0].mxu0
        %v937 = vpop.f32.mrb[0].mxu0
        %v938 = vadd.f32 0.0, %v937
        %v939 = vpop.f32.mrb[0].mxu0
        %940 = vmatprep.mubr.bf16.mxu0 0
        %941 = vmatmul.mubr.bf16.gmra.mrb[0].mxu0 %v883
        %v942 = vpop.f32.mrb[0].mxu0
        %v943 = vadd.f32 0.0, %v942
        %v944 = vpop.f32.mrb[0].mxu0
        %v945 = vpop.f32.mrb[0].mxu0
        %v946 = vadd.f32 0.0, %v945
        %v947 = vpop.f32.mrb[0].mxu0
        %948 = vmatprep.mubr.bf16.mxu0 0
        %949 = vmatmul.mubr.bf16.gmra.mrb[0].mxu0 %v886
        %v950 = vpop.f32.mrb[0].mxu0
        %v951 = vadd.f32 0.0, %v950
        %v952 = vpop.f32.mrb[0].mxu0
        %v953 = vpop.f32.mrb[0].mxu0
        %v954 = vadd.f32 0.0, %v953
        %v955 = vpop.f32.mrb[0].mxu0
        %956 = vdwg.mxu0
        %v957 = vunpack.c.l.bf16 %v699
        %v958 = vunpack.c.l.bf16 %v700
        %v959 = vunpack.c.l.bf16 %v701
        %v960 = vunpack.c.l.bf16 %v702
        %v961 = vunpack.c.l.bf16 %v703
        %v962 = vunpack.c.l.bf16 %v704
        %v963 = vunpack.c.l.bf16 %v705
        %v964 = vunpack.c.l.bf16 %v706
        %v965 = vmul.f32 %v957, %v927
        %v966 = vmul.f32 %v958, %v930
        %v967 = vmul.f32 %v959, %v935
        %v968 = vmul.f32 %v960, %v938
        %v969 = vmul.f32 %v961, %v943
        %v970 = vmul.f32 %v962, %v946
        %v971 = vmul.f32 %v963, %v951
        %v972 = vmul.f32 %v964, %v954
        %v973 = vpack.c.bf16 %v966, %v965
        %v974 = vpack.c.bf16 %v968, %v967
        %v975 = vpack.c.bf16 %v970, %v969
        %v976 = vpack.c.bf16 %v972, %v971
        %v977 = vld [vmem:[%s5] sm:$0xf]
        %v978 = vld [vmem:[%s5 + $0x4] sm:$0xf]
        %v979 = vld [vmem:[%s5 + $0x8] sm:$0xf]
        %v980 = vld [vmem:[%s5 + $0xc] sm:$0xf]
        %v981 = vld [vmem:[%s5 + $0x10] sm:$0xf]
        %v982 = vld [vmem:[%s5 + $0x14] sm:$0xf]
        %v983 = vld [vmem:[%s5 + $0x18] sm:$0xf]
        %v984 = vld [vmem:[%s5 + $0x1c] sm:$0xf]
        %v985 = vld [vmem:[%s5 + $0x20] sm:$0xf]
        %v986 = vld [vmem:[%s5 + $0x24] sm:$0xf]
        %v987 = vld [vmem:[%s5 + $0x28] sm:$0xf]
        %v988 = vld [vmem:[%s5 + $0x2c] sm:$0xf]
        %v989 = vld [vmem:[%s5 + $0x30] sm:$0xf]
        %v990 = vld [vmem:[%s5 + $0x34] sm:$0xf]
        %v991 = vld [vmem:[%s5 + $0x38] sm:$0xf]
        %v992 = vld [vmem:[%s5 + $0x3c] sm:$0xf]
        %v1009 = vunpack.c.l.b16 %v977
        %v1010 = vunpack.c.l.b16 %v978
        %v1011 = vunpack.c.l.b16 %v979
        %v1012 = vunpack.c.l.b16 %v980
        %v1013 = vunpack.c.l.b16 %v981
        %v1014 = vunpack.c.l.b16 %v982
        %v1015 = vunpack.c.l.b16 %v983
        %v1016 = vunpack.c.l.b16 %v984
        %v1017 = vunpack.c.l.b16 %v985
        %v1018 = vunpack.c.l.b16 %v986
        %v1019 = vunpack.c.l.b16 %v987
        %v1020 = vunpack.c.l.b16 %v988
        %v1021 = vunpack.c.l.b16 %v989
        %v1022 = vunpack.c.l.b16 %v990
        %v1023 = vunpack.c.l.b16 %v991
        %v1024 = vunpack.c.l.b16 %v992
        %v1025 = vpack.c.b16 %v1010, %v1009
        %v1026 = vpack.c.b16 %v1012, %v1011
        %v1027 = vpack.c.b16 %v1014, %v1013
        %v1028 = vpack.c.b16 %v1016, %v1015
        %v1029 = vpack.c.b16 %v1018, %v1017
        %v1030 = vpack.c.b16 %v1020, %v1019
        %v1031 = vpack.c.b16 %v1022, %v1021
        %v1032 = vpack.c.b16 %v1024, %v1023
        %1041 = vmatprep.subr.bf16.mxu0 0
        %1042 = vmatpush1.bf16.msra.mxu0 %v1025
        %1043 = vmatprep.subr.bf16.mxu0 0
        %1044 = vmatpush1.bf16.msra.mxu0 %v1026
        %1045 = vmatprep.subr.bf16.mxu0 0
        %1046 = vmatpush1.bf16.msra.mxu0 %v1027
        %1047 = vmatprep.subr.bf16.mxu0 0
        %1048 = vmatpush1.bf16.msra.mxu0 %v1028
        %1049 = vmatprep.subr.bf16.mxu0 0
        %1050 = vmatpush1.bf16.msra.mxu0 %v1029
        %1051 = vmatprep.subr.bf16.mxu0 0
        %1052 = vmatpush1.bf16.msra.mxu0 %v1030
        %1053 = vmatprep.subr.bf16.mxu0 0
        %1054 = vmatpush1.bf16.msra.mxu0 %v1031
        %1055 = vmatprep.subr.bf16.mxu0 0
        %1056 = vmatpush1.bf16.msra.mxu0 %v1032
        %1057 = vmatprep.subr.bf16.mxu0 0
        %1058 = vmatpush1.bf16.msra.mxu0 0
        %1059 = vmatprep.subr.bf16.mxu0 0
        %1060 = vmatpush1.bf16.msra.mxu0 0
        %1061 = vmatprep.subr.bf16.mxu0 0
        %1062 = vmatpush1.bf16.msra.mxu0 0
        %1063 = vmatprep.subr.bf16.mxu0 0
        %1064 = vmatpush1.bf16.msra.mxu0 0
        %1065 = vmatprep.subr.bf16.mxu0 0
        %1066 = vmatpush1.bf16.msra.mxu0 0
        %1067 = vmatprep.subr.bf16.mxu0 0
        %1068 = vmatpush1.bf16.msra.mxu0 0
        %1069 = vmatprep.subr.bf16.mxu0 0
        %1070 = vmatpush1.bf16.msra.mxu0 0
        %1071 = vmatprep.subr.bf16.mxu0 0
        %1072 = vmatpush1.bf16.msra.mxu0 0
        %1073 = vmatprep.mubr.bf16.mxu0 0
        %1074 = vmatmul.mubr.bf16.gmra.mrb[0].mxu0 %v973
        %v1075 = vpop.f32.mrb[0].mxu0
        %v1076 = vadd.f32 0.0, %v1075
        %v1077 = vpop.f32.mrb[0].mxu0
        %v1078 = vpop.f32.mrb[0].mxu0
        %v1079 = vadd.f32 0.0, %v1078
        %v1080 = vpop.f32.mrb[0].mxu0
        %1081 = vmatprep.mubr.bf16.mxu0 0
        %1082 = vmatmul.mubr.bf16.gmra.mrb[0].mxu0 %v974
        %v1083 = vpop.f32.mrb[0].mxu0
        %v1084 = vadd.f32 0.0, %v1083
        %v1085 = vpop.f32.mrb[0].mxu0
        %v1086 = vpop.f32.mrb[0].mxu0
        %v1087 = vadd.f32 0.0, %v1086
        %v1088 = vpop.f32.mrb[0].mxu0
        %1089 = vmatprep.mubr.bf16.mxu0 0
        %1090 = vmatmul.mubr.bf16.gmra.mrb[0].mxu0 %v975
        %v1091 = vpop.f32.mrb[0].mxu0
        %v1092 = vadd.f32 0.0, %v1091
        %v1093 = vpop.f32.mrb[0].mxu0
        %v1094 = vpop.f32.mrb[0].mxu0
        %v1095 = vadd.f32 0.0, %v1094
        %v1096 = vpop.f32.mrb[0].mxu0
        %1097 = vmatprep.mubr.bf16.mxu0 0
        %1098 = vmatmul.mubr.bf16.gmra.mrb[0].mxu0 %v976
        %v1099 = vpop.f32.mrb[0].mxu0
        %v1100 = vadd.f32 0.0, %v1099
        %v1101 = vpop.f32.mrb[0].mxu0
        %v1102 = vpop.f32.mrb[0].mxu0
        %v1103 = vadd.f32 0.0, %v1102
        %v1104 = vpop.f32.mrb[0].mxu0
        %1105 = vdwg.mxu0
        %v1106 = vmax.f32 %v1076, -1.0
        %v1107 = vmax.f32 %v1079, -1.0
        %v1108 = vmax.f32 %v1084, -1.0
        %v1109 = vmax.f32 %v1087, -1.0
        %v1110 = vmax.f32 %v1092, -1.0
        %v1111 = vmax.f32 %v1095, -1.0
        %v1112 = vmax.f32 %v1100, -1.0
        %v1113 = vmax.f32 %v1103, -1.0
        %v1114 = vmin.f32 %v1106, 1.0
        %v1115 = vmin.f32 %v1107, 1.0
        %v1116 = vmin.f32 %v1108, 1.0
        %v1117 = vmin.f32 %v1109, 1.0
        %v1118 = vmin.f32 %v1110, 1.0
        %v1119 = vmin.f32 %v1111, 1.0
        %v1120 = vmin.f32 %v1112, 1.0
        %v1121 = vmin.f32 %v1113, 1.0
        %v1122 = vpack.c.bf16 %v1115, %v1114
        %v1123 = vpack.c.bf16 %v1117, %v1116
        %v1124 = vpack.c.bf16 %v1119, %v1118
        %v1125 = vpack.c.bf16 %v1121, %v1120
        %v1126 = vld [vmem:[%s6] sm:$0xff]
        %v1127 = vld [vmem:[%s6 + $0x8] sm:$0xff]
        %v1128 = vld [vmem:[%s6 + $0x10] sm:$0xff]
        %v1129 = vld [vmem:[%s6 + $0x18] sm:$0xff]
        %v1130 = vld [vmem:[%s6 + $0x20] sm:$0xff]
        %v1131 = vld [vmem:[%s6 + $0x28] sm:$0xff]
        %v1132 = vld [vmem:[%s6 + $0x30] sm:$0xff]
        %v1133 = vld [vmem:[%s6 + $0x38] sm:$0xff]
        %v1134 = vld [vmem:[%s7] sm:$0x3]
        %v1136 = vlaneseq
        %v1137 = vshrl.u32 %v1136, 7
        %v1138 = vsub.s32 0, %v1137
        %v1139 = vrot.slane %v1134, %v1138
        %v1140 = vlaneseq
        %v1141 = vshrl.u32 %v1140, 7
        %v1142 = vsub.s32 1, %v1141
        %v1143 = vrot.slane %v1134, %v1142
        %v1154 = vunpack.c.l.b16 %v1126
        %v1155 = vunpack.c.h.b16 %v1126
        %v1156 = vunpack.c.l.b16 %v1127
        %v1157 = vunpack.c.h.b16 %v1127
        %v1158 = vunpack.c.l.b16 %v1128
        %v1159 = vunpack.c.h.b16 %v1128
        %v1160 = vunpack.c.l.b16 %v1129
        %v1161 = vunpack.c.h.b16 %v1129
        %v1162 = vunpack.c.l.b16 %v1130
        %v1163 = vunpack.c.h.b16 %v1130
        %v1164 = vunpack.c.l.b16 %v1131
        %v1165 = vunpack.c.h.b16 %v1131
        %v1166 = vunpack.c.l.b16 %v1132
        %v1167 = vunpack.c.h.b16 %v1132
        %v1168 = vunpack.c.l.b16 %v1133
        %v1169 = vunpack.c.h.b16 %v1133
        %v1170 = vpack.c.b16 %v1156, %v1154
        %v1171 = vpack.c.b16 %v1157, %v1155
        %v1172 = vpack.c.b16 %v1160, %v1158
        %v1173 = vpack.c.b16 %v1161, %v1159
        %v1174 = vpack.c.b16 %v1164, %v1162
        %v1175 = vpack.c.b16 %v1165, %v1163
        %v1176 = vpack.c.b16 %v1168, %v1166
        %v1177 = vpack.c.b16 %v1169, %v1167
        %vm1186 = vcmask 523264
        %v1188 = vsel %vm1186, %v1122, 0
        %v1191 = vsel %vm1186, %v1123, 0
        %v1194 = vsel %vm1186, %v1124, 0
        %v1197 = vsel %vm1186, %v1125, 0
        %1199 = vmatprep.subr.bf16.mxu0 %v1171
        %1200 = vmatpush1.bf16.msra.mxu0 %v1170
        %1201 = vmatprep.subr.bf16.mxu0 %v1173
        %1202 = vmatpush1.bf16.msra.mxu0 %v1172
        %1203 = vmatprep.subr.bf16.mxu0 %v1175
        %1204 = vmatpush1.bf16.msra.mxu0 %v1174
        %1205 = vmatprep.subr.bf16.mxu0 %v1177
        %1206 = vmatpush1.bf16.msra.mxu0 %v1176
        %1207 = vmatprep.subr.bf16.mxu0 0
        %1208 = vmatpush1.bf16.msra.mxu0 0
        %1209 = vmatprep.subr.bf16.mxu0 0
        %1210 = vmatpush1.bf16.msra.mxu0 0
        %1211 = vmatprep.subr.bf16.mxu0 0
        %1212 = vmatpush1.bf16.msra.mxu0 0
        %1213 = vmatprep.subr.bf16.mxu0 0
        %1214 = vmatpush1.bf16.msra.mxu0 0
        %1215 = vmatprep.subr.bf16.mxu0 0
        %1216 = vmatpush1.bf16.msra.mxu0 0
        %1217 = vmatprep.subr.bf16.mxu0 0
        %1218 = vmatpush1.bf16.msra.mxu0 0
        %1219 = vmatprep.subr.bf16.mxu0 0
        %1220 = vmatpush1.bf16.msra.mxu0 0
        %1221 = vmatprep.subr.bf16.mxu0 0
        %1222 = vmatpush1.bf16.msra.mxu0 0
        %1223 = vmatprep.subr.bf16.mxu0 0
        %1224 = vmatpush1.bf16.msra.mxu0 0
        %1225 = vmatprep.subr.bf16.mxu0 0
        %1226 = vmatpush1.bf16.msra.mxu0 0
        %1227 = vmatprep.subr.bf16.mxu0 0
        %1228 = vmatpush1.bf16.msra.mxu0 0
        %1229 = vmatprep.subr.bf16.mxu0 0
        %1230 = vmatpush1.bf16.msra.mxu0 0
        %1231 = vmatprep.mubr.bf16.mxu0 0
        %1232 = vmatmul.mubr.bf16.gmra.mrb[0].mxu0 %v1188
        %v1233 = vpop.f32.mrb[0].mxu0
        %v1234 = vadd.f32 %v1139, %v1233
        %v1235 = vpop.f32.mrb[0].mxu0
        %v1236 = vadd.f32 %v1143, %v1235
        %v1237 = vpop.f32.mrb[0].mxu0
        %v1238 = vadd.f32 %v1139, %v1237
        %v1239 = vpop.f32.mrb[0].mxu0
        %v1240 = vadd.f32 %v1143, %v1239
        %1241 = vmatprep.mubr.bf16.mxu0 0
        %1242 = vmatmul.mubr.bf16.gmra.mrb[0].mxu0 %v1191
        %v1243 = vpop.f32.mrb[0].mxu0
        %v1244 = vadd.f32 %v1139, %v1243
        %v1245 = vpop.f32.mrb[0].mxu0
        %v1246 = vadd.f32 %v1143, %v1245
        %v1247 = vpop.f32.mrb[0].mxu0
        %v1248 = vadd.f32 %v1139, %v1247
        %v1249 = vpop.f32.mrb[0].mxu0
        %v1250 = vadd.f32 %v1143, %v1249
        %1251 = vmatprep.mubr.bf16.mxu0 0
        %1252 = vmatmul.mubr.bf16.gmra.mrb[0].mxu0 %v1194
        %v1253 = vpop.f32.mrb[0].mxu0
        %v1254 = vadd.f32 %v1139, %v1253
        %v1255 = vpop.f32.mrb[0].mxu0
        %v1256 = vadd.f32 %v1143, %v1255
        %v1257 = vpop.f32.mrb[0].mxu0
        %v1258 = vadd.f32 %v1139, %v1257
        %v1259 = vpop.f32.mrb[0].mxu0
        %v1260 = vadd.f32 %v1143, %v1259
        %1261 = vmatprep.mubr.bf16.mxu0 0
        %1262 = vmatmul.mubr.bf16.gmra.mrb[0].mxu0 %v1197
        %v1263 = vpop.f32.mrb[0].mxu0
        %v1264 = vadd.f32 %v1139, %v1263
        %v1265 = vpop.f32.mrb[0].mxu0
        %v1266 = vadd.f32 %v1143, %v1265
        %v1267 = vpop.f32.mrb[0].mxu0
        %v1268 = vadd.f32 %v1139, %v1267
        %v1269 = vpop.f32.mrb[0].mxu0
        %v1270 = vadd.f32 %v1143, %v1269
        %1271 = vdwg.mxu0
        %1272 = vst [vmem:[#allocation2] sm:$0xff] %v1234
        %1273 = vst.msk [vmem:[#allocation2 + $0x8] sm:$0xff] %vm1186, %v1236
        %1274 = vst [vmem:[#allocation2 + $0x10] sm:$0xff] %v1238
        %1275 = vst.msk [vmem:[#allocation2 + $0x18] sm:$0xff] %vm1186, %v1240
        %1276 = vst [vmem:[#allocation2 + $0x20] sm:$0xff] %v1244
        %1277 = vst.msk [vmem:[#allocation2 + $0x28] sm:$0xff] %vm1186, %v1246
        %1278 = vst [vmem:[#allocation2 + $0x30] sm:$0xff] %v1248
        %1279 = vst.msk [vmem:[#allocation2 + $0x38] sm:$0xff] %vm1186, %v1250
        %1280 = vst [vmem:[#allocation2 + $0x40] sm:$0xff] %v1254
        %1281 = vst.msk [vmem:[#allocation2 + $0x48] sm:$0xff] %vm1186, %v1256
        %1282 = vst [vmem:[#allocation2 + $0x50] sm:$0xff] %v1258
        %1283 = vst.msk [vmem:[#allocation2 + $0x58] sm:$0xff] %vm1186, %v1260
        %1284 = vst [vmem:[#allocation2 + $0x60] sm:$0xff] %v1264
        %1285 = vst.msk [vmem:[#allocation2 + $0x68] sm:$0xff] %vm1186, %v1266
        %1286 = vst [vmem:[#allocation2 + $0x70] sm:$0xff] %v1268
        %1287 = vst.msk [vmem:[#allocation2 + $0x78] sm:$0xff] %vm1186, %v1270
        %v1288 = vld [vmem:[%s8] sm:$0xff]
        %v1289 = vld [vmem:[%s8 + $0x8] sm:$0xff]
        %v1290 = vld [vmem:[%s8 + $0x10] sm:$0xff]
        %v1291 = vld [vmem:[%s8 + $0x18] sm:$0xff]
        %v1292 = vld [vmem:[%s8 + $0x20] sm:$0xff]
        %v1293 = vld [vmem:[%s8 + $0x28] sm:$0xff]
        %v1294 = vld [vmem:[%s8 + $0x30] sm:$0xff]
        %v1295 = vld [vmem:[%s8 + $0x38] sm:$0xff]
        %v1296 = vld [vmem:[%s9] sm:$0x3]
        %v1298 = vlaneseq
        %v1299 = vshrl.u32 %v1298, 7
        %v1300 = vsub.s32 0, %v1299
        %v1301 = vrot.slane %v1296, %v1300
        %v1302 = vlaneseq
        %v1303 = vshrl.u32 %v1302, 7
        %v1304 = vsub.s32 1, %v1303
        %v1305 = vrot.slane %v1296, %v1304
        %v1316 = vunpack.c.l.b16 %v1288
        %v1317 = vunpack.c.h.b16 %v1288
        %v1318 = vunpack.c.l.b16 %v1289
        %v1319 = vunpack.c.h.b16 %v1289
        %v1320 = vunpack.c.l.b16 %v1290
        %v1321 = vunpack.c.h.b16 %v1290
        %v1322 = vunpack.c.l.b16 %v1291
        %v1323 = vunpack.c.h.b16 %v1291
        %v1324 = vunpack.c.l.b16 %v1292
        %v1325 = vunpack.c.h.b16 %v1292
        %v1326 = vunpack.c.l.b16 %v1293
        %v1327 = vunpack.c.h.b16 %v1293
        %v1328 = vunpack.c.l.b16 %v1294
        %v1329 = vunpack.c.h.b16 %v1294
        %v1330 = vunpack.c.l.b16 %v1295
        %v1331 = vunpack.c.h.b16 %v1295
        %v1332 = vpack.c.b16 %v1318, %v1316
        %v1333 = vpack.c.b16 %v1319, %v1317
        %v1334 = vpack.c.b16 %v1322, %v1320
        %v1335 = vpack.c.b16 %v1323, %v1321
        %v1336 = vpack.c.b16 %v1326, %v1324
        %v1337 = vpack.c.b16 %v1327, %v1325
        %v1338 = vpack.c.b16 %v1330, %v1328
        %v1339 = vpack.c.b16 %v1331, %v1329
        %1348 = vmatprep.subr.bf16.mxu0 %v1333
        %1349 = vmatpush1.bf16.msra.mxu0 %v1332
        %1350 = vmatprep.subr.bf16.mxu0 %v1335
        %1351 = vmatpush1.bf16.msra.mxu0 %v1334
        %1352 = vmatprep.subr.bf16.mxu0 %v1337
        %1353 = vmatpush1.bf16.msra.mxu0 %v1336
        %1354 = vmatprep.subr.bf16.mxu0 %v1339
        %1355 = vmatpush1.bf16.msra.mxu0 %v1338
        %1356 = vmatprep.subr.bf16.mxu0 0
        %1357 = vmatpush1.bf16.msra.mxu0 0
        %1358 = vmatprep.subr.bf16.mxu0 0
        %1359 = vmatpush1.bf16.msra.mxu0 0
        %1360 = vmatprep.subr.bf16.mxu0 0
        %1361 = vmatpush1.bf16.msra.mxu0 0
        %1362 = vmatprep.subr.bf16.mxu0 0
        %1363 = vmatpush1.bf16.msra.mxu0 0
        %1364 = vmatprep.subr.bf16.mxu0 0
        %1365 = vmatpush1.bf16.msra.mxu0 0
        %1366 = vmatprep.subr.bf16.mxu0 0
        %1367 = vmatpush1.bf16.msra.mxu0 0
        %1368 = vmatprep.subr.bf16.mxu0 0
        %1369 = vmatpush1.bf16.msra.mxu0 0
        %1370 = vmatprep.subr.bf16.mxu0 0
        %1371 = vmatpush1.bf16.msra.mxu0 0
        %1372 = vmatprep.subr.bf16.mxu0 0
        %1373 = vmatpush1.bf16.msra.mxu0 0
        %1374 = vmatprep.subr.bf16.mxu0 0
        %1375 = vmatpush1.bf16.msra.mxu0 0
        %1376 = vmatprep.subr.bf16.mxu0 0
        %1377 = vmatpush1.bf16.msra.mxu0 0
        %1378 = vmatprep.subr.bf16.mxu0 0
        %1379 = vmatpush1.bf16.msra.mxu0 0
        %1380 = vmatprep.mubr.bf16.mxu0 0
        %1381 = vmatmul.mubr.bf16.gmra.mrb[0].mxu0 %v1188
        %v1382 = vpop.f32.mrb[0].mxu0
        %v1383 = vadd.f32 %v1301, %v1382
        %v1384 = vpop.f32.mrb[0].mxu0
        %v1385 = vadd.f32 %v1305, %v1384
        %v1386 = vpop.f32.mrb[0].mxu0
        %v1387 = vadd.f32 %v1301, %v1386
        %v1388 = vpop.f32.mrb[0].mxu0
        %v1389 = vadd.f32 %v1305, %v1388
        %1390 = vmatprep.mubr.bf16.mxu0 0
        %1391 = vmatmul.mubr.bf16.gmra.mrb[0].mxu0 %v1191
        %v1392 = vpop.f32.mrb[0].mxu0
        %v1393 = vadd.f32 %v1301, %v1392
        %v1394 = vpop.f32.mrb[0].mxu0
        %v1395 = vadd.f32 %v1305, %v1394
        %v1396 = vpop.f32.mrb[0].mxu0
        %v1397 = vadd.f32 %v1301, %v1396
        %v1398 = vpop.f32.mrb[0].mxu0
        %v1399 = vadd.f32 %v1305, %v1398
        %1400 = vmatprep.mubr.bf16.mxu0 0
        %1401 = vmatmul.mubr.bf16.gmra.mrb[0].mxu0 %v1194
        %v1402 = vpop.f32.mrb[0].mxu0
        %v1403 = vadd.f32 %v1301, %v1402
        %v1404 = vpop.f32.mrb[0].mxu0
        %v1405 = vadd.f32 %v1305, %v1404
        %v1406 = vpop.f32.mrb[0].mxu0
        %v1407 = vadd.f32 %v1301, %v1406
        %v1408 = vpop.f32.mrb[0].mxu0
        %v1409 = vadd.f32 %v1305, %v1408
        %1410 = vmatprep.mubr.bf16.mxu0 0
        %1411 = vmatmul.mubr.bf16.gmra.mrb[0].mxu0 %v1197
        %v1412 = vpop.f32.mrb[0].mxu0
        %v1413 = vadd.f32 %v1301, %v1412
        %v1414 = vpop.f32.mrb[0].mxu0
        %v1415 = vadd.f32 %v1305, %v1414
        %v1416 = vpop.f32.mrb[0].mxu0
        %v1417 = vadd.f32 %v1301, %v1416
        %v1418 = vpop.f32.mrb[0].mxu0
        %v1419 = vadd.f32 %v1305, %v1418
        %1420 = vdwg.mxu0
        %1421 = vst [vmem:[#allocation3] sm:$0xff] %v1383
        %1422 = vst.msk [vmem:[#allocation3 + $0x8] sm:$0xff] %vm1186, %v1385
        %1423 = vst [vmem:[#allocation3 + $0x10] sm:$0xff] %v1387
        %1424 = vst.msk [vmem:[#allocation3 + $0x18] sm:$0xff] %vm1186, %v1389
        %1425 = vst [vmem:[#allocation3 + $0x20] sm:$0xff] %v1393
        %1426 = vst.msk [vmem:[#allocation3 + $0x28] sm:$0xff] %vm1186, %v1395
        %1427 = vst [vmem:[#allocation3 + $0x30] sm:$0xff] %v1397
        %1428 = vst.msk [vmem:[#allocation3 + $0x38] sm:$0xff] %vm1186, %v1399
        %1429 = vst [vmem:[#allocation3 + $0x40] sm:$0xff] %v1403
        %1430 = vst.msk [vmem:[#allocation3 + $0x48] sm:$0xff] %vm1186, %v1405
        %1431 = vst [vmem:[#allocation3 + $0x50] sm:$0xff] %v1407
        %1432 = vst.msk [vmem:[#allocation3 + $0x58] sm:$0xff] %vm1186, %v1409
        %1433 = vst [vmem:[#allocation3 + $0x60] sm:$0xff] %v1413
        %1434 = vst.msk [vmem:[#allocation3 + $0x68] sm:$0xff] %vm1186, %v1415
        %1435 = vst [vmem:[#allocation3 + $0x70] sm:$0xff] %v1417
        %1436 = vst.msk [vmem:[#allocation3 + $0x78] sm:$0xff] %vm1186, %v1419
        %1437 = vst.msk [vmem:[#allocation4] sm:$0xff] %vm1186, 0.0
        %1438 = vst.msk [vmem:[#allocation5] sm:$0xff] %vm1186, 0.0
        %1439 = vst.msk [vmem:[#allocation6] sm:$0xff] %vm1186, 0.0
        %1440 = vst.msk [vmem:[#allocation7] sm:$0xff] %vm1186, 0.0
        %v1441 = vld [vmem:[%s10] sm:$0xff]
        %v1442 = vld [vmem:[%s10 + $0x8] sm:$0xff]
        %v1443 = vld [vmem:[%s10 + $0x10] sm:$0xff]
        %v1444 = vld [vmem:[%s10 + $0x18] sm:$0xff]
        %v1445 = vld [vmem:[%s10 + $0x20] sm:$0xff]
        %v1446 = vld [vmem:[%s10 + $0x28] sm:$0xff]
        %v1447 = vld [vmem:[%s10 + $0x30] sm:$0xff]
        %v1448 = vld [vmem:[%s10 + $0x38] sm:$0xff]
        %v1449 = vld [vmem:[%s11] sm:$0x3]
        %v1450 = vld [vmem:[#allocation9] sm:$0xff]
        %v1451 = vld [vmem:[#allocation9 + $0x8] sm:$0xff]
        %v1452 = vld [vmem:[#allocation9 + $0x10] sm:$0xff]
        %v1453 = vld [vmem:[#allocation9 + $0x18] sm:$0xff]
        %v1454 = vld [vmem:[#allocation9 + $0x20] sm:$0xff]
        %v1455 = vld [vmem:[#allocation9 + $0x28] sm:$0xff]
        %v1456 = vld [vmem:[#allocation9 + $0x30] sm:$0xff]
        %v1457 = vld [vmem:[#allocation9 + $0x38] sm:$0xff]
        %v1458 = vld [vmem:[%s13] sm:$0x3]
        loop: start=0, step=1, limit=8
        $region93: #{tpu_custom_call.1} parent=87 // loop_pre_header
          _
        $region94: #{tpu_custom_call.1} parent=87 // loop_header
          %s1460 = sphi 0, %s1464
          %p1461 = scmp.ge.s32.totalorder %s1460, 8
        $region95: #{tpu_custom_call.1} parent=87 // loop_header_branch
          %1463 = sbr.rel (%p1461) target = $region99
        $region96: #{tpu_custom_call.1} parent=87 // loop_body
          %s1465 = ssub.s32 7, %s1460
          %s1466 = sshra.s32 %s1460, 3
          %s1467 = sand.u32 %s1460, 7
          %s1468 = sshra.s32 %s1460, 3
          %s1469 = sand.u32 %s1460, 7
          %s1470 = smul.u32 %s1466, 2
          %s1471 = smul.u32 %s1470, 8
          %s1472 = sadd.s32 %s1471, %s1469
          %s1473 = scalar_lea.vmem [#allocation2], %s1472
          %v1474 = vld [vmem:[%s1473] ss:$8 sm:$0x3]
          %s1475 = sadd.s32 16, %s1472
          %s1476 = scalar_lea.vmem [#allocation2], %s1475
          %v1477 = vld [vmem:[%s1476] ss:$8 sm:$0x3]
          %s1478 = sadd.s32 32, %s1472
          %s1479 = scalar_lea.vmem [#allocation2], %s1478
          %v1480 = vld [vmem:[%s1479] ss:$8 sm:$0x3]
          %s1481 = sadd.s32 48, %s1472
          %s1482 = scalar_lea.vmem [#allocation2], %s1481
          %v1483 = vld [vmem:[%s1482] ss:$8 sm:$0x3]
          %s1484 = sadd.s32 64, %s1472
          %s1485 = scalar_lea.vmem [#allocation2], %s1484
          %v1486 = vld [vmem:[%s1485] ss:$8 sm:$0x3]
          %s1487 = sadd.s32 80, %s1472
          %s1488 = scalar_lea.vmem [#allocation2], %s1487
          %v1489 = vld [vmem:[%s1488] ss:$8 sm:$0x3]
          %s1490 = sadd.s32 96, %s1472
          %s1491 = scalar_lea.vmem [#allocation2], %s1490
          %v1492 = vld [vmem:[%s1491] ss:$8 sm:$0x3]
          %s1493 = sadd.s32 112, %s1472
          %s1494 = scalar_lea.vmem [#allocation2], %s1493
          %v1495 = vld [vmem:[%s1494] ss:$8 sm:$0x3]
          %s1496 = sshra.s32 %s1465, 3
          %s1497 = sand.u32 %s1465, 7
          %s1498 = sshra.s32 %s1465, 3
          %s1499 = sand.u32 %s1465, 7
          %s1500 = smul.u32 %s1496, 2
          %s1501 = smul.u32 %s1500, 8
          %s1502 = sadd.s32 %s1501, %s1499
          %s1503 = scalar_lea.vmem [#allocation3], %s1502
          %v1504 = vld [vmem:[%s1503] ss:$8 sm:$0x3]
          %s1505 = sadd.s32 16, %s1502
          %s1506 = scalar_lea.vmem [#allocation3], %s1505
          %v1507 = vld [vmem:[%s1506] ss:$8 sm:$0x3]
          %s1508 = sadd.s32 32, %s1502
          %s1509 = scalar_lea.vmem [#allocation3], %s1508
          %v1510 = vld [vmem:[%s1509] ss:$8 sm:$0x3]
          %s1511 = sadd.s32 48, %s1502
          %s1512 = scalar_lea.vmem [#allocation3], %s1511
          %v1513 = vld [vmem:[%s1512] ss:$8 sm:$0x3]
          %s1514 = sadd.s32 64, %s1502
          %s1515 = scalar_lea.vmem [#allocation3], %s1514
          %v1516 = vld [vmem:[%s1515] ss:$8 sm:$0x3]
          %s1517 = sadd.s32 80, %s1502
          %s1518 = scalar_lea.vmem [#allocation3], %s1517
          %v1519 = vld [vmem:[%s1518] ss:$8 sm:$0x3]
          %s1520 = sadd.s32 96, %s1502
          %s1521 = scalar_lea.vmem [#allocation3], %s1520
          %v1522 = vld [vmem:[%s1521] ss:$8 sm:$0x3]
          %s1523 = sadd.s32 112, %s1502
          %s1524 = scalar_lea.vmem [#allocation3], %s1523
          %v1525 = vld [vmem:[%s1524] ss:$8 sm:$0x3]
          %v1526 = vld [vmem:[#allocation4] sm:$0xff]
          %v1527 = vld [vmem:[#allocation5] sm:$0xff]
          %v1528 = vpack.c.bf16 %v1526, %v1526
          %v1530 = vlaneseq
          %v1531 = vshrl.u32 %v1530, 7
          %v1532 = vsub.s32 0, %v1531
          %v1533 = vrot.slane %v1449, %v1532
          %v1534 = vlaneseq
          %v1535 = vshrl.u32 %v1534, 7
          %v1536 = vsub.s32 1, %v1535
          %v1537 = vrot.slane %v1449, %v1536
          %v1548 = vunpack.c.l.b16 %v1441
          %v1549 = vunpack.c.h.b16 %v1441
          %v1550 = vunpack.c.l.b16 %v1442
          %v1551 = vunpack.c.h.b16 %v1442
          %v1552 = vunpack.c.l.b16 %v1443
          %v1553 = vunpack.c.h.b16 %v1443
          %v1554 = vunpack.c.l.b16 %v1444
          %v1555 = vunpack.c.h.b16 %v1444
          %v1556 = vunpack.c.l.b16 %v1445
          %v1557 = vunpack.c.h.b16 %v1445
          %v1558 = vunpack.c.l.b16 %v1446
          %v1559 = vunpack.c.h.b16 %v1446
          %v1560 = vunpack.c.l.b16 %v1447
          %v1561 = vunpack.c.h.b16 %v1447
          %v1562 = vunpack.c.l.b16 %v1448
          %v1563 = vunpack.c.h.b16 %v1448
          %v1564 = vpack.c.b16 %v1550, %v1548
          %v1565 = vpack.c.b16 %v1551, %v1549
          %v1566 = vpack.c.b16 %v1554, %v1552
          %v1567 = vpack.c.b16 %v1555, %v1553
          %v1568 = vpack.c.b16 %v1558, %v1556
          %v1569 = vpack.c.b16 %v1559, %v1557
          %v1570 = vpack.c.b16 %v1562, %v1560
          %v1571 = vpack.c.b16 %v1563, %v1561
          %v1581 = vsel %vm1186, %v1528, 0
          %1583 = vmatprep.subr.bf16.mxu0 %v1565
          %1584 = vmatpush1.bf16.msra.mxu0 %v1564
          %1585 = vmatprep.subr.bf16.mxu0 %v1567
          %1586 = vmatpush1.bf16.msra.mxu0 %v1566
          %1587 = vmatprep.subr.bf16.mxu0 %v1569
          %1588 = vmatpush1.bf16.msra.mxu0 %v1568
          %1589 = vmatprep.subr.bf16.mxu0 %v1571
          %1590 = vmatpush1.bf16.msra.mxu0 %v1570
          %1591 = vmatprep.subr.bf16.mxu0 0
          %1592 = vmatpush1.bf16.msra.mxu0 0
          %1593 = vmatprep.subr.bf16.mxu0 0
          %1594 = vmatpush1.bf16.msra.mxu0 0
          %1595 = vmatprep.subr.bf16.mxu0 0
          %1596 = vmatpush1.bf16.msra.mxu0 0
          %1597 = vmatprep.subr.bf16.mxu0 0
          %1598 = vmatpush1.bf16.msra.mxu0 0
          %1599 = vmatprep.subr.bf16.mxu0 0
          %1600 = vmatpush1.bf16.msra.mxu0 0
          %1601 = vmatprep.subr.bf16.mxu0 0
          %1602 = vmatpush1.bf16.msra.mxu0 0
          %1603 = vmatprep.subr.bf16.mxu0 0
          %1604 = vmatpush1.bf16.msra.mxu0 0
          %1605 = vmatprep.subr.bf16.mxu0 0
          %1606 = vmatpush1.bf16.msra.mxu0 0
          %1607 = vmatprep.subr.bf16.mxu0 0
          %1608 = vmatpush1.bf16.msra.mxu0 0
          %1609 = vmatprep.subr.bf16.mxu0 0
          %1610 = vmatpush1.bf16.msra.mxu0 0
          %1611 = vmatprep.subr.bf16.mxu0 0
          %1612 = vmatpush1.bf16.msra.mxu0 0
          %1613 = vmatprep.subr.bf16.mxu0 0
          %1614 = vmatpush1.bf16.msra.mxu0 0
          %1615 = vmatprep.mubr.bf16.mxu0 0
          %1616 = vmatmul.mubr.bf16.gmra.mrb[0].mxu0 %v1581
          %v1617 = vpop.f32.mrb[0].mxu0
          %v1618 = vadd.f32 %v1533, %v1617
          %v1619 = vpop.f32.mrb[0].mxu0
          %v1620 = vadd.f32 %v1537, %v1619
          %v1621 = vpop.f32.mrb[0].mxu0
          %v1622 = vpop.f32.mrb[0].mxu0
          %1623 = vdwg.mxu0
          %v1624 = vpack.c.bf16 %v1527, %v1527
          %v1626 = vlaneseq
          %v1627 = vshrl.u32 %v1626, 7
          %v1628 = vsub.s32 0, %v1627
          %v1629 = vrot.slane %v1458, %v1628
          %v1630 = vlaneseq
          %v1631 = vshrl.u32 %v1630, 7
          %v1632 = vsub.s32 1, %v1631
          %v1633 = vrot.slane %v1458, %v1632
          %v1644 = vunpack.c.l.b16 %v1450
          %v1645 = vunpack.c.h.b16 %v1450
          %v1646 = vunpack.c.l.b16 %v1451
          %v1647 = vunpack.c.h.b16 %v1451
          %v1648 = vunpack.c.l.b16 %v1452
          %v1649 = vunpack.c.h.b16 %v1452
          %v1650 = vunpack.c.l.b16 %v1453
          %v1651 = vunpack.c.h.b16 %v1453
          %v1652 = vunpack.c.l.b16 %v1454
          %v1653 = vunpack.c.h.b16 %v1454
          %v1654 = vunpack.c.l.b16 %v1455
          %v1655 = vunpack.c.h.b16 %v1455
          %v1656 = vunpack.c.l.b16 %v1456
          %v1657 = vunpack.c.h.b16 %v1456
          %v1658 = vunpack.c.l.b16 %v1457
          %v1659 = vunpack.c.h.b16 %v1457
          %v1660 = vpack.c.b16 %v1646, %v1644
          %v1661 = vpack.c.b16 %v1647, %v1645
          %v1662 = vpack.c.b16 %v1650, %v1648
          %v1663 = vpack.c.b16 %v1651, %v1649
          %v1664 = vpack.c.b16 %v1654, %v1652
          %v1665 = vpack.c.b16 %v1655, %v1653
          %v1666 = vpack.c.b16 %v1658, %v1656
          %v1667 = vpack.c.b16 %v1659, %v1657
          %v1677 = vsel %vm1186, %v1624, 0
          %1679 = vmatprep.subr.bf16.mxu0 %v1661
          %1680 = vmatpush1.bf16.msra.mxu0 %v1660
          %1681 = vmatprep.subr.bf16.mxu0 %v1663
          %1682 = vmatpush1.bf16.msra.mxu0 %v1662
          %1683 = vmatprep.subr.bf16.mxu0 %v1665
          %1684 = vmatpush1.bf16.msra.mxu0 %v1664
          %1685 = vmatprep.subr.bf16.mxu0 %v1667
          %1686 = vmatpush1.bf16.msra.mxu0 %v1666
          %1687 = vmatprep.subr.bf16.mxu0 0
          %1688 = vmatpush1.bf16.msra.mxu0 0
          %1689 = vmatprep.subr.bf16.mxu0 0
          %1690 = vmatpush1.bf16.msra.mxu0 0
          %1691 = vmatprep.subr.bf16.mxu0 0
          %1692 = vmatpush1.bf16.msra.mxu0 0
          %1693 = vmatprep.subr.bf16.mxu0 0
          %1694 = vmatpush1.bf16.msra.mxu0 0
          %1695 = vmatprep.subr.bf16.mxu0 0
          %1696 = vmatpush1.bf16.msra.mxu0 0
          %1697 = vmatprep.subr.bf16.mxu0 0
          %1698 = vmatpush1.bf16.msra.mxu0 0
          %1699 = vmatprep.subr.bf16.mxu0 0
          %1700 = vmatpush1.bf16.msra.mxu0 0
          %1701 = vmatprep.subr.bf16.mxu0 0
          %1702 = vmatpush1.bf16.msra.mxu0 0
          %1703 = vmatprep.subr.bf16.mxu0 0
          %1704 = vmatpush1.bf16.msra.mxu0 0
          %1705 = vmatprep.subr.bf16.mxu0 0
          %1706 = vmatpush1.bf16.msra.mxu0 0
          %1707 = vmatprep.subr.bf16.mxu0 0
          %1708 = vmatpush1.bf16.msra.mxu0 0
          %1709 = vmatprep.subr.bf16.mxu0 0
          %1710 = vmatpush1.bf16.msra.mxu0 0
          %1711 = vmatprep.mubr.bf16.mxu0 0
          %1712 = vmatmul.mubr.bf16.gmra.mrb[0].mxu0 %v1677
          %v1713 = vpop.f32.mrb[0].mxu0
          %v1714 = vadd.f32 %v1629, %v1713
          %v1715 = vpop.f32.mrb[0].mxu0
          %v1716 = vadd.f32 %v1633, %v1715
          %v1717 = vpop.f32.mrb[0].mxu0
          %v1718 = vpop.f32.mrb[0].mxu0
          %1719 = vdwg.mxu0
          %v1721 = vcombine.high %v1618, %v1618
          %v1723 = vunpack.c.l.s4 1966171168
          %v1724 = vunpack.c.0.s8 %v1723
          %v1725 = vlaneseq
          %v1726 = vshrl.u32 %v1725, 7
          %v1727 = vsub.s32 %v1724, %v1726
          %v1728 = vrot.slane %v1618, %v1727
          %v1730 = vunpack.c.l.s4 1966171168
          %v1731 = vunpack.c.0.s8 %v1730
          %v1732 = vlaneseq
          %v1733 = vshrl.u32 %v1732, 7
          %v1734 = vsub.s32 %v1731, %v1733
          %v1735 = vrot.slane %v1721, %v1734
          %v1736 = vcombine.high %v1728, %v1728
          %v1737 = vcombine.high %v1735, %v1735
          %v1739 = vunpack.c.l.s4 1966171168
          %v1740 = vunpack.c.0.s8 %v1739
          %v1741 = vlaneseq
          %v1742 = vshrl.u32 %v1741, 7
          %v1743 = vsub.s32 %v1740, %v1742
          %v1744 = vrot.slane %v1728, %v1743
          %v1746 = vunpack.c.l.s4 1966171168
          %v1747 = vunpack.c.0.s8 %v1746
          %v1748 = vlaneseq
          %v1749 = vshrl.u32 %v1748, 7
          %v1750 = vsub.s32 %v1747, %v1749
          %v1751 = vrot.slane %v1735, %v1750
          %v1753 = vunpack.c.l.s4 1966171168
          %v1754 = vunpack.c.0.s8 %v1753
          %v1755 = vlaneseq
          %v1756 = vshrl.u32 %v1755, 7
          %v1757 = vsub.s32 %v1754, %v1756
          %v1758 = vrot.slane %v1736, %v1757
          %v1760 = vunpack.c.l.s4 1966171168
          %v1761 = vunpack.c.0.s8 %v1760
          %v1762 = vlaneseq
          %v1763 = vshrl.u32 %v1762, 7
          %v1764 = vsub.s32 %v1761, %v1763
          %v1765 = vrot.slane %v1737, %v1764
          %v1766 = vcombine.high %v1744, %v1744
          %v1767 = vcombine.high %v1751, %v1751
          %v1768 = vcombine.high %v1758, %v1758
          %v1769 = vcombine.high %v1765, %v1765
          %v1778 = vadd.f32 %v1474, %v1744
          %v1779 = vadd.f32 %v1477, %v1758
          %v1780 = vadd.f32 %v1480, %v1766
          %v1781 = vadd.f32 %v1483, %v1768
          %v1782 = vadd.f32 %v1486, %v1751
          %v1783 = vadd.f32 %v1489, %v1765
          %v1784 = vadd.f32 %v1492, %v1767
          %v1785 = vadd.f32 %v1495, %v1769
          %v1786 = vxor.u32 %v1778, 2147483648
          %v1787 = vxor.u32 %v1779, 2147483648
          %v1788 = vxor.u32 %v1780, 2147483648
          %v1789 = vxor.u32 %v1781, 2147483648
          %v1790 = vxor.u32 %v1782, 2147483648
          %v1791 = vxor.u32 %v1783, 2147483648
          %v1792 = vxor.u32 %v1784, 2147483648
          %v1793 = vxor.u32 %v1785, 2147483648
          %v1794 = vmul.f32 %v1786, 1.442695
          %v1795 = vpow.pop %v1794
          %v1796 = vmul.f32 %v1787, 1.442695
          %v1797 = vpow.pop %v1796
          %v1798 = vmul.f32 %v1788, 1.442695
          %v1799 = vpow.pop %v1798
          %v1800 = vmul.f32 %v1789, 1.442695
          %v1801 = vpow.pop %v1800
          %v1802 = vmul.f32 %v1790, 1.442695
          %v1803 = vpow.pop %v1802
          %v1804 = vmul.f32 %v1791, 1.442695
          %v1805 = vpow.pop %v1804
          %v1806 = vmul.f32 %v1792, 1.442695
          %v1807 = vpow.pop %v1806
          %v1808 = vmul.f32 %v1793, 1.442695
          %v1809 = vpow.pop %v1808
          %v1810 = vadd.f32 %v1795, 1.0
          %v1811 = vadd.f32 %v1797, 1.0
          %v1812 = vadd.f32 %v1799, 1.0
          %v1813 = vadd.f32 %v1801, 1.0
          %v1814 = vadd.f32 %v1803, 1.0
          %v1815 = vadd.f32 %v1805, 1.0
          %v1816 = vadd.f32 %v1807, 1.0
          %v1817 = vadd.f32 %v1809, 1.0
          %v1818 = vrcp.pop %v1810
          %v1819 = vmul.f32 1.0, %v1818
          %v1820 = vrcp.pop %v1811
          %v1821 = vmul.f32 1.0, %v1820
          %v1822 = vrcp.pop %v1812
          %v1823 = vmul.f32 1.0, %v1822
          %v1824 = vrcp.pop %v1813
          %v1825 = vmul.f32 1.0, %v1824
          %v1826 = vrcp.pop %v1814
          %v1827 = vmul.f32 1.0, %v1826
          %v1828 = vrcp.pop %v1815
          %v1829 = vmul.f32 1.0, %v1828
          %v1830 = vrcp.pop %v1816
          %v1831 = vmul.f32 1.0, %v1830
          %v1832 = vrcp.pop %v1817
          %v1833 = vmul.f32 1.0, %v1832
          %v1835 = vcombine.high %v1620, %v1620
          %v1837 = vunpack.c.l.s4 1966171168
          %v1838 = vunpack.c.0.s8 %v1837
          %v1839 = vlaneseq
          %v1840 = vshrl.u32 %v1839, 7
          %v1841 = vsub.s32 %v1838, %v1840
          %v1842 = vrot.slane %v1620, %v1841
          %v1844 = vunpack.c.l.s4 1966171168
          %v1845 = vunpack.c.0.s8 %v1844
          %v1846 = vlaneseq
          %v1847 = vshrl.u32 %v1846, 7
          %v1848 = vsub.s32 %v1845, %v1847
          %v1849 = vrot.slane %v1835, %v1848
          %v1850 = vcombine.high %v1842, %v1842
          %v1851 = vcombine.high %v1849, %v1849
          %v1853 = vunpack.c.l.s4 1966171168
          %v1854 = vunpack.c.0.s8 %v1853
          %v1855 = vlaneseq
          %v1856 = vshrl.u32 %v1855, 7
          %v1857 = vsub.s32 %v1854, %v1856
          %v1858 = vrot.slane %v1842, %v1857
          %v1860 = vunpack.c.l.s4 1966171168
          %v1861 = vunpack.c.0.s8 %v1860
          %v1862 = vlaneseq
          %v1863 = vshrl.u32 %v1862, 7
          %v1864 = vsub.s32 %v1861, %v1863
          %v1865 = vrot.slane %v1849, %v1864
          %v1867 = vunpack.c.l.s4 1966171168
          %v1868 = vunpack.c.0.s8 %v1867
          %v1869 = vlaneseq
          %v1870 = vshrl.u32 %v1869, 7
          %v1871 = vsub.s32 %v1868, %v1870
          %v1872 = vrot.slane %v1850, %v1871
          %v1874 = vunpack.c.l.s4 1966171168
          %v1875 = vunpack.c.0.s8 %v1874
          %v1876 = vlaneseq
          %v1877 = vshrl.u32 %v1876, 7
          %v1878 = vsub.s32 %v1875, %v1877
          %v1879 = vrot.slane %v1851, %v1878
          %v1880 = vcombine.high %v1858, %v1858
          %v1881 = vcombine.high %v1865, %v1865
          %v1882 = vcombine.high %v1872, %v1872
          %v1883 = vcombine.high %v1879, %v1879
          %v1892 = vmul.f32 %v1819, %v1858
          %v1893 = vmul.f32 %v1821, %v1872
          %v1894 = vmul.f32 %v1823, %v1880
          %v1895 = vmul.f32 %v1825, %v1882
          %v1896 = vmul.f32 %v1827, %v1865
          %v1897 = vmul.f32 %v1829, %v1879
          %v1898 = vmul.f32 %v1831, %v1881
          %v1899 = vmul.f32 %v1833, %v1883
          %v1908 = vrot.slane %v1474, 1
          %v1909 = vrot.slane %v1477, 1
          %v1910 = vrot.slane %v1480, 1
          %v1911 = vrot.slane %v1483, 1
          %v1912 = vrot.slane %v1486, 1
          %v1913 = vrot.slane %v1489, 1
          %v1914 = vrot.slane %v1492, 1
          %v1915 = vrot.slane %v1495, 1
          %v1924 = vadd.f32 %v1908, %v1892
          %v1925 = vadd.f32 %v1909, %v1893
          %v1926 = vadd.f32 %v1910, %v1894
          %v1927 = vadd.f32 %v1911, %v1895
          %v1928 = vadd.f32 %v1912, %v1896
          %v1929 = vadd.f32 %v1913, %v1897
          %v1930 = vadd.f32 %v1914, %v1898
          %v1931 = vadd.f32 %v1915, %v1899
          %v1932 = vtanh.pop %v1924
          %v1933 = vtanh.pop %v1925
          %v1934 = vtanh.pop %v1926
          %v1935 = vtanh.pop %v1927
          %v1936 = vtanh.pop %v1928
          %v1937 = vtanh.pop %v1929
          %v1938 = vtanh.pop %v1930
          %v1939 = vtanh.pop %v1931
          %v1940 = vsub.f32 1.0, %v1819
          %v1941 = vsub.f32 1.0, %v1821
          %v1942 = vsub.f32 1.0, %v1823
          %v1943 = vsub.f32 1.0, %v1825
          %v1944 = vsub.f32 1.0, %v1827
          %v1945 = vsub.f32 1.0, %v1829
          %v1946 = vsub.f32 1.0, %v1831
          %v1947 = vsub.f32 1.0, %v1833
          %1956 = vrot.lane.b32.xlu0 %v1932, 64
          %v1957 = vpop.permute.xlu0 %1956
          %1958 = vrot.lane.b32.xlu0 %v1933, 64
          %v1959 = vpop.permute.xlu0 %1958
          %1960 = vrot.lane.b32.xlu0 %v1934, 64
          %v1961 = vpop.permute.xlu0 %1960
          %1962 = vrot.lane.b32.xlu0 %v1935, 64
          %v1963 = vpop.permute.xlu0 %1962
          %1964 = vrot.lane.b32.xlu0 %v1936, 64
          %v1965 = vpop.permute.xlu0 %1964
          %1966 = vrot.lane.b32.xlu0 %v1937, 64
          %v1967 = vpop.permute.xlu0 %1966
          %1968 = vrot.lane.b32.xlu0 %v1938, 64
          %v1969 = vpop.permute.xlu0 %1968
          %1970 = vrot.lane.b32.xlu0 %v1939, 64
          %v1971 = vpop.permute.xlu0 %1970
          %v1980 = vmul.f32 %v1940, %v1957
          %v1981 = vmul.f32 %v1941, %v1959
          %v1982 = vmul.f32 %v1942, %v1961
          %v1983 = vmul.f32 %v1943, %v1963
          %v1984 = vmul.f32 %v1944, %v1965
          %v1985 = vmul.f32 %v1945, %v1967
          %v1986 = vmul.f32 %v1946, %v1969
          %v1987 = vmul.f32 %v1947, %v1971
          %v1989 = vcombine.high %v1526, %v1526
          %v1991 = vunpack.c.l.s4 1966171168
          %v1992 = vunpack.c.0.s8 %v1991
          %v1993 = vlaneseq
          %v1994 = vshrl.u32 %v1993, 7
          %v1995 = vsub.s32 %v1992, %v1994
          %v1996 = vrot.slane %v1526, %v1995
          %v1998 = vunpack.c.l.s4 1966171168
          %v1999 = vunpack.c.0.s8 %v1998
          %v2000 = vlaneseq
          %v2001 = vshrl.u32 %v2000, 7
          %v2002 = vsub.s32 %v1999, %v2001
          %v2003 = vrot.slane %v1989, %v2002
          %v2004 = vcombine.high %v1996, %v1996
          %v2005 = vcombine.high %v2003, %v2003
          %v2007 = vunpack.c.l.s4 1966171168
          %v2008 = vunpack.c.0.s8 %v2007
          %v2009 = vlaneseq
          %v2010 = vshrl.u32 %v2009, 7
          %v2011 = vsub.s32 %v2008, %v2010
          %v2012 = vrot.slane %v1996, %v2011
          %v2014 = vunpack.c.l.s4 1966171168
          %v2015 = vunpack.c.0.s8 %v2014
          %v2016 = vlaneseq
          %v2017 = vshrl.u32 %v2016, 7
          %v2018 = vsub.s32 %v2015, %v2017
          %v2019 = vrot.slane %v2003, %v2018
          %v2021 = vunpack.c.l.s4 1966171168
          %v2022 = vunpack.c.0.s8 %v2021
          %v2023 = vlaneseq
          %v2024 = vshrl.u32 %v2023, 7
          %v2025 = vsub.s32 %v2022, %v2024
          %v2026 = vrot.slane %v2004, %v2025
          %v2028 = vunpack.c.l.s4 1966171168
          %v2029 = vunpack.c.0.s8 %v2028
          %v2030 = vlaneseq
          %v2031 = vshrl.u32 %v2030, 7
          %v2032 = vsub.s32 %v2029, %v2031
          %v2033 = vrot.slane %v2005, %v2032
          %v2034 = vcombine.high %v2012, %v2012
          %v2035 = vcombine.high %v2019, %v2019
          %v2036 = vcombine.high %v2026, %v2026
          %v2037 = vcombine.high %v2033, %v2033
          %2038 = vrot.lane.b32.xlu0 %v2012, 64
          %v2039 = vpop.permute.xlu0 %2038
          %2040 = vrot.lane.b32.xlu0 %v2026, 64
          %v2041 = vpop.permute.xlu0 %2040
          %2042 = vrot.lane.b32.xlu0 %v2034, 64
          %v2043 = vpop.permute.xlu0 %2042
          %2044 = vrot.lane.b32.xlu0 %v2036, 64
          %v2045 = vpop.permute.xlu0 %2044
          %2046 = vrot.lane.b32.xlu0 %v2019, 64
          %v2047 = vpop.permute.xlu0 %2046
          %2048 = vrot.lane.b32.xlu0 %v2033, 64
          %v2049 = vpop.permute.xlu0 %2048
          %2050 = vrot.lane.b32.xlu0 %v2035, 64
          %v2051 = vpop.permute.xlu0 %2050
          %2052 = vrot.lane.b32.xlu0 %v2037, 64
          %v2053 = vpop.permute.xlu0 %2052
          %v2062 = vmul.f32 %v1819, %v2039
          %v2063 = vmul.f32 %v1821, %v2041
          %v2064 = vmul.f32 %v1823, %v2043
          %v2065 = vmul.f32 %v1825, %v2045
          %v2066 = vmul.f32 %v1827, %v2047
          %v2067 = vmul.f32 %v1829, %v2049
          %v2068 = vmul.f32 %v1831, %v2051
          %v2069 = vmul.f32 %v1833, %v2053
          %v2070 = vadd.f32 %v1980, %v2062
          %v2071 = vadd.f32 %v1981, %v2063
          %v2072 = vadd.f32 %v1982, %v2064
          %v2073 = vadd.f32 %v1983, %v2065
          %v2074 = vadd.f32 %v1984, %v2066
          %v2075 = vadd.f32 %v1985, %v2067
          %v2076 = vadd.f32 %v1986, %v2068
          %v2077 = vadd.f32 %v1987, %v2069
          %v2079 = vcombine.high %v1714, %v1714
          %v2081 = vunpack.c.l.s4 1966171168
          %v2082 = vunpack.c.0.s8 %v2081
          %v2083 = vlaneseq
          %v2084 = vshrl.u32 %v2083, 7
          %v2085 = vsub.s32 %v2082, %v2084
          %v2086 = vrot.slane %v1714, %v2085
          %v2088 = vunpack.c.l.s4 1966171168
          %v2089 = vunpack.c.0.s8 %v2088
          %v2090 = vlaneseq
          %v2091 = vshrl.u32 %v2090, 7
          %v2092 = vsub.s32 %v2089, %v2091
          %v2093 = vrot.slane %v2079, %v2092
          %v2094 = vcombine.high %v2086, %v2086
          %v2095 = vcombine.high %v2093, %v2093
          %v2097 = vunpack.c.l.s4 1966171168
          %v2098 = vunpack.c.0.s8 %v2097
          %v2099 = vlaneseq
          %v2100 = vshrl.u32 %v2099, 7
          %v2101 = vsub.s32 %v2098, %v2100
          %v2102 = vrot.slane %v2086, %v2101
          %v2104 = vunpack.c.l.s4 1966171168
          %v2105 = vunpack.c.0.s8 %v2104
          %v2106 = vlaneseq
          %v2107 = vshrl.u32 %v2106, 7
          %v2108 = vsub.s32 %v2105, %v2107
          %v2109 = vrot.slane %v2093, %v2108
          %v2111 = vunpack.c.l.s4 1966171168
          %v2112 = vunpack.c.0.s8 %v2111
          %v2113 = vlaneseq
          %v2114 = vshrl.u32 %v2113, 7
          %v2115 = vsub.s32 %v2112, %v2114
          %v2116 = vrot.slane %v2094, %v2115
          %v2118 = vunpack.c.l.s4 1966171168
          %v2119 = vunpack.c.0.s8 %v2118
          %v2120 = vlaneseq
          %v2121 = vshrl.u32 %v2120, 7
          %v2122 = vsub.s32 %v2119, %v2121
          %v2123 = vrot.slane %v2095, %v2122
          %v2124 = vcombine.high %v2102, %v2102
          %v2125 = vcombine.high %v2109, %v2109
          %v2126 = vcombine.high %v2116, %v2116
          %v2127 = vcombine.high %v2123, %v2123
          %v2136 = vadd.f32 %v1504, %v2102
          %v2137 = vadd.f32 %v1507, %v2116
          %v2138 = vadd.f32 %v1510, %v2124
          %v2139 = vadd.f32 %v1513, %v2126
          %v2140 = vadd.f32 %v1516, %v2109
          %v2141 = vadd.f32 %v1519, %v2123
          %v2142 = vadd.f32 %v1522, %v2125
          %v2143 = vadd.f32 %v1525, %v2127
          %v2144 = vxor.u32 %v2136, 2147483648
          %v2145 = vxor.u32 %v2137, 2147483648
          %v2146 = vxor.u32 %v2138, 2147483648
          %v2147 = vxor.u32 %v2139, 2147483648
          %v2148 = vxor.u32 %v2140, 2147483648
          %v2149 = vxor.u32 %v2141, 2147483648
          %v2150 = vxor.u32 %v2142, 2147483648
          %v2151 = vxor.u32 %v2143, 2147483648
          %v2152 = vmul.f32 %v2144, 1.442695
          %v2153 = vpow.pop %v2152
          %v2154 = vmul.f32 %v2145, 1.442695
          %v2155 = vpow.pop %v2154
          %v2156 = vmul.f32 %v2146, 1.442695
          %v2157 = vpow.pop %v2156
          %v2158 = vmul.f32 %v2147, 1.442695
          %v2159 = vpow.pop %v2158
          %v2160 = vmul.f32 %v2148, 1.442695
          %v2161 = vpow.pop %v2160
          %v2162 = vmul.f32 %v2149, 1.442695
          %v2163 = vpow.pop %v2162
          %v2164 = vmul.f32 %v2150, 1.442695
          %v2165 = vpow.pop %v2164
          %v2166 = vmul.f32 %v2151, 1.442695
          %v2167 = vpow.pop %v2166
          %v2168 = vadd.f32 %v2153, 1.0
          %v2169 = vadd.f32 %v2155, 1.0
          %v2170 = vadd.f32 %v2157, 1.0
          %v2171 = vadd.f32 %v2159, 1.0
          %v2172 = vadd.f32 %v2161, 1.0
          %v2173 = vadd.f32 %v2163, 1.0
          %v2174 = vadd.f32 %v2165, 1.0
          %v2175 = vadd.f32 %v2167, 1.0
          %v2176 = vrcp.pop %v2168
          %v2177 = vmul.f32 1.0, %v2176
          %v2178 = vrcp.pop %v2169
          %v2179 = vmul.f32 1.0, %v2178
          %v2180 = vrcp.pop %v2170
          %v2181 = vmul.f32 1.0, %v2180
          %v2182 = vrcp.pop %v2171
          %v2183 = vmul.f32 1.0, %v2182
          %v2184 = vrcp.pop %v2172
          %v2185 = vmul.f32 1.0, %v2184
          %v2186 = vrcp.pop %v2173
          %v2187 = vmul.f32 1.0, %v2186
          %v2188 = vrcp.pop %v2174
          %v2189 = vmul.f32 1.0, %v2188
          %v2190 = vrcp.pop %v2175
          %v2191 = vmul.f32 1.0, %v2190
          %v2193 = vcombine.high %v1716, %v1716
          %v2195 = vunpack.c.l.s4 1966171168
          %v2196 = vunpack.c.0.s8 %v2195
          %v2197 = vlaneseq
          %v2198 = vshrl.u32 %v2197, 7
          %v2199 = vsub.s32 %v2196, %v2198
          %v2200 = vrot.slane %v1716, %v2199
          %v2202 = vunpack.c.l.s4 1966171168
          %v2203 = vunpack.c.0.s8 %v2202
          %v2204 = vlaneseq
          %v2205 = vshrl.u32 %v2204, 7
          %v2206 = vsub.s32 %v2203, %v2205
          %v2207 = vrot.slane %v2193, %v2206
          %v2208 = vcombine.high %v2200, %v2200
          %v2209 = vcombine.high %v2207, %v2207
          %v2211 = vunpack.c.l.s4 1966171168
          %v2212 = vunpack.c.0.s8 %v2211
          %v2213 = vlaneseq
          %v2214 = vshrl.u32 %v2213, 7
          %v2215 = vsub.s32 %v2212, %v2214
          %v2216 = vrot.slane %v2200, %v2215
          %v2218 = vunpack.c.l.s4 1966171168
          %v2219 = vunpack.c.0.s8 %v2218
          %v2220 = vlaneseq
          %v2221 = vshrl.u32 %v2220, 7
          %v2222 = vsub.s32 %v2219, %v2221
          %v2223 = vrot.slane %v2207, %v2222
          %v2225 = vunpack.c.l.s4 1966171168
          %v2226 = vunpack.c.0.s8 %v2225
          %v2227 = vlaneseq
          %v2228 = vshrl.u32 %v2227, 7
          %v2229 = vsub.s32 %v2226, %v2228
          %v2230 = vrot.slane %v2208, %v2229
          %v2232 = vunpack.c.l.s4 1966171168
          %v2233 = vunpack.c.0.s8 %v2232
          %v2234 = vlaneseq
          %v2235 = vshrl.u32 %v2234, 7
          %v2236 = vsub.s32 %v2233, %v2235
          %v2237 = vrot.slane %v2209, %v2236
          %v2238 = vcombine.high %v2216, %v2216
          %v2239 = vcombine.high %v2223, %v2223
          %v2240 = vcombine.high %v2230, %v2230
          %v2241 = vcombine.high %v2237, %v2237
          %v2250 = vmul.f32 %v2177, %v2216
          %v2251 = vmul.f32 %v2179, %v2230
          %v2252 = vmul.f32 %v2181, %v2238
          %v2253 = vmul.f32 %v2183, %v2240
          %v2254 = vmul.f32 %v2185, %v2223
          %v2255 = vmul.f32 %v2187, %v2237
          %v2256 = vmul.f32 %v2189, %v2239
          %v2257 = vmul.f32 %v2191, %v2241
          %v2266 = vrot.slane %v1504, 1
          %v2267 = vrot.slane %v1507, 1
          %v2268 = vrot.slane %v1510, 1
          %v2269 = vrot.slane %v1513, 1
          %v2270 = vrot.slane %v1516, 1
          %v2271 = vrot.slane %v1519, 1
          %v2272 = vrot.slane %v1522, 1
          %v2273 = vrot.slane %v1525, 1
          %v2282 = vadd.f32 %v2266, %v2250
          %v2283 = vadd.f32 %v2267, %v2251
          %v2284 = vadd.f32 %v2268, %v2252
          %v2285 = vadd.f32 %v2269, %v2253
          %v2286 = vadd.f32 %v2270, %v2254
          %v2287 = vadd.f32 %v2271, %v2255
          %v2288 = vadd.f32 %v2272, %v2256
          %v2289 = vadd.f32 %v2273, %v2257
          %v2290 = vtanh.pop %v2282
          %v2291 = vtanh.pop %v2283
          %v2292 = vtanh.pop %v2284
          %v2293 = vtanh.pop %v2285
          %v2294 = vtanh.pop %v2286
          %v2295 = vtanh.pop %v2287
          %v2296 = vtanh.pop %v2288
          %v2297 = vtanh.pop %v2289
          %v2298 = vsub.f32 1.0, %v2177
          %v2299 = vsub.f32 1.0, %v2179
          %v2300 = vsub.f32 1.0, %v2181
          %v2301 = vsub.f32 1.0, %v2183
          %v2302 = vsub.f32 1.0, %v2185
          %v2303 = vsub.f32 1.0, %v2187
          %v2304 = vsub.f32 1.0, %v2189
          %v2305 = vsub.f32 1.0, %v2191
          %2314 = vrot.lane.b32.xlu0 %v2290, 64
          %v2315 = vpop.permute.xlu0 %2314
          %2316 = vrot.lane.b32.xlu0 %v2291, 64
          %v2317 = vpop.permute.xlu0 %2316
          %2318 = vrot.lane.b32.xlu0 %v2292, 64
          %v2319 = vpop.permute.xlu0 %2318
          %2320 = vrot.lane.b32.xlu0 %v2293, 64
          %v2321 = vpop.permute.xlu0 %2320
          %2322 = vrot.lane.b32.xlu0 %v2294, 64
          %v2323 = vpop.permute.xlu0 %2322
          %2324 = vrot.lane.b32.xlu0 %v2295, 64
          %v2325 = vpop.permute.xlu0 %2324
          %2326 = vrot.lane.b32.xlu0 %v2296, 64
          %v2327 = vpop.permute.xlu0 %2326
          %2328 = vrot.lane.b32.xlu0 %v2297, 64
          %v2329 = vpop.permute.xlu0 %2328
          %v2338 = vmul.f32 %v2298, %v2315
          %v2339 = vmul.f32 %v2299, %v2317
          %v2340 = vmul.f32 %v2300, %v2319
          %v2341 = vmul.f32 %v2301, %v2321
          %v2342 = vmul.f32 %v2302, %v2323
          %v2343 = vmul.f32 %v2303, %v2325
          %v2344 = vmul.f32 %v2304, %v2327
          %v2345 = vmul.f32 %v2305, %v2329
          %v2347 = vcombine.high %v1527, %v1527
          %v2349 = vunpack.c.l.s4 1966171168
          %v2350 = vunpack.c.0.s8 %v2349
          %v2351 = vlaneseq
          %v2352 = vshrl.u32 %v2351, 7
          %v2353 = vsub.s32 %v2350, %v2352
          %v2354 = vrot.slane %v1527, %v2353
          %v2356 = vunpack.c.l.s4 1966171168
          %v2357 = vunpack.c.0.s8 %v2356
          %v2358 = vlaneseq
          %v2359 = vshrl.u32 %v2358, 7
          %v2360 = vsub.s32 %v2357, %v2359
          %v2361 = vrot.slane %v2347, %v2360
          %v2362 = vcombine.high %v2354, %v2354
          %v2363 = vcombine.high %v2361, %v2361
          %v2365 = vunpack.c.l.s4 1966171168
          %v2366 = vunpack.c.0.s8 %v2365
          %v2367 = vlaneseq
          %v2368 = vshrl.u32 %v2367, 7
          %v2369 = vsub.s32 %v2366, %v2368
          %v2370 = vrot.slane %v2354, %v2369
          %v2372 = vunpack.c.l.s4 1966171168
          %v2373 = vunpack.c.0.s8 %v2372
          %v2374 = vlaneseq
          %v2375 = vshrl.u32 %v2374, 7
          %v2376 = vsub.s32 %v2373, %v2375
          %v2377 = vrot.slane %v2361, %v2376
          %v2379 = vunpack.c.l.s4 1966171168
          %v2380 = vunpack.c.0.s8 %v2379
          %v2381 = vlaneseq
          %v2382 = vshrl.u32 %v2381, 7
          %v2383 = vsub.s32 %v2380, %v2382
          %v2384 = vrot.slane %v2362, %v2383
          %v2386 = vunpack.c.l.s4 1966171168
          %v2387 = vunpack.c.0.s8 %v2386
          %v2388 = vlaneseq
          %v2389 = vshrl.u32 %v2388, 7
          %v2390 = vsub.s32 %v2387, %v2389
          %v2391 = vrot.slane %v2363, %v2390
          %v2392 = vcombine.high %v2370, %v2370
          %v2393 = vcombine.high %v2377, %v2377
          %v2394 = vcombine.high %v2384, %v2384
          %v2395 = vcombine.high %v2391, %v2391
          %2396 = vrot.lane.b32.xlu0 %v2370, 64
          %v2397 = vpop.permute.xlu0 %2396
          %2398 = vrot.lane.b32.xlu0 %v2384, 64
          %v2399 = vpop.permute.xlu0 %2398
          %2400 = vrot.lane.b32.xlu0 %v2392, 64
          %v2401 = vpop.permute.xlu0 %2400
          %2402 = vrot.lane.b32.xlu0 %v2394, 64
          %v2403 = vpop.permute.xlu0 %2402
          %2404 = vrot.lane.b32.xlu0 %v2377, 64
          %v2405 = vpop.permute.xlu0 %2404
          %2406 = vrot.lane.b32.xlu0 %v2391, 64
          %v2407 = vpop.permute.xlu0 %2406
          %2408 = vrot.lane.b32.xlu0 %v2393, 64
          %v2409 = vpop.permute.xlu0 %2408
          %2410 = vrot.lane.b32.xlu0 %v2395, 64
          %v2411 = vpop.permute.xlu0 %2410
          %v2420 = vmul.f32 %v2177, %v2397
          %v2421 = vmul.f32 %v2179, %v2399
          %v2422 = vmul.f32 %v2181, %v2401
          %v2423 = vmul.f32 %v2183, %v2403
          %v2424 = vmul.f32 %v2185, %v2405
          %v2425 = vmul.f32 %v2187, %v2407
          %v2426 = vmul.f32 %v2189, %v2409
          %v2427 = vmul.f32 %v2191, %v2411
          %v2428 = vadd.f32 %v2338, %v2420
          %v2429 = vadd.f32 %v2339, %v2421
          %v2430 = vadd.f32 %v2340, %v2422
          %v2431 = vadd.f32 %v2341, %v2423
          %v2432 = vadd.f32 %v2342, %v2424
          %v2433 = vadd.f32 %v2343, %v2425
          %v2434 = vadd.f32 %v2344, %v2426
          %v2435 = vadd.f32 %v2345, %v2427
          %v2444 = vcombine.low %v2070, %v2071
          %v2445 = vcombine.low %v2072, %v2073
          %v2446 = vcombine.low %v2074, %v2075
          %v2447 = vcombine.low %v2076, %v2077
          %v2449 = vunpack.c.l.s4 1966171168
          %v2450 = vunpack.c.0.s8 %v2449
          %v2451 = vlaneseq
          %v2452 = vshrl.u32 %v2451, 7
          %v2453 = vsub.s32 %v2450, %v2452
          %v2454 = vrot.slane %v2444, %v2453
          %v2456 = vunpack.c.l.s4 1966171168
          %v2457 = vunpack.c.0.s8 %v2456
          %v2458 = vlaneseq
          %v2459 = vshrl.u32 %v2458, 7
          %v2460 = vsub.s32 %v2457, %v2459
          %v2461 = vrot.slane %v2445, %v2460
          %v2463 = vunpack.c.l.s4 1966171168
          %v2464 = vunpack.c.0.s8 %v2463
          %v2465 = vlaneseq
          %v2466 = vshrl.u32 %v2465, 7
          %v2467 = vsub.s32 %v2464, %v2466
          %v2468 = vrot.slane %v2446, %v2467
          %v2470 = vunpack.c.l.s4 1966171168
          %v2471 = vunpack.c.0.s8 %v2470
          %v2472 = vlaneseq
          %v2473 = vshrl.u32 %v2472, 7
          %v2474 = vsub.s32 %v2471, %v2473
          %v2475 = vrot.slane %v2447, %v2474
          %v2476 = vcombine.low %v2454, %v2461
          %v2477 = vcombine.low %v2468, %v2475
          %v2479 = vunpack.c.l.s4 1966171168
          %v2480 = vunpack.c.0.s8 %v2479
          %v2481 = vlaneseq
          %v2482 = vshrl.u32 %v2481, 7
          %v2483 = vsub.s32 %v2480, %v2482
          %v2484 = vrot.slane %v2476, %v2483
          %v2486 = vunpack.c.l.s4 1966171168
          %v2487 = vunpack.c.0.s8 %v2486
          %v2488 = vlaneseq
          %v2489 = vshrl.u32 %v2488, 7
          %v2490 = vsub.s32 %v2487, %v2489
          %v2491 = vrot.slane %v2477, %v2490
          %v2492 = vcombine.low %v2484, %v2491
          %2493 = vrot.lane.b32.xlu0 %v2492, 64
          %v2494 = vpop.permute.xlu0 %2493
          %2496 = vst.msk [vmem:[#allocation4] sm:$0xff] %vm1186, %v2494
          %v2505 = vcombine.low %v2428, %v2429
          %v2506 = vcombine.low %v2430, %v2431
          %v2507 = vcombine.low %v2432, %v2433
          %v2508 = vcombine.low %v2434, %v2435
          %v2510 = vunpack.c.l.s4 1966171168
          %v2511 = vunpack.c.0.s8 %v2510
          %v2512 = vlaneseq
          %v2513 = vshrl.u32 %v2512, 7
          %v2514 = vsub.s32 %v2511, %v2513
          %v2515 = vrot.slane %v2505, %v2514
          %v2517 = vunpack.c.l.s4 1966171168
          %v2518 = vunpack.c.0.s8 %v2517
          %v2519 = vlaneseq
          %v2520 = vshrl.u32 %v2519, 7
          %v2521 = vsub.s32 %v2518, %v2520
          %v2522 = vrot.slane %v2506, %v2521
          %v2524 = vunpack.c.l.s4 1966171168
          %v2525 = vunpack.c.0.s8 %v2524
          %v2526 = vlaneseq
          %v2527 = vshrl.u32 %v2526, 7
          %v2528 = vsub.s32 %v2525, %v2527
          %v2529 = vrot.slane %v2507, %v2528
          %v2531 = vunpack.c.l.s4 1966171168
          %v2532 = vunpack.c.0.s8 %v2531
          %v2533 = vlaneseq
          %v2534 = vshrl.u32 %v2533, 7
          %v2535 = vsub.s32 %v2532, %v2534
          %v2536 = vrot.slane %v2508, %v2535
          %v2537 = vcombine.low %v2515, %v2522
          %v2538 = vcombine.low %v2529, %v2536
          %v2540 = vunpack.c.l.s4 1966171168
          %v2541 = vunpack.c.0.s8 %v2540
          %v2542 = vlaneseq
          %v2543 = vshrl.u32 %v2542, 7
          %v2544 = vsub.s32 %v2541, %v2543
          %v2545 = vrot.slane %v2537, %v2544
          %v2547 = vunpack.c.l.s4 1966171168
          %v2548 = vunpack.c.0.s8 %v2547
          %v2549 = vlaneseq
          %v2550 = vshrl.u32 %v2549, 7
          %v2551 = vsub.s32 %v2548, %v2550
          %v2552 = vrot.slane %v2538, %v2551
          %v2553 = vcombine.low %v2545, %v2552
          %2554 = vrot.lane.b32.xlu0 %v2553, 64
          %v2555 = vpop.permute.xlu0 %2554
          %2557 = vst.msk [vmem:[#allocation5] sm:$0xff] %vm1186, %v2555
          %v2558 = vld [vmem:[#allocation6] sm:$0xff]
          %v2559 = vadd.f32 %v2558, %v2494
          %2560 = vst.msk [vmem:[#allocation6] sm:$0xff] %vm1186, %v2559
          %v2561 = vld [vmem:[#allocation7] sm:$0xff]
          %v2562 = vadd.f32 %v2561, %v2555
          %2563 = vst.msk [vmem:[#allocation7] sm:$0xff] %vm1186, %v2562
          %v2564 = vlaneseq
          %v2565 = vshrl.u32 %v2564, 7
          %v2566 = vsub.s32 0, %v2565
          %v2567 = vrot.slane %v2070, %v2566
          %v2568 = vlaneseq
          %v2569 = vshrl.u32 %v2568, 7
          %v2570 = vsub.s32 0, %v2569
          %v2571 = vrot.slane %v2071, %v2570
          %v2572 = vlaneseq
          %v2573 = vshrl.u32 %v2572, 7
          %v2574 = vsub.s32 0, %v2573
          %v2575 = vrot.slane %v2072, %v2574
          %v2576 = vlaneseq
          %v2577 = vshrl.u32 %v2576, 7
          %v2578 = vsub.s32 0, %v2577
          %v2579 = vrot.slane %v2073, %v2578
          %v2580 = vlaneseq
          %v2581 = vshrl.u32 %v2580, 7
          %v2582 = vsub.s32 0, %v2581
          %v2583 = vrot.slane %v2074, %v2582
          %v2584 = vlaneseq
          %v2585 = vshrl.u32 %v2584, 7
          %v2586 = vsub.s32 0, %v2585
          %v2587 = vrot.slane %v2075, %v2586
          %v2588 = vlaneseq
          %v2589 = vshrl.u32 %v2588, 7
          %v2590 = vsub.s32 0, %v2589
          %v2591 = vrot.slane %v2076, %v2590
          %v2592 = vlaneseq
          %v2593 = vshrl.u32 %v2592, 7
          %v2594 = vsub.s32 0, %v2593
          %v2595 = vrot.slane %v2077, %v2594
          %2596 = vrot.lane.b32.xlu0 %v2567, 64
          %v2597 = vpop.permute.xlu0 %2596
          %2598 = vrot.lane.b32.xlu0 %v2571, 64
          %v2599 = vpop.permute.xlu0 %2598
          %2600 = vrot.lane.b32.xlu0 %v2575, 64
          %v2601 = vpop.permute.xlu0 %2600
          %2602 = vrot.lane.b32.xlu0 %v2579, 64
          %v2603 = vpop.permute.xlu0 %2602
          %2604 = vrot.lane.b32.xlu0 %v2583, 64
          %v2605 = vpop.permute.xlu0 %2604
          %2606 = vrot.lane.b32.xlu0 %v2587, 64
          %v2607 = vpop.permute.xlu0 %2606
          %2608 = vrot.lane.b32.xlu0 %v2591, 64
          %v2609 = vpop.permute.xlu0 %2608
          %2610 = vrot.lane.b32.xlu0 %v2595, 64
          %v2611 = vpop.permute.xlu0 %2610
          %s2620 = scalar_lea.vmem %s664, %s1460 [#allocation12]
          %vm2621 = vcmask 516096
          %2622 = vst.msk [vmem:[%s2620] sm:$0x1] %vm2621, %v2597
          %2623 = vst.msk [vmem:[%s2620 + $0x8] sm:$0x1] %vm2621, %v2599
          %2624 = vst.msk [vmem:[%s2620 + $0x10] sm:$0x1] %vm2621, %v2601
          %2625 = vst.msk [vmem:[%s2620 + $0x18] sm:$0x1] %vm2621, %v2603
          %2626 = vst.msk [vmem:[%s2620 + $0x20] sm:$0x1] %vm2621, %v2605
          %2627 = vst.msk [vmem:[%s2620 + $0x28] sm:$0x1] %vm2621, %v2607
          %2628 = vst.msk [vmem:[%s2620 + $0x30] sm:$0x1] %vm2621, %v2609
          %2629 = vst.msk [vmem:[%s2620 + $0x38] sm:$0x1] %vm2621, %v2611
          %v2630 = vlaneseq
          %v2631 = vshrl.u32 %v2630, 7
          %v2632 = vsub.s32 0, %v2631
          %v2633 = vrot.slane %v2428, %v2632
          %v2634 = vlaneseq
          %v2635 = vshrl.u32 %v2634, 7
          %v2636 = vsub.s32 0, %v2635
          %v2637 = vrot.slane %v2429, %v2636
          %v2638 = vlaneseq
          %v2639 = vshrl.u32 %v2638, 7
          %v2640 = vsub.s32 0, %v2639
          %v2641 = vrot.slane %v2430, %v2640
          %v2642 = vlaneseq
          %v2643 = vshrl.u32 %v2642, 7
          %v2644 = vsub.s32 0, %v2643
          %v2645 = vrot.slane %v2431, %v2644
          %v2646 = vlaneseq
          %v2647 = vshrl.u32 %v2646, 7
          %v2648 = vsub.s32 0, %v2647
          %v2649 = vrot.slane %v2432, %v2648
          %v2650 = vlaneseq
          %v2651 = vshrl.u32 %v2650, 7
          %v2652 = vsub.s32 0, %v2651
          %v2653 = vrot.slane %v2433, %v2652
          %v2654 = vlaneseq
          %v2655 = vshrl.u32 %v2654, 7
          %v2656 = vsub.s32 0, %v2655
          %v2657 = vrot.slane %v2434, %v2656
          %v2658 = vlaneseq
          %v2659 = vshrl.u32 %v2658, 7
          %v2660 = vsub.s32 0, %v2659
          %v2661 = vrot.slane %v2435, %v2660
          %2662 = vrot.lane.b32.xlu0 %v2633, 64
          %v2663 = vpop.permute.xlu0 %2662
          %2664 = vrot.lane.b32.xlu0 %v2637, 64
          %v2665 = vpop.permute.xlu0 %2664
          %2666 = vrot.lane.b32.xlu0 %v2641, 64
          %v2667 = vpop.permute.xlu0 %2666
          %2668 = vrot.lane.b32.xlu0 %v2645, 64
          %v2669 = vpop.permute.xlu0 %2668
          %2670 = vrot.lane.b32.xlu0 %v2649, 64
          %v2671 = vpop.permute.xlu0 %2670
          %2672 = vrot.lane.b32.xlu0 %v2653, 64
          %v2673 = vpop.permute.xlu0 %2672
          %2674 = vrot.lane.b32.xlu0 %v2657, 64
          %v2675 = vpop.permute.xlu0 %2674
          %2676 = vrot.lane.b32.xlu0 %v2661, 64
          %v2677 = vpop.permute.xlu0 %2676
          %s2686 = scalar_lea.vmem %s671, %s1465 [#allocation13]
          %2687 = vst.msk [vmem:[%s2686] sm:$0x1] %vm2621, %v2663
          %2688 = vst.msk [vmem:[%s2686 + $0x8] sm:$0x1] %vm2621, %v2665
          %2689 = vst.msk [vmem:[%s2686 + $0x10] sm:$0x1] %vm2621, %v2667
          %2690 = vst.msk [vmem:[%s2686 + $0x18] sm:$0x1] %vm2621, %v2669
          %2691 = vst.msk [vmem:[%s2686 + $0x20] sm:$0x1] %vm2621, %v2671
          %2692 = vst.msk [vmem:[%s2686 + $0x28] sm:$0x1] %vm2621, %v2673
          %2693 = vst.msk [vmem:[%s2686 + $0x30] sm:$0x1] %vm2621, %v2675
          %2694 = vst.msk [vmem:[%s2686 + $0x38] sm:$0x1] %vm2621, %v2677
        $region97: #{tpu_custom_call.1} parent=87 // loop_footer
          %s1464 = sadd.s32 1, %s1460
        $region98: #{tpu_custom_call.1} parent=87 // loop_footer_branch
          %1459 = sbr.rel target = $region94
        $region99: #{tpu_custom_call.1} parent=87 // loop_exit
          _
        %v2695 = vld [vmem:[#allocation6] sm:$0xff]
        %v2696 = vld [vmem:[#allocation7] sm:$0xff]
        %2698 = vrot.lane.b32.xlu0 %v2696, 64
        %v2699 = vpop.permute.xlu0 %2698
        %v2701 = vsel %vm1186, %v2695, %v2699
        %v2703 = vcombine.high %v2701, %v2701
        %v2705 = vunpack.c.l.s4 1966171168
        %v2706 = vunpack.c.0.s8 %v2705
        %v2707 = vlaneseq
        %v2708 = vshrl.u32 %v2707, 7
        %v2709 = vsub.s32 %v2706, %v2708
        %v2710 = vrot.slane %v2701, %v2709
        %v2712 = vunpack.c.l.s4 1966171168
        %v2713 = vunpack.c.0.s8 %v2712
        %v2714 = vlaneseq
        %v2715 = vshrl.u32 %v2714, 7
        %v2716 = vsub.s32 %v2713, %v2715
        %v2717 = vrot.slane %v2703, %v2716
        %v2718 = vcombine.high %v2710, %v2710
        %v2719 = vcombine.high %v2717, %v2717
        %v2721 = vunpack.c.l.s4 1966171168
        %v2722 = vunpack.c.0.s8 %v2721
        %v2723 = vlaneseq
        %v2724 = vshrl.u32 %v2723, 7
        %v2725 = vsub.s32 %v2722, %v2724
        %v2726 = vrot.slane %v2710, %v2725
        %v2728 = vunpack.c.l.s4 1966171168
        %v2729 = vunpack.c.0.s8 %v2728
        %v2730 = vlaneseq
        %v2731 = vshrl.u32 %v2730, 7
        %v2732 = vsub.s32 %v2729, %v2731
        %v2733 = vrot.slane %v2717, %v2732
        %v2735 = vunpack.c.l.s4 1966171168
        %v2736 = vunpack.c.0.s8 %v2735
        %v2737 = vlaneseq
        %v2738 = vshrl.u32 %v2737, 7
        %v2739 = vsub.s32 %v2736, %v2738
        %v2740 = vrot.slane %v2718, %v2739
        %v2742 = vunpack.c.l.s4 1966171168
        %v2743 = vunpack.c.0.s8 %v2742
        %v2744 = vlaneseq
        %v2745 = vshrl.u32 %v2744, 7
        %v2746 = vsub.s32 %v2743, %v2745
        %v2747 = vrot.slane %v2719, %v2746
        %v2748 = vcombine.high %v2726, %v2726
        %v2749 = vcombine.high %v2733, %v2733
        %v2750 = vcombine.high %v2740, %v2740
        %v2751 = vcombine.high %v2747, %v2747
        %2760 = vst [vmem:[%s678] sm:$0x1] %v2726
        %2761 = vst [vmem:[%s678 + $0x1] sm:$0x1] %v2740
        %2762 = vst [vmem:[%s678 + $0x2] sm:$0x1] %v2748
        %2763 = vst [vmem:[%s678 + $0x3] sm:$0x1] %v2750
        %2764 = vst [vmem:[%s678 + $0x4] sm:$0x1] %v2733
        %2765 = vst [vmem:[%s678 + $0x5] sm:$0x1] %v2747
        %2766 = vst [vmem:[%s678 + $0x6] sm:$0x1] %v2749
        %2767 = vst [vmem:[%s678 + $0x7] sm:$0x1] %v2751
        %v2768 = vld [vmem:[%s688] sm:$0x1]
        %v2769 = vld [vmem:[%s688 + $0x1] sm:$0x1]
        %v2770 = vld [vmem:[%s688 + $0x2] sm:$0x1]
        %v2771 = vld [vmem:[%s688 + $0x3] sm:$0x1]
        %v2772 = vld [vmem:[%s688 + $0x4] sm:$0x1]
        %v2773 = vld [vmem:[%s688 + $0x5] sm:$0x1]
        %v2774 = vld [vmem:[%s688 + $0x6] sm:$0x1]
        %v2775 = vld [vmem:[%s688 + $0x7] sm:$0x1]
        %v2776 = vpack.c.bf16 %v2701, %v2701
        %v2777 = vld [vmem:[%s14] sm:$0xf]
        %v2778 = vld [vmem:[%s14 + $0x4] sm:$0xf]
        %v2779 = vld [vmem:[%s14 + $0x8] sm:$0xf]
        %v2780 = vld [vmem:[%s14 + $0xc] sm:$0xf]
        %v2781 = vld [vmem:[%s14 + $0x10] sm:$0xf]
        %v2782 = vld [vmem:[%s14 + $0x14] sm:$0xf]
        %v2783 = vld [vmem:[%s14 + $0x18] sm:$0xf]
        %v2784 = vld [vmem:[%s14 + $0x1c] sm:$0xf]
        %v2785 = vld [vmem:[%s14 + $0x20] sm:$0xf]
        %v2786 = vld [vmem:[%s14 + $0x24] sm:$0xf]
        %v2787 = vld [vmem:[%s14 + $0x28] sm:$0xf]
        %v2788 = vld [vmem:[%s14 + $0x2c] sm:$0xf]
        %v2789 = vld [vmem:[%s14 + $0x30] sm:$0xf]
        %v2790 = vld [vmem:[%s14 + $0x34] sm:$0xf]
        %v2791 = vld [vmem:[%s14 + $0x38] sm:$0xf]
        %v2792 = vld [vmem:[%s14 + $0x3c] sm:$0xf]
        %v2793 = vpack.c.bf16 %v2768, %v2768
        %v2794 = vpack.c.bf16 %v2769, %v2769
        %v2795 = vpack.c.bf16 %v2770, %v2770
        %v2796 = vpack.c.bf16 %v2771, %v2771
        %v2797 = vpack.c.bf16 %v2772, %v2772
        %v2798 = vpack.c.bf16 %v2773, %v2773
        %v2799 = vpack.c.bf16 %v2774, %v2774
        %v2800 = vpack.c.bf16 %v2775, %v2775
        %v2801 = vld [vmem:[%s15] sm:$0x3]
        %v2810 = vunpack.c.l.b16 %v2793
        %v2811 = vunpack.c.l.b16 %v2794
        %v2812 = vunpack.c.l.b16 %v2795
        %v2813 = vunpack.c.l.b16 %v2796
        %v2814 = vunpack.c.l.b16 %v2797
        %v2815 = vunpack.c.l.b16 %v2798
        %v2816 = vunpack.c.l.b16 %v2799
        %v2817 = vunpack.c.l.b16 %v2800
        %v2818 = vrot.slane %v2811, 7
        %vm2819 = vcmask 1041409
        %v2820 = vsel %vm2819, %v2818, %v2810
        %v2821 = vrot.slane %v2812, 6
        %vm2822 = vcmask 1042434
        %v2823 = vsel %vm2822, %v2821, %v2820
        %v2824 = vrot.slane %v2813, 5
        %vm2825 = vcmask 1043459
        %v2826 = vsel %vm2825, %v2824, %v2823
        %v2827 = vrot.slane %v2814, 4
        %vm2828 = vcmask 1044484
        %v2829 = vsel %vm2828, %v2827, %v2826
        %v2830 = vrot.slane %v2815, 3
        %vm2831 = vcmask 1045509
        %v2832 = vsel %vm2831, %v2830, %v2829
        %v2833 = vrot.slane %v2816, 2
        %vm2834 = vcmask 1046534
        %v2835 = vsel %vm2834, %v2833, %v2832
        %v2836 = vrot.slane %v2817, 1
        %vm2837 = vcmask 1047559
        %v2838 = vsel %vm2837, %v2836, %v2835
        %v2839 = vpack.c.b16 %v2838, %v2838
        %vm2840 = vcmask 23552
        %v2842 = vsel %vm2840, %v2839, 0
        %vm2844 = vcmask 1040384
        %vm2845 = vcmask 1041408
        %v2846 = vsel %vm2844, 4294967295, 65535
        %v2847 = vsel %vm2845, %v2846, 0
        %v2849 = vand.u32 %v2801, %v2847
        %2851 = vmatprep.subr.bf16.mxu0 0
        %2852 = vmatpush1.bf16.msra.mxu0 %v2849
        %2853 = vmatprep.subr.bf16.mxu0 0
        %2854 = vmatpush1.bf16.msra.mxu0 0
        %2855 = vmatprep.subr.bf16.mxu0 0
        %2856 = vmatpush1.bf16.msra.mxu0 0
        %2857 = vmatprep.subr.bf16.mxu0 0
        %2858 = vmatpush1.bf16.msra.mxu0 0
        %2859 = vmatprep.subr.bf16.mxu0 0
        %2860 = vmatpush1.bf16.msra.mxu0 0
        %2861 = vmatprep.subr.bf16.mxu0 0
        %2862 = vmatpush1.bf16.msra.mxu0 0
        %2863 = vmatprep.subr.bf16.mxu0 0
        %2864 = vmatpush1.bf16.msra.mxu0 0
        %2865 = vmatprep.subr.bf16.mxu0 0
        %2866 = vmatpush1.bf16.msra.mxu0 0
        %2867 = vmatprep.subr.bf16.mxu0 0
        %2868 = vmatpush1.bf16.msra.mxu0 0
        %2869 = vmatprep.subr.bf16.mxu0 0
        %2870 = vmatpush1.bf16.msra.mxu0 0
        %2871 = vmatprep.subr.bf16.mxu0 0
        %2872 = vmatpush1.bf16.msra.mxu0 0
        %2873 = vmatprep.subr.bf16.mxu0 0
        %2874 = vmatpush1.bf16.msra.mxu0 0
        %2875 = vmatprep.subr.bf16.mxu0 0
        %2876 = vmatpush1.bf16.msra.mxu0 0
        %2877 = vmatprep.subr.bf16.mxu0 0
        %2878 = vmatpush1.bf16.msra.mxu0 0
        %2879 = vmatprep.subr.bf16.mxu0 0
        %2880 = vmatpush1.bf16.msra.mxu0 0
        %2881 = vmatprep.subr.bf16.mxu0 0
        %2882 = vmatpush1.bf16.msra.mxu0 0
        %2883 = vmatprep.mubr.bf16.mxu0 0
        %2884 = vmatmul.mubr.bf16.gmra.mrb[0].mxu0 %v2842
        %v2885 = vpop.f32.mrb[0].mxu0
        %v2886 = vadd.f32 0.0, %v2885
        %v2887 = vpop.f32.mrb[0].mxu0
        %v2888 = vpop.f32.mrb[0].mxu0
        %v2889 = vpop.f32.mrb[0].mxu0
        %2890 = vdwg.mxu0
        %v2907 = vunpack.c.l.b16 %v2777
        %v2908 = vunpack.c.l.b16 %v2778
        %v2909 = vunpack.c.l.b16 %v2779
        %v2910 = vunpack.c.l.b16 %v2780
        %v2911 = vunpack.c.l.b16 %v2781
        %v2912 = vunpack.c.l.b16 %v2782
        %v2913 = vunpack.c.l.b16 %v2783
        %v2914 = vunpack.c.l.b16 %v2784
        %v2915 = vunpack.c.l.b16 %v2785
        %v2916 = vunpack.c.l.b16 %v2786
        %v2917 = vunpack.c.l.b16 %v2787
        %v2918 = vunpack.c.l.b16 %v2788
        %v2919 = vunpack.c.l.b16 %v2789
        %v2920 = vunpack.c.l.b16 %v2790
        %v2921 = vunpack.c.l.b16 %v2791
        %v2922 = vunpack.c.l.b16 %v2792
        %v2923 = vpack.c.b16 %v2908, %v2907
        %v2924 = vpack.c.b16 %v2910, %v2909
        %v2925 = vpack.c.b16 %v2912, %v2911
        %v2926 = vpack.c.b16 %v2914, %v2913
        %v2927 = vpack.c.b16 %v2916, %v2915
        %v2928 = vpack.c.b16 %v2918, %v2917
        %v2929 = vpack.c.b16 %v2920, %v2919
        %v2930 = vpack.c.b16 %v2922, %v2921
        %2939 = vmatprep.subr.bf16.mxu0 0
        %2940 = vmatpush1.bf16.msra.mxu0 %v2923
        %2941 = vmatprep.subr.bf16.mxu0 0
        %2942 = vmatpush1.bf16.msra.mxu0 %v2924
        %2943 = vmatprep.subr.bf16.mxu0 0
        %2944 = vmatpush1.bf16.msra.mxu0 %v2925
        %2945 = vmatprep.subr.bf16.mxu0 0
        %2946 = vmatpush1.bf16.msra.mxu0 %v2926
        %2947 = vmatprep.subr.bf16.mxu0 0
        %2948 = vmatpush1.bf16.msra.mxu0 %v2927
        %2949 = vmatprep.subr.bf16.mxu0 0
        %2950 = vmatpush1.bf16.msra.mxu0 %v2928
        %2951 = vmatprep.subr.bf16.mxu0 0
        %2952 = vmatpush1.bf16.msra.mxu0 %v2929
        %2953 = vmatprep.subr.bf16.mxu0 0
        %2954 = vmatpush1.bf16.msra.mxu0 %v2930
        %2955 = vmatprep.subr.bf16.mxu0 0
        %2956 = vmatpush1.bf16.msra.mxu0 0
        %2957 = vmatprep.subr.bf16.mxu0 0
        %2958 = vmatpush1.bf16.msra.mxu0 0
        %2959 = vmatprep.subr.bf16.mxu0 0
        %2960 = vmatpush1.bf16.msra.mxu0 0
        %2961 = vmatprep.subr.bf16.mxu0 0
        %2962 = vmatpush1.bf16.msra.mxu0 0
        %2963 = vmatprep.subr.bf16.mxu0 0
        %2964 = vmatpush1.bf16.msra.mxu0 0
        %2965 = vmatprep.subr.bf16.mxu0 0
        %2966 = vmatpush1.bf16.msra.mxu0 0
        %2967 = vmatprep.subr.bf16.mxu0 0
        %2968 = vmatpush1.bf16.msra.mxu0 0
        %2969 = vmatprep.subr.bf16.mxu0 0
        %2970 = vmatpush1.bf16.msra.mxu0 0
        %2971 = vmatprep.mubr.bf16.mxu0 0
        %2972 = vmatmul.mubr.bf16.gmra.mrb[0].mxu0 %v2776
        %v2973 = vpop.f32.mrb[0].mxu0
        %v2974 = vadd.f32 %v2886, %v2973
        %v2975 = vpop.f32.mrb[0].mxu0
        %v2976 = vpop.f32.mrb[0].mxu0
        %v2977 = vpop.f32.mrb[0].mxu0
        %2978 = vdwg.mxu0
        %v2979 = vld [vmem:[%s16] sm:$0x1]
        %v2981 = vlaneseq
        %v2982 = vshrl.u32 %v2981, 7
        %v2983 = vsub.s32 0, %v2982
        %v2984 = vrot.slane %v2979, %v2983
        %v2986 = vadd.f32 %v2974, %v2984
        %vm2987 = vcmask 31744
        %v2988 = vsel %vm2987, %v2986, -inf
        %2989 = vmax.xlane.f32.xlu0 %v2988
        %v2990 = vpop.xlane.xlu0 %2989
        %v2991 = vsub.f32 %v2986, %v2990
        %v2992 = vmul.f32 %v2991, 1.442695
        %v2993 = vpow.pop %v2992
        %v2994 = vsel %vm2987, %v2993, 0.0
        %2995 = vadd.xlane.f32.xlu0 %v2994
        %v2996 = vpop.xlane.xlu0 %2995
        %v2997 = vrcp.pop %v2996
        %v2998 = vmul.f32 %v2993, %v2997
        %v3000 = vcombine.high %v2998, %v2998
        %v3002 = vunpack.c.l.s4 1966171168
        %v3003 = vunpack.c.0.s8 %v3002
        %v3004 = vlaneseq
        %v3005 = vshrl.u32 %v3004, 7
        %v3006 = vsub.s32 %v3003, %v3005
        %v3007 = vrot.slane %v2998, %v3006
        %v3009 = vunpack.c.l.s4 1966171168
        %v3010 = vunpack.c.0.s8 %v3009
        %v3011 = vlaneseq
        %v3012 = vshrl.u32 %v3011, 7
        %v3013 = vsub.s32 %v3010, %v3012
        %v3014 = vrot.slane %v3000, %v3013
        %v3015 = vcombine.high %v3007, %v3007
        %v3016 = vcombine.high %v3014, %v3014
        %v3018 = vunpack.c.l.s4 1966171168
        %v3019 = vunpack.c.0.s8 %v3018
        %v3020 = vlaneseq
        %v3021 = vshrl.u32 %v3020, 7
        %v3022 = vsub.s32 %v3019, %v3021
        %v3023 = vrot.slane %v3007, %v3022
        %v3025 = vunpack.c.l.s4 1966171168
        %v3026 = vunpack.c.0.s8 %v3025
        %v3027 = vlaneseq
        %v3028 = vshrl.u32 %v3027, 7
        %v3029 = vsub.s32 %v3026, %v3028
        %v3030 = vrot.slane %v3014, %v3029
        %v3032 = vunpack.c.l.s4 1966171168
        %v3033 = vunpack.c.0.s8 %v3032
        %v3034 = vlaneseq
        %v3035 = vshrl.u32 %v3034, 7
        %v3036 = vsub.s32 %v3033, %v3035
        %v3037 = vrot.slane %v3015, %v3036
        %v3039 = vunpack.c.l.s4 1966171168
        %v3040 = vunpack.c.0.s8 %v3039
        %v3041 = vlaneseq
        %v3042 = vshrl.u32 %v3041, 7
        %v3043 = vsub.s32 %v3040, %v3042
        %v3044 = vrot.slane %v3016, %v3043
        %v3045 = vcombine.high %v3023, %v3023
        %v3046 = vcombine.high %v3030, %v3030
        %v3047 = vcombine.high %v3037, %v3037
        %v3048 = vcombine.high %v3044, %v3044
        %vm3057 = vcmask 24576
        %3058 = vst.msk [vmem:[%s693] sm:$0x1] %vm3057, %v3023
        %3059 = vst.msk [vmem:[%s693 + $0x1] sm:$0x1] %vm3057, %v3037
        %3060 = vst.msk [vmem:[%s693 + $0x2] sm:$0x1] %vm3057, %v3045
        %3061 = vst.msk [vmem:[%s693 + $0x3] sm:$0x1] %vm3057, %v3047
        %3062 = vst.msk [vmem:[%s693 + $0x4] sm:$0x1] %vm3057, %v3030
        %3063 = vst.msk [vmem:[%s693 + $0x5] sm:$0x1] %vm3057, %v3044
        %3064 = vst.msk [vmem:[%s693 + $0x6] sm:$0x1] %vm3057, %v3046
        %3065 = vst.msk [vmem:[%s693 + $0x7] sm:$0x1] %vm3057, %v3048
        %s3066 = smul.u32 8, %s41
        %p3067 = scmp.lt.s32.totalorder %s3066, 15
        %s3068 = scalar_select %p3067, %s3066, 15
        %s3069 = scalar_lea.vmem %s17, %s3068
        %s3070 = sand.u32 %s442, 1
        %s3071 = scalar_lea.sflag [#allocation11], %s3070
        %s3072 = sand.u32 %s442, 1
        %s3073 = smul.addr %s3072, 64
        %s3074 = scalar_lea.vmem [#allocation12], %s3073
        %s3075 = sand.u32 %s41, 1
        %s3076 = scalar_lea.sflag [#allocation14], %s3075
        %s3077 = sand.u32 %s468, 1
        %s3078 = smul.addr %s3077, 64
        %s3079 = scalar_lea.vmem [#allocation13], %s3078
        %s3080 = sand.u32 %s41, 1
        %s3081 = scalar_lea.sflag [#allocation14], %s3080
        %s3082 = sand.u32 %s494, 1
        %s3083 = smul.addr %s3082, 8
        %s3084 = scalar_lea.vmem [#allocation15], %s3083
        // Predicated region
        $region100: #{tpu_custom_call.1} parent=87 // pred_check
          %p3085 = pneg %p426
        $region101: #{tpu_custom_call.1} parent=87 // pred_check_branch
          %3087 = sbr.rel (%p3085) target = $region103
        $region102: #{tpu_custom_call.1} parent=87 // pred_region
          %s3088 = smul.u32 8, %s41
        $region103: #{tpu_custom_call.1} parent=87 // pred_fallthru
          _
        // Predicated region
        $region104: #{tpu_custom_call.1} parent=87 // pred_check
          %p3089 = pneg %p452
        $region105: #{tpu_custom_call.1} parent=87 // pred_check_branch
          %3091 = sbr.rel (%p3089) target = $region107
        $region106: #{tpu_custom_call.1} parent=87 // pred_region
          %s3092 = smul.u32 8, %s41
          %s3094 = ssub.s32 1024, 1024
          %3095 = vsyncadd %s3071, %s3094
          %s3096 = smul.addr %s3092, 128
          %s3097 = scalar_lea.hbm %s18, %s3096
          %s3098 = sshll.u32 %s3074, 4
          %s3099 = int_to_ptr.vmem [resolvable:$true] %s3098
          %3104 = dma.vmem_to_hbm [thread:$0]  %s3099, 1024, %s3097, %s3071, 128, 128, 8
        $region107: #{tpu_custom_call.1} parent=87 // pred_fallthru
          _
        // Predicated region
        $region108: #{tpu_custom_call.1} parent=87 // pred_check
          %p3105 = pneg %p478
        $region109: #{tpu_custom_call.1} parent=87 // pred_check_branch
          %3107 = sbr.rel (%p3105) target = $region111
        $region110: #{tpu_custom_call.1} parent=87 // pred_region
          %s3108 = smul.u32 8, %s41
          %s3110 = ssub.s32 1024, 1024
          %3111 = vsyncadd %s3076, %s3110
          %s3112 = smul.addr %s3108, 128
          %s3113 = scalar_lea.hbm %s19, %s3112
          %s3114 = sshll.u32 %s3079, 4
          %s3115 = int_to_ptr.vmem [resolvable:$true] %s3114
          %3120 = dma.vmem_to_hbm [thread:$0]  %s3115, 1024, %s3113, %s3076, 128, 128, 8
        $region111: #{tpu_custom_call.1} parent=87 // pred_fallthru
          _
        // Predicated region
        $region112: #{tpu_custom_call.1} parent=87 // pred_check
          %p3121 = pneg %p504
        $region113: #{tpu_custom_call.1} parent=87 // pred_check_branch
          %3123 = sbr.rel (%p3121) target = $region115
        $region114: #{tpu_custom_call.1} parent=87 // pred_region
          %s3124 = smul.u32 8, %s41
          %s3126 = ssub.s32 128, 128
          %3127 = vsyncadd %s3081, %s3126
          %s3128 = smul.addr %s3124, 16
          %s3129 = scalar_lea.hbm %s20, %s3128
          %s3130 = sshll.u32 %s3084, 4
          %s3131 = int_to_ptr.vmem [resolvable:$true] %s3130
          %3136 = dma.vmem_to_hbm [thread:$0]  %s3131, 128, %s3129, %s3081, 16, 16, 1
        $region115: #{tpu_custom_call.1} parent=87 // pred_fallthru
          _
      $region88: #{tpu_custom_call.1} parent=5 // pred_fallthru
        _
      %p3137 = scmp.le.s32.totalorder 2, %s36
      // Predicated region
      $region116: #{tpu_custom_call.1} parent=5 // pred_check
        %p3138 = pneg %p3137
      $region117: #{tpu_custom_call.1} parent=5 // pred_check_branch
        %3140 = sbr.rel (%p3138) target = $region119
      $region118: #{tpu_custom_call.1} parent=5 // pred_region
        %s3141 = ssub.s32 %s36, 2
        // Predicated region
        $region120: #{tpu_custom_call.1} parent=118 // pred_check
          %p3142 = pneg %p432
        $region121: #{tpu_custom_call.1} parent=118 // pred_check_branch
          %3144 = sbr.rel (%p3142) target = $region123
        $region122: #{tpu_custom_call.1} parent=118 // pred_region
          %s3145 = smul.u32 8, %s42
          %p3146 = scmp.lt.s32.totalorder %s3145, 15
          %s3147 = scalar_select %p3146, %s3145, 15
          %s3148 = scalar_lea.vmem %s17, %s3147
        $region123: #{tpu_custom_call.1} parent=118 // pred_fallthru
          _
        // Predicated region
        $region124: #{tpu_custom_call.1} parent=118 // pred_check
          %p3149 = pneg %p458
        $region125: #{tpu_custom_call.1} parent=118 // pred_check_branch
          %3151 = sbr.rel (%p3149) target = $region127
        $region126: #{tpu_custom_call.1} parent=118 // pred_region
          %s3152 = sand.u32 %s443, 1
          %s3153 = scalar_lea.sflag [#allocation11], %s3152
          %s3154 = sand.u32 %s443, 1
          %s3155 = smul.addr %s3154, 64
          %s3156 = scalar_lea.vmem [#allocation12], %s3155
          %3157 = dma.done %s3153, 1024
        $region127: #{tpu_custom_call.1} parent=118 // pred_fallthru
          _
        // Predicated region
        $region128: #{tpu_custom_call.1} parent=118 // pred_check
          %p3158 = pneg %p484
        $region129: #{tpu_custom_call.1} parent=118 // pred_check_branch
          %3160 = sbr.rel (%p3158) target = $region131
        $region130: #{tpu_custom_call.1} parent=118 // pred_region
          %s3161 = sand.u32 %s42, 1
          %s3162 = scalar_lea.sflag [#allocation14], %s3161
          %s3163 = sand.u32 %s469, 1
          %s3164 = smul.addr %s3163, 64
          %s3165 = scalar_lea.vmem [#allocation13], %s3164
          %3166 = dma.done %s3162, 1024
        $region131: #{tpu_custom_call.1} parent=118 // pred_fallthru
          _
        // Predicated region
        $region132: #{tpu_custom_call.1} parent=118 // pred_check
          %p3167 = pneg %p510
        $region133: #{tpu_custom_call.1} parent=118 // pred_check_branch
          %3169 = sbr.rel (%p3167) target = $region135
        $region134: #{tpu_custom_call.1} parent=118 // pred_region
          %s3170 = sand.u32 %s42, 1
          %s3171 = scalar_lea.sflag [#allocation14], %s3170
          %s3172 = sand.u32 %s495, 1
          %s3173 = smul.addr %s3172, 8
          %s3174 = scalar_lea.vmem [#allocation15], %s3173
          %3175 = dma.done %s3171, 128
        $region135: #{tpu_custom_call.1} parent=118 // pred_fallthru
          _
      $region119: #{tpu_custom_call.1} parent=5 // pred_fallthru
        _
    $region6: #{tpu_custom_call.1} parent=1 // loop_footer
      %s40 = sadd.s32 1, %s36
    $region7: #{tpu_custom_call.1} parent=1 // loop_footer_branch
      %35 = sbr.rel target = $region3
    $region8: #{tpu_custom_call.1} parent=1 // loop_exit
      _
    %3176 = vsyncpa [#allocation10], 1
    %s3177 = scalar_lea.sflag [#allocation10], 1
    %3178 = vsyncpa %s3177, 1
    %3179 = vsyncpa [#allocation11], 1
    %s3180 = scalar_lea.sflag [#allocation11], 1
    %3181 = vsyncpa %s3180, 1
    %3182 = vsyncpa [#allocation14], 1
    %s3183 = scalar_lea.sflag [#allocation14], 1
    %3184 = vsyncpa %s3183, 1

</llo_original>
